<compile_context>
chip_gen: v6e
topology: v6e:2x2x1
jax: 0.10.0
libtpu: 0.0.40
codegen_flags: <defaults>
</compile_context>

<pallas_src>
import functools

import jax
import jax.numpy as jnp
from jax import lax
from jax.experimental import pallas as pl
from jax.experimental.pallas import tpu as pltpu

_LANES = 128


def _round_up(x, m):
    return (x + m - 1) // m * m


def _pick_strip(ho, wo, budget, est_fn, target_m=512):
    """Largest output-row strip th (divisor of Ho) with th*Wo <= ~512 MXU rows that
    fits the VMEM budget, preferring 8-sublane-aligned strip sizes."""
    divs = [d for d in range(1, ho + 1) if ho % d == 0]
    cands = [d for d in divs if d * wo <= max(target_m, wo)]
    aligned = [d for d in cands if (d * wo) % 8 == 0 or d == ho]
    pool = aligned if aligned else cands
    for d in sorted(pool, reverse=True):
        if est_fn(d) <= budget:
            return d
    return min(pool)


def _dwblock_kernel(x_ref, wdw_ref, affdw_ref, wsep_ref, affsep_ref, o_ref,
                    y_scr, *, stride, th, wo, mxu_dtype):
    """Grid = (batch, output-row strip). Computes one (th*Wo, Cout_p) output strip.

    x_ref     : (1, Hp, stride, Wd, Cin_p)  column-deinterleaved padded input
    wdw_ref   : (9, Cin_p)                  3x3 depthwise taps, k = di*3 + dj
    affdw_ref : (2, Cin_p)                  folded-BN scale / bias (depthwise)
    wsep_ref  : (Cin_p, Cout_p)             1x1 weights, already in mxu_dtype
    affsep_ref: (2, Cout_p)                 folded-BN scale / bias (pointwise)
    o_ref     : (1, th*Wo, Cout_p)
    y_scr     : (th*Wo, Cin_p) VMEM scratch in mxu_dtype
    """
    r = pl.program_id(1)
    cin = x_ref.shape[-1]
    row0 = r * (th * stride)                       # first padded-input row of strip

    # Hoisted once per strip (JAX does not CSE broadcast_in_dim; re-slicing these
    # inside the i/di/dj loops repeats VPU work).
    wdw = wdw_ref[...].astype(jnp.float32)         # (9, Cin_p)
    taps = [wdw[k:k + 1, :] for k in range(9)]
    s_dw = affdw_ref[0:1, :].astype(jnp.float32)
    b_dw = affdw_ref[1:2, :].astype(jnp.float32)

    # Depthwise 3x3 conv + folded BN + ReLU, one output row at a time so vreg live
    # ranges stay bounded; each row goes straight to VMEM scratch in mxu_dtype.
    for i in range(th):
        acc = jnp.zeros((wo, cin), jnp.float32)
        for di in range(3):
            ridx = row0 + i * stride + di
            prow = [None] * stride                 # one VMEM load per (row, parity)
            for dj in range(3):
                par, start = dj % stride, dj // stride
                if prow[par] is None:
                    prow[par] = x_ref[0, ridx, par, :, :].astype(jnp.float32)
                xs = prow[par][start:start + wo, :]      # unit-stride static slice
                acc = acc + xs * taps[di * 3 + dj]
        y = jnp.maximum(acc * s_dw + b_dw, 0.0)
        y_scr[i * wo:(i + 1) * wo, :] = y.astype(mxu_dtype)

    # Pointwise 1x1 conv for the whole strip as a single MXU matmul (+ BN + ReLU).
    out = jnp.dot(y_scr[...], wsep_ref[...], preferred_element_type=jnp.float32)
    s_sep = affsep_ref[0:1, :].astype(jnp.float32)
    b_sep = affsep_ref[1:2, :].astype(jnp.float32)
    out = jnp.maximum(out * s_sep + b_sep, 0.0)
    o_ref[0] = out.astype(o_ref.dtype)


@functools.partial(jax.jit, static_argnames=("stride", "eps", "mxu_dtype"))
def depthwise_block_forward(x_nchw, p, stride=1, eps=1e-5, mxu_dtype=jnp.bfloat16):
    """PyTorch-equivalent forward. x_nchw: (N, Cin, H, W) -> (N, Cout, Ho, Wo).

    Expected parameter layouts (converted from PyTorch):
      w_dw : conv_dw.weight  (Cin,1,3,3)    stored here as (3,3,Cin)
      w_sep: conv_sep.weight (Cout,Cin,1,1) stored here TRANSPOSED as (Cin,Cout)
      g/b/m/v_{dw,sep}: BatchNorm gamma/beta/running_mean/running_var.
    """
    N, Cin, H, W = x_nchw.shape
    Cout = p["w_sep"].shape[1]
    Ho = (H - 1) // stride + 1
    Wo = (W - 1) // stride + 1
    cin_p = _round_up(Cin, _LANES)
    cout_p = _round_up(Cout, _LANES)

    # NCHW -> NHWC, spatial zero-pad for the 3x3 conv, channel pad to lane width, and
    # column de-interleave by `stride` (parity axis) so every in-kernel tap read is a
    # contiguous unit-stride slice (no strided sublane indexing). Fuses to one HBM pass.
    wd = max(-(-(W + 2) // stride), Wo + 2 // stride)   # per-parity padded width
    wp_pad = wd * stride
    x = jnp.transpose(x_nchw, (0, 2, 3, 1))
    xp = jnp.pad(x, ((0, 0), (1, 1), (1, wp_pad - W - 1), (0, cin_p - Cin)))
    xd = jnp.transpose(xp.reshape(N, H + 2, wd, stride, cin_p), (0, 1, 3, 2, 4))

    # Fold BN running stats into scale/bias. Padded channels get scale=bias=0 so the
    # padded lanes are exactly zero (ReLU keeps them zero) and are sliced off below.
    s_dw = p["g_dw"] / jnp.sqrt(p["v_dw"] + eps)
    b_dw = p["b_dw"] - p["m_dw"] * s_dw
    s_sep = p["g_sep"] / jnp.sqrt(p["v_sep"] + eps)
    b_sep = p["b_sep"] - p["m_sep"] * s_sep

    wdw9 = jnp.pad(p["w_dw"].reshape(9, Cin).astype(jnp.float32),
                   ((0, 0), (0, cin_p - Cin)))
    aff_dw = jnp.pad(jnp.stack([s_dw, b_dw]).astype(jnp.float32),
                     ((0, 0), (0, cin_p - Cin)))
    # 1x1 weights pre-cast to the MXU dtype (halves DMA/VMEM, no per-step cast).
    wsep = jnp.pad(p["w_sep"], ((0, cin_p - Cin), (0, cout_p - Cout))).astype(mxu_dtype)
    aff_sep = jnp.pad(jnp.stack([s_sep, b_sep]).astype(jnp.float32),
                      ((0, 0), (0, cout_p - Cout)))

    # Generation-aware VMEM budget (0.75 * physical VMEM; 64 MiB fallback = v7x per-TC).
    try:
        vmem_cap = int(pltpu.get_tpu_info().vmem_capacity_bytes)
    except Exception:
        vmem_cap = 64 * 1024 * 1024
    budget = int(vmem_cap * 0.75)

    in_isz = x.dtype.itemsize
    mxu_isz = jnp.dtype(mxu_dtype).itemsize
    out_isz = x.dtype.itemsize
    in_blk = (H + 2) * wp_pad * cin_p * in_isz
    par_b = (9 + 2) * cin_p * 4 + cin_p * cout_p * mxu_isz + 2 * cout_p * 4

    def est(th_):
        out_blk = th_ * Wo * cout_p * out_isz
        scr = th_ * Wo * cin_p * mxu_isz
        return 2 * (in_blk + out_blk + par_b) + scr      # in/out/params double-buffered

    th = _pick_strip(Ho, Wo, budget, est)
    vmem_limit = int(min(budget, max(32 * 1024 * 1024, int(est(th) * 1.25))))

    kernel = functools.partial(_dwblock_kernel, stride=stride, th=th, wo=Wo,
                               mxu_dtype=mxu_dtype)
    out = pl.pallas_call(
        kernel,
        out_shape=jax.ShapeDtypeStruct((N, Ho * Wo, cout_p), x.dtype),
        grid_spec=pltpu.PrefetchScalarGridSpec(
            num_scalar_prefetch=0,
            grid=(N, Ho // th),
            in_specs=[
                # Padded, de-interleaved image stays VMEM-resident across the strip
                # axis (block index independent of r -> DMA'd once per batch element).
                pl.BlockSpec((1, H + 2, stride, wd, cin_p),
                             lambda n, r: (n, 0, 0, 0, 0)),
                pl.BlockSpec((9, cin_p), lambda n, r: (0, 0)),
                pl.BlockSpec((2, cin_p), lambda n, r: (0, 0)),
                pl.BlockSpec((cin_p, cout_p), lambda n, r: (0, 0)),
                pl.BlockSpec((2, cout_p), lambda n, r: (0, 0)),
            ],
            out_specs=pl.BlockSpec((1, th * Wo, cout_p), lambda n, r: (n, r, 0)),
            scratch_shapes=[pltpu.VMEM((th * Wo, cin_p), mxu_dtype)],
        ),
        compiler_params=pltpu.CompilerParams(
            dimension_semantics=("parallel", "parallel"),
            vmem_limit_bytes=vmem_limit),
    )(xd, wdw9, aff_dw, wsep, aff_sep)

    # Drop channel padding, restore spatial dims, back to NCHW (fuses under jit).
    out = out.reshape(N, Ho, Wo, cout_p)[:, :, :, :Cout]
    return jnp.transpose(out, (0, 3, 1, 2))


def _ref_forward(x_nchw, p, stride=1, eps=1e-5, mxu_dtype=jnp.float32):
    """Pure-JAX reference (XLA convs) for verification."""
    x = jnp.transpose(x_nchw, (0, 2, 3, 1)).astype(jnp.float32)
    Cin = x.shape[-1]
    rhs = p["w_dw"].astype(jnp.float32).reshape(3, 3, 1, Cin)   # HWIO, grouped
    y = lax.conv_general_dilated(
        x, rhs, window_strides=(stride, stride), padding=((1, 1), (1, 1)),
        dimension_numbers=("NHWC", "HWIO", "NHWC"), feature_group_count=Cin)
    s_dw = p["g_dw"] / jnp.sqrt(p["v_dw"] + eps)
    b_dw = p["b_dw"] - p["m_dw"] * s_dw
    y = jnp.maximum(y * s_dw + b_dw, 0.0)
    y = jnp.einsum("nhwc,cd->nhwd", y.astype(mxu_dtype),
                   p["w_sep"].astype(mxu_dtype),
                   preferred_element_type=jnp.float32)
    s_sep = p["g_sep"] / jnp.sqrt(p["v_sep"] + eps)
    b_sep = p["b_sep"] - p["m_sep"] * s_sep
    y = jnp.maximum(y * s_sep + b_sep, 0.0)
    return jnp.transpose(y, (0, 3, 1, 2))


if __name__ == "__main__":
    key = jax.random.PRNGKey(0)
    N, Cin, Cout, H, W = 2, 4, 8, 16, 16

    ks = jax.random.split(key, 11)
    params = {
        # conv_dw weight: torch (Cin,1,3,3) -> stored here as (3,3,Cin)
        "w_dw": jax.random.normal(ks[0], (3, 3, Cin), jnp.float32) * 0.2,
        "g_dw": jax.random.uniform(ks[1], (Cin,), jnp.float32, 0.5, 1.5),
        "b_dw": jax.random.normal(ks[2], (Cin,), jnp.float32) * 0.1,
        "m_dw": jax.random.normal(ks[3], (Cin,), jnp.float32) * 0.1,
        "v_dw": jax.random.uniform(ks[4], (Cin,), jnp.float32, 0.5, 1.5),
        # conv_sep weight: torch (Cout,Cin,1,1) -> stored here transposed as (Cin,Cout)
        "w_sep": jax.random.normal(ks[5], (Cin, Cout), jnp.float32) * 0.2,
        "g_sep": jax.random.uniform(ks[6], (Cout,), jnp.float32, 0.5, 1.5),
        "b_sep": jax.random.normal(ks[7], (Cout,), jnp.float32) * 0.1,
        "m_sep": jax.random.normal(ks[8], (Cout,), jnp.float32) * 0.1,
        "v_sep": jax.random.uniform(ks[9], (Cout,), jnp.float32, 0.5, 1.5),
    }
    x = jax.random.normal(ks[10], (N, Cin, H, W), jnp.float32)

    # 1) stride=1, exact f32 matmul path vs f32 reference (tight tolerance).
    out = jax.block_until_ready(
        depthwise_block_forward(x, params, stride=1, mxu_dtype=jnp.float32))
    ref = _ref_forward(x, params, stride=1)
    assert out.shape == ref.shape == (N, Cout, H, W), (out.shape, ref.shape)
    err = float(jnp.max(jnp.abs(out - ref)))
    assert err < 1e-4, f"stride=1 f32 mismatch: max_err={err}"

    # 2) stride=1, default bf16-MXU path vs f32 reference (loose tolerance).
    out_bf = jax.block_until_ready(depthwise_block_forward(x, params, stride=1))
    err = float(jnp.max(jnp.abs(out_bf - ref)))
    assert err < 5e-2, f"stride=1 bf16 mismatch: max_err={err}"

    # 3) stride=2 (de-interleaved column taps) vs f32 reference.
    out2 = jax.block_until_ready(
        depthwise_block_forward(x, params, stride=2, mxu_dtype=jnp.float32))
    ref2 = _ref_forward(x, params, stride=2)
    assert out2.shape == ref2.shape == (N, Cout, H // 2, W // 2), (out2.shape, ref2.shape)
    err = float(jnp.max(jnp.abs(out2 - ref2)))
    assert err < 1e-4, f"stride=2 mismatch: max_err={err}"

    print("KERNEL_OK")
</pallas_src>

<mosaic_0001>
module attributes {stable_mosaic.version = 11 : i64} {
  func.func @_dwblock_kernel(%arg0: i32, %arg1: i32, %arg2: memref<1x18x1x18x128xf32, #tpu.memory_space<vmem>>, %arg3: memref<9x128xf32, #tpu.memory_space<vmem>>, %arg4: memref<2x128xf32, #tpu.memory_space<vmem>>, %arg5: memref<128x128xf32, #tpu.memory_space<vmem>>, %arg6: memref<2x128xf32, #tpu.memory_space<vmem>>, %arg7: memref<1x256x128xf32, #tpu.memory_space<vmem>>, %arg8: memref<256x128xf32, #tpu.memory_space<vmem>>) attributes {dimension_semantics = [#tpu.dimension_semantics<parallel>, #tpu.dimension_semantics<parallel>], iteration_bounds = array<i64: 2, 1>, scalar_prefetch = 0 : i64, scratch_operands = 1 : i64, tpu.core_type = #tpu.core_type<tc>, window_params = [{transform_indices = @transform_0, window_bounds = array<i64: 1, 18, 1, 18, 128>}, {pipeline_mode = #tpu.pipeline_mode<synchronous>, transform_indices = @transform_1, window_bounds = array<i64: 9, 128>}, {pipeline_mode = #tpu.pipeline_mode<synchronous>, transform_indices = @transform_2, window_bounds = array<i64: 2, 128>}, {pipeline_mode = #tpu.pipeline_mode<synchronous>, transform_indices = @transform_3, window_bounds = array<i64: 128, 128>}, {pipeline_mode = #tpu.pipeline_mode<synchronous>, transform_indices = @transform_4, window_bounds = array<i64: 2, 128>}, {transform_indices = @transform_5, window_bounds = array<i64: 1, 256, 128>}]} {
    %c16_i32 = arith.constant 16 : i32
    %0 = arith.muli %arg1, %c16_i32 : i32
    %c0 = arith.constant 0 : index
    %c0_0 = arith.constant 0 : index
    %1 = vector.load %arg3[%c0, %c0_0] : memref<9x128xf32, #tpu.memory_space<vmem>>, vector<9x128xf32>
    %2 = vector.extract_strided_slice %1 {offsets = [0, 0], sizes = [1, 128], strides = [1, 1]} : vector<9x128xf32> to vector<1x128xf32>
    %3 = vector.extract_strided_slice %1 {offsets = [1, 0], sizes = [1, 128], strides = [1, 1]} : vector<9x128xf32> to vector<1x128xf32>
    %4 = vector.extract_strided_slice %1 {offsets = [2, 0], sizes = [1, 128], strides = [1, 1]} : vector<9x128xf32> to vector<1x128xf32>
    %5 = vector.extract_strided_slice %1 {offsets = [3, 0], sizes = [1, 128], strides = [1, 1]} : vector<9x128xf32> to vector<1x128xf32>
    %6 = vector.extract_strided_slice %1 {offsets = [4, 0], sizes = [1, 128], strides = [1, 1]} : vector<9x128xf32> to vector<1x128xf32>
    %7 = vector.extract_strided_slice %1 {offsets = [5, 0], sizes = [1, 128], strides = [1, 1]} : vector<9x128xf32> to vector<1x128xf32>
    %8 = vector.extract_strided_slice %1 {offsets = [6, 0], sizes = [1, 128], strides = [1, 1]} : vector<9x128xf32> to vector<1x128xf32>
    %9 = vector.extract_strided_slice %1 {offsets = [7, 0], sizes = [1, 128], strides = [1, 1]} : vector<9x128xf32> to vector<1x128xf32>
    %10 = vector.extract_strided_slice %1 {offsets = [8, 0], sizes = [1, 128], strides = [1, 1]} : vector<9x128xf32> to vector<1x128xf32>
    %c0_1 = arith.constant 0 : index
    %c0_2 = arith.constant 0 : index
    %11 = vector.load %arg4[%c0_1, %c0_2] : memref<2x128xf32, #tpu.memory_space<vmem>>, vector<1x128xf32>
    %c1 = arith.constant 1 : index
    %c0_3 = arith.constant 0 : index
    %12 = vector.load %arg4[%c1, %c0_3] : memref<2x128xf32, #tpu.memory_space<vmem>>, vector<1x128xf32>
    %cst = arith.constant 0.000000e+00 : f32
    %13 = vector.broadcast %cst : f32 to vector<16x128xf32>
    %c0_i32 = arith.constant 0 : i32
    %14 = arith.addi %0, %c0_i32 : i32
    %c0_i32_4 = arith.constant 0 : i32
    %15 = arith.addi %14, %c0_i32_4 : i32
    %c0_5 = arith.constant 0 : index
    %16 = arith.index_cast %15 : i32 to index
    %c0_6 = arith.constant 0 : index
    %c0_7 = arith.constant 0 : index
    %c0_8 = arith.constant 0 : index
    %17 = vector.load %arg2[%c0_5, %16, %c0_6, %c0_7, %c0_8] : memref<1x18x1x18x128xf32, #tpu.memory_space<vmem>>, vector<1x1x1x18x128xf32>
    %18 = vector.shape_cast %17 : vector<1x1x1x18x128xf32> to vector<18x128xf32>
    %19 = vector.extract_strided_slice %18 {offsets = [0, 0], sizes = [16, 128], strides = [1, 1]} : vector<18x128xf32> to vector<16x128xf32>
    %20 = vector.broadcast %2 : vector<1x128xf32> to vector<16x128xf32>
    %21 = arith.mulf %19, %20 : vector<16x128xf32>
    %22 = arith.addf %13, %21 : vector<16x128xf32>
    %23 = vector.extract_strided_slice %18 {offsets = [1, 0], sizes = [16, 128], strides = [1, 1]} : vector<18x128xf32> to vector<16x128xf32>
    %24 = vector.broadcast %3 : vector<1x128xf32> to vector<16x128xf32>
    %25 = arith.mulf %23, %24 : vector<16x128xf32>
    %26 = arith.addf %22, %25 : vector<16x128xf32>
    %27 = vector.extract_strided_slice %18 {offsets = [2, 0], sizes = [16, 128], strides = [1, 1]} : vector<18x128xf32> to vector<16x128xf32>
    %28 = vector.broadcast %4 : vector<1x128xf32> to vector<16x128xf32>
    %29 = arith.mulf %27, %28 : vector<16x128xf32>
    %30 = arith.addf %26, %29 : vector<16x128xf32>
    %c0_i32_9 = arith.constant 0 : i32
    %31 = arith.addi %0, %c0_i32_9 : i32
    %c1_i32 = arith.constant 1 : i32
    %32 = arith.addi %31, %c1_i32 : i32
    %c0_10 = arith.constant 0 : index
    %33 = arith.index_cast %32 : i32 to index
    %c0_11 = arith.constant 0 : index
    %c0_12 = arith.constant 0 : index
    %c0_13 = arith.constant 0 : index
    %34 = vector.load %arg2[%c0_10, %33, %c0_11, %c0_12, %c0_13] : memref<1x18x1x18x128xf32, #tpu.memory_space<vmem>>, vector<1x1x1x18x128xf32>
    %35 = vector.shape_cast %34 : vector<1x1x1x18x128xf32> to vector<18x128xf32>
    %36 = vector.extract_strided_slice %35 {offsets = [0, 0], sizes = [16, 128], strides = [1, 1]} : vector<18x128xf32> to vector<16x128xf32>
    %37 = vector.broadcast %5 : vector<1x128xf32> to vector<16x128xf32>
    %38 = arith.mulf %36, %37 : vector<16x128xf32>
    %39 = arith.addf %30, %38 : vector<16x128xf32>
    %40 = vector.extract_strided_slice %35 {offsets = [1, 0], sizes = [16, 128], strides = [1, 1]} : vector<18x128xf32> to vector<16x128xf32>
    %41 = vector.broadcast %6 : vector<1x128xf32> to vector<16x128xf32>
    %42 = arith.mulf %40, %41 : vector<16x128xf32>
    %43 = arith.addf %39, %42 : vector<16x128xf32>
    %44 = vector.extract_strided_slice %35 {offsets = [2, 0], sizes = [16, 128], strides = [1, 1]} : vector<18x128xf32> to vector<16x128xf32>
    %45 = vector.broadcast %7 : vector<1x128xf32> to vector<16x128xf32>
    %46 = arith.mulf %44, %45 : vector<16x128xf32>
    %47 = arith.addf %43, %46 : vector<16x128xf32>
    %c0_i32_14 = arith.constant 0 : i32
    %48 = arith.addi %0, %c0_i32_14 : i32
    %c2_i32 = arith.constant 2 : i32
    %49 = arith.addi %48, %c2_i32 : i32
    %c0_15 = arith.constant 0 : index
    %50 = arith.index_cast %49 : i32 to index
    %c0_16 = arith.constant 0 : index
    %c0_17 = arith.constant 0 : index
    %c0_18 = arith.constant 0 : index
    %51 = vector.load %arg2[%c0_15, %50, %c0_16, %c0_17, %c0_18] : memref<1x18x1x18x128xf32, #tpu.memory_space<vmem>>, vector<1x1x1x18x128xf32>
    %52 = vector.shape_cast %51 : vector<1x1x1x18x128xf32> to vector<18x128xf32>
    %53 = vector.extract_strided_slice %52 {offsets = [0, 0], sizes = [16, 128], strides = [1, 1]} : vector<18x128xf32> to vector<16x128xf32>
    %54 = vector.broadcast %8 : vector<1x128xf32> to vector<16x128xf32>
    %55 = arith.mulf %53, %54 : vector<16x128xf32>
    %56 = arith.addf %47, %55 : vector<16x128xf32>
    %57 = vector.extract_strided_slice %52 {offsets = [1, 0], sizes = [16, 128], strides = [1, 1]} : vector<18x128xf32> to vector<16x128xf32>
    %58 = vector.broadcast %9 : vector<1x128xf32> to vector<16x128xf32>
    %59 = arith.mulf %57, %58 : vector<16x128xf32>
    %60 = arith.addf %56, %59 : vector<16x128xf32>
    %61 = vector.extract_strided_slice %52 {offsets = [2, 0], sizes = [16, 128], strides = [1, 1]} : vector<18x128xf32> to vector<16x128xf32>
    %62 = vector.broadcast %10 : vector<1x128xf32> to vector<16x128xf32>
    %63 = arith.mulf %61, %62 : vector<16x128xf32>
    %64 = arith.addf %60, %63 : vector<16x128xf32>
    %65 = vector.broadcast %11 : vector<1x128xf32> to vector<16x128xf32>
    %66 = arith.mulf %64, %65 : vector<16x128xf32>
    %67 = vector.broadcast %12 : vector<1x128xf32> to vector<16x128xf32>
    %68 = arith.addf %66, %67 : vector<16x128xf32>
    %cst_19 = arith.constant 0.000000e+00 : f32
    %69 = vector.broadcast %cst_19 : f32 to vector<16x128xf32>
    %70 = arith.maximumf %68, %69 : vector<16x128xf32>
    %c0_20 = arith.constant 0 : index
    %c0_21 = arith.constant 0 : index
    %71 = vector.load %arg8[%c0_20, %c0_21] : memref<256x128xf32, #tpu.memory_space<vmem>>, vector<16x128xf32>
    tpu.vector_store %arg8[%c0_20, %c0_21], %70 {strides = array<i32>} : memref<256x128xf32, #tpu.memory_space<vmem>>, vector<16x128xf32>,
    %cst_22 = arith.constant 0.000000e+00 : f32
    %72 = vector.broadcast %cst_22 : f32 to vector<16x128xf32>
    %c1_i32_23 = arith.constant 1 : i32
    %73 = arith.addi %0, %c1_i32_23 : i32
    %c0_i32_24 = arith.constant 0 : i32
    %74 = arith.addi %73, %c0_i32_24 : i32
    %c0_25 = arith.constant 0 : index
    %75 = arith.index_cast %74 : i32 to index
    %c0_26 = arith.constant 0 : index
    %c0_27 = arith.constant 0 : index
    %c0_28 = arith.constant 0 : index
    %76 = vector.load %arg2[%c0_25, %75, %c0_26, %c0_27, %c0_28] : memref<1x18x1x18x128xf32, #tpu.memory_space<vmem>>, vector<1x1x1x18x128xf32>
    %77 = vector.shape_cast %76 : vector<1x1x1x18x128xf32> to vector<18x128xf32>
    %78 = vector.extract_strided_slice %77 {offsets = [0, 0], sizes = [16, 128], strides = [1, 1]} : vector<18x128xf32> to vector<16x128xf32>
    %79 = vector.broadcast %2 : vector<1x128xf32> to vector<16x128xf32>
    %80 = arith.mulf %78, %79 : vector<16x128xf32>
    %81 = arith.addf %72, %80 : vector<16x128xf32>
    %82 = vector.extract_strided_slice %77 {offsets = [1, 0], sizes = [16, 128], strides = [1, 1]} : vector<18x128xf32> to vector<16x128xf32>
    %83 = vector.broadcast %3 : vector<1x128xf32> to vector<16x128xf32>
    %84 = arith.mulf %82, %83 : vector<16x128xf32>
    %85 = arith.addf %81, %84 : vector<16x128xf32>
    %86 = vector.extract_strided_slice %77 {offsets = [2, 0], sizes = [16, 128], strides = [1, 1]} : vector<18x128xf32> to vector<16x128xf32>
    %87 = vector.broadcast %4 : vector<1x128xf32> to vector<16x128xf32>
    %88 = arith.mulf %86, %87 : vector<16x128xf32>
    %89 = arith.addf %85, %88 : vector<16x128xf32>
    %c1_i32_29 = arith.constant 1 : i32
    %90 = arith.addi %0, %c1_i32_29 : i32
    %c1_i32_30 = arith.constant 1 : i32
    %91 = arith.addi %90, %c1_i32_30 : i32
    %c0_31 = arith.constant 0 : index
    %92 = arith.index_cast %91 : i32 to index
    %c0_32 = arith.constant 0 : index
    %c0_33 = arith.constant 0 : index
    %c0_34 = arith.constant 0 : index
    %93 = vector.load %arg2[%c0_31, %92, %c0_32, %c0_33, %c0_34] : memref<1x18x1x18x128xf32, #tpu.memory_space<vmem>>, vector<1x1x1x18x128xf32>
    %94 = vector.shape_cast %93 : vector<1x1x1x18x128xf32> to vector<18x128xf32>
    %95 = vector.extract_strided_slice %94 {offsets = [0, 0], sizes = [16, 128], strides = [1, 1]} : vector<18x128xf32> to vector<16x128xf32>
    %96 = vector.broadcast %5 : vector<1x128xf32> to vector<16x128xf32>
    %97 = arith.mulf %95, %96 : vector<16x128xf32>
    %98 = arith.addf %89, %97 : vector<16x128xf32>
    %99 = vector.extract_strided_slice %94 {offsets = [1, 0], sizes = [16, 128], strides = [1, 1]} : vector<18x128xf32> to vector<16x128xf32>
    %100 = vector.broadcast %6 : vector<1x128xf32> to vector<16x128xf32>
    %101 = arith.mulf %99, %100 : vector<16x128xf32>
    %102 = arith.addf %98, %101 : vector<16x128xf32>
    %103 = vector.extract_strided_slice %94 {offsets = [2, 0], sizes = [16, 128], strides = [1, 1]} : vector<18x128xf32> to vector<16x128xf32>
    %104 = vector.broadcast %7 : vector<1x128xf32> to vector<16x128xf32>
    %105 = arith.mulf %103, %104 : vector<16x128xf32>
    %106 = arith.addf %102, %105 : vector<16x128xf32>
    %c1_i32_35 = arith.constant 1 : i32
    %107 = arith.addi %0, %c1_i32_35 : i32
    %c2_i32_36 = arith.constant 2 : i32
    %108 = arith.addi %107, %c2_i32_36 : i32
    %c0_37 = arith.constant 0 : index
    %109 = arith.index_cast %108 : i32 to index
    %c0_38 = arith.constant 0 : index
    %c0_39 = arith.constant 0 : index
    %c0_40 = arith.constant 0 : index
    %110 = vector.load %arg2[%c0_37, %109, %c0_38, %c0_39, %c0_40] : memref<1x18x1x18x128xf32, #tpu.memory_space<vmem>>, vector<1x1x1x18x128xf32>
    %111 = vector.shape_cast %110 : vector<1x1x1x18x128xf32> to vector<18x128xf32>
    %112 = vector.extract_strided_slice %111 {offsets = [0, 0], sizes = [16, 128], strides = [1, 1]} : vector<18x128xf32> to vector<16x128xf32>
    %113 = vector.broadcast %8 : vector<1x128xf32> to vector<16x128xf32>
    %114 = arith.mulf %112, %113 : vector<16x128xf32>
    %115 = arith.addf %106, %114 : vector<16x128xf32>
    %116 = vector.extract_strided_slice %111 {offsets = [1, 0], sizes = [16, 128], strides = [1, 1]} : vector<18x128xf32> to vector<16x128xf32>
    %117 = vector.broadcast %9 : vector<1x128xf32> to vector<16x128xf32>
    %118 = arith.mulf %116, %117 : vector<16x128xf32>
    %119 = arith.addf %115, %118 : vector<16x128xf32>
    %120 = vector.extract_strided_slice %111 {offsets = [2, 0], sizes = [16, 128], strides = [1, 1]} : vector<18x128xf32> to vector<16x128xf32>
    %121 = vector.broadcast %10 : vector<1x128xf32> to vector<16x128xf32>
    %122 = arith.mulf %120, %121 : vector<16x128xf32>
    %123 = arith.addf %119, %122 : vector<16x128xf32>
    %124 = vector.broadcast %11 : vector<1x128xf32> to vector<16x128xf32>
    %125 = arith.mulf %123, %124 : vector<16x128xf32>
    %126 = vector.broadcast %12 : vector<1x128xf32> to vector<16x128xf32>
    %127 = arith.addf %125, %126 : vector<16x128xf32>
    %cst_41 = arith.constant 0.000000e+00 : f32
    %128 = vector.broadcast %cst_41 : f32 to vector<16x128xf32>
    %129 = arith.maximumf %127, %128 : vector<16x128xf32>
    %c16 = arith.constant 16 : index
    %c0_42 = arith.constant 0 : index
    %130 = vector.load %arg8[%c16, %c0_42] : memref<256x128xf32, #tpu.memory_space<vmem>>, vector<16x128xf32>
    tpu.vector_store %arg8[%c16, %c0_42], %129 {strides = array<i32>} : memref<256x128xf32, #tpu.memory_space<vmem>>, vector<16x128xf32>,
    %cst_43 = arith.constant 0.000000e+00 : f32
    %131 = vector.broadcast %cst_43 : f32 to vector<16x128xf32>
    %c2_i32_44 = arith.constant 2 : i32
    %132 = arith.addi %0, %c2_i32_44 : i32
    %c0_i32_45 = arith.constant 0 : i32
    %133 = arith.addi %132, %c0_i32_45 : i32
    %c0_46 = arith.constant 0 : index
    %134 = arith.index_cast %133 : i32 to index
    %c0_47 = arith.constant 0 : index
    %c0_48 = arith.constant 0 : index
    %c0_49 = arith.constant 0 : index
    %135 = vector.load %arg2[%c0_46, %134, %c0_47, %c0_48, %c0_49] : memref<1x18x1x18x128xf32, #tpu.memory_space<vmem>>, vector<1x1x1x18x128xf32>
    %136 = vector.shape_cast %135 : vector<1x1x1x18x128xf32> to vector<18x128xf32>
    %137 = vector.extract_strided_slice %136 {offsets = [0, 0], sizes = [16, 128], strides = [1, 1]} : vector<18x128xf32> to vector<16x128xf32>
    %138 = vector.broadcast %2 : vector<1x128xf32> to vector<16x128xf32>
    %139 = arith.mulf %137, %138 : vector<16x128xf32>
    %140 = arith.addf %131, %139 : vector<16x128xf32>
    %141 = vector.extract_strided_slice %136 {offsets = [1, 0], sizes = [16, 128], strides = [1, 1]} : vector<18x128xf32> to vector<16x128xf32>
    %142 = vector.broadcast %3 : vector<1x128xf32> to vector<16x128xf32>
    %143 = arith.mulf %141, %142 : vector<16x128xf32>
    %144 = arith.addf %140, %143 : vector<16x128xf32>
    %145 = vector.extract_strided_slice %136 {offsets = [2, 0], sizes = [16, 128], strides = [1, 1]} : vector<18x128xf32> to vector<16x128xf32>
    %146 = vector.broadcast %4 : vector<1x128xf32> to vector<16x128xf32>
    %147 = arith.mulf %145, %146 : vector<16x128xf32>
    %148 = arith.addf %144, %147 : vector<16x128xf32>
    %c2_i32_50 = arith.constant 2 : i32
    %149 = arith.addi %0, %c2_i32_50 : i32
    %c1_i32_51 = arith.constant 1 : i32
    %150 = arith.addi %149, %c1_i32_51 : i32
    %c0_52 = arith.constant 0 : index
    %151 = arith.index_cast %150 : i32 to index
    %c0_53 = arith.constant 0 : index
    %c0_54 = arith.constant 0 : index
    %c0_55 = arith.constant 0 : index
    %152 = vector.load %arg2[%c0_52, %151, %c0_53, %c0_54, %c0_55] : memref<1x18x1x18x128xf32, #tpu.memory_space<vmem>>, vector<1x1x1x18x128xf32>
    %153 = vector.shape_cast %152 : vector<1x1x1x18x128xf32> to vector<18x128xf32>
    %154 = vector.extract_strided_slice %153 {offsets = [0, 0], sizes = [16, 128], strides = [1, 1]} : vector<18x128xf32> to vector<16x128xf32>
    %155 = vector.broadcast %5 : vector<1x128xf32> to vector<16x128xf32>
    %156 = arith.mulf %154, %155 : vector<16x128xf32>
    %157 = arith.addf %148, %156 : vector<16x128xf32>
    %158 = vector.extract_strided_slice %153 {offsets = [1, 0], sizes = [16, 128], strides = [1, 1]} : vector<18x128xf32> to vector<16x128xf32>
    %159 = vector.broadcast %6 : vector<1x128xf32> to vector<16x128xf32>
    %160 = arith.mulf %158, %159 : vector<16x128xf32>
    %161 = arith.addf %157, %160 : vector<16x128xf32>
    %162 = vector.extract_strided_slice %153 {offsets = [2, 0], sizes = [16, 128], strides = [1, 1]} : vector<18x128xf32> to vector<16x128xf32>
    %163 = vector.broadcast %7 : vector<1x128xf32> to vector<16x128xf32>
    %164 = arith.mulf %162, %163 : vector<16x128xf32>
    %165 = arith.addf %161, %164 : vector<16x128xf32>
    %c2_i32_56 = arith.constant 2 : i32
    %166 = arith.addi %0, %c2_i32_56 : i32
    %c2_i32_57 = arith.constant 2 : i32
    %167 = arith.addi %166, %c2_i32_57 : i32
    %c0_58 = arith.constant 0 : index
    %168 = arith.index_cast %167 : i32 to index
    %c0_59 = arith.constant 0 : index
    %c0_60 = arith.constant 0 : index
    %c0_61 = arith.constant 0 : index
    %169 = vector.load %arg2[%c0_58, %168, %c0_59, %c0_60, %c0_61] : memref<1x18x1x18x128xf32, #tpu.memory_space<vmem>>, vector<1x1x1x18x128xf32>
    %170 = vector.shape_cast %169 : vector<1x1x1x18x128xf32> to vector<18x128xf32>
    %171 = vector.extract_strided_slice %170 {offsets = [0, 0], sizes = [16, 128], strides = [1, 1]} : vector<18x128xf32> to vector<16x128xf32>
    %172 = vector.broadcast %8 : vector<1x128xf32> to vector<16x128xf32>
    %173 = arith.mulf %171, %172 : vector<16x128xf32>
    %174 = arith.addf %165, %173 : vector<16x128xf32>
    %175 = vector.extract_strided_slice %170 {offsets = [1, 0], sizes = [16, 128], strides = [1, 1]} : vector<18x128xf32> to vector<16x128xf32>
    %176 = vector.broadcast %9 : vector<1x128xf32> to vector<16x128xf32>
    %177 = arith.mulf %175, %176 : vector<16x128xf32>
    %178 = arith.addf %174, %177 : vector<16x128xf32>
    %179 = vector.extract_strided_slice %170 {offsets = [2, 0], sizes = [16, 128], strides = [1, 1]} : vector<18x128xf32> to vector<16x128xf32>
    %180 = vector.broadcast %10 : vector<1x128xf32> to vector<16x128xf32>
    %181 = arith.mulf %179, %180 : vector<16x128xf32>
    %182 = arith.addf %178, %181 : vector<16x128xf32>
    %183 = vector.broadcast %11 : vector<1x128xf32> to vector<16x128xf32>
    %184 = arith.mulf %182, %183 : vector<16x128xf32>
    %185 = vector.broadcast %12 : vector<1x128xf32> to vector<16x128xf32>
    %186 = arith.addf %184, %185 : vector<16x128xf32>
    %cst_62 = arith.constant 0.000000e+00 : f32
    %187 = vector.broadcast %cst_62 : f32 to vector<16x128xf32>
    %188 = arith.maximumf %186, %187 : vector<16x128xf32>
    %c32 = arith.constant 32 : index
    %c0_63 = arith.constant 0 : index
    %189 = vector.load %arg8[%c32, %c0_63] : memref<256x128xf32, #tpu.memory_space<vmem>>, vector<16x128xf32>
    tpu.vector_store %arg8[%c32, %c0_63], %188 {strides = array<i32>} : memref<256x128xf32, #tpu.memory_space<vmem>>, vector<16x128xf32>,
    %cst_64 = arith.constant 0.000000e+00 : f32
    %190 = vector.broadcast %cst_64 : f32 to vector<16x128xf32>
    %c3_i32 = arith.constant 3 : i32
    %191 = arith.addi %0, %c3_i32 : i32
    %c0_i32_65 = arith.constant 0 : i32
    %192 = arith.addi %191, %c0_i32_65 : i32
    %c0_66 = arith.constant 0 : index
    %193 = arith.index_cast %192 : i32 to index
    %c0_67 = arith.constant 0 : index
    %c0_68 = arith.constant 0 : index
    %c0_69 = arith.constant 0 : index
    %194 = vector.load %arg2[%c0_66, %193, %c0_67, %c0_68, %c0_69] : memref<1x18x1x18x128xf32, #tpu.memory_space<vmem>>, vector<1x1x1x18x128xf32>
    %195 = vector.shape_cast %194 : vector<1x1x1x18x128xf32> to vector<18x128xf32>
    %196 = vector.extract_strided_slice %195 {offsets = [0, 0], sizes = [16, 128], strides = [1, 1]} : vector<18x128xf32> to vector<16x128xf32>
    %197 = vector.broadcast %2 : vector<1x128xf32> to vector<16x128xf32>
    %198 = arith.mulf %196, %197 : vector<16x128xf32>
    %199 = arith.addf %190, %198 : vector<16x128xf32>
    %200 = vector.extract_strided_slice %195 {offsets = [1, 0], sizes = [16, 128], strides = [1, 1]} : vector<18x128xf32> to vector<16x128xf32>
    %201 = vector.broadcast %3 : vector<1x128xf32> to vector<16x128xf32>
    %202 = arith.mulf %200, %201 : vector<16x128xf32>
    %203 = arith.addf %199, %202 : vector<16x128xf32>
    %204 = vector.extract_strided_slice %195 {offsets = [2, 0], sizes = [16, 128], strides = [1, 1]} : vector<18x128xf32> to vector<16x128xf32>
    %205 = vector.broadcast %4 : vector<1x128xf32> to vector<16x128xf32>
    %206 = arith.mulf %204, %205 : vector<16x128xf32>
    %207 = arith.addf %203, %206 : vector<16x128xf32>
    %c3_i32_70 = arith.constant 3 : i32
    %208 = arith.addi %0, %c3_i32_70 : i32
    %c1_i32_71 = arith.constant 1 : i32
    %209 = arith.addi %208, %c1_i32_71 : i32
    %c0_72 = arith.constant 0 : index
    %210 = arith.index_cast %209 : i32 to index
    %c0_73 = arith.constant 0 : index
    %c0_74 = arith.constant 0 : index
    %c0_75 = arith.constant 0 : index
    %211 = vector.load %arg2[%c0_72, %210, %c0_73, %c0_74, %c0_75] : memref<1x18x1x18x128xf32, #tpu.memory_space<vmem>>, vector<1x1x1x18x128xf32>
    %212 = vector.shape_cast %211 : vector<1x1x1x18x128xf32> to vector<18x128xf32>
    %213 = vector.extract_strided_slice %212 {offsets = [0, 0], sizes = [16, 128], strides = [1, 1]} : vector<18x128xf32> to vector<16x128xf32>
    %214 = vector.broadcast %5 : vector<1x128xf32> to vector<16x128xf32>
    %215 = arith.mulf %213, %214 : vector<16x128xf32>
    %216 = arith.addf %207, %215 : vector<16x128xf32>
    %217 = vector.extract_strided_slice %212 {offsets = [1, 0], sizes = [16, 128], strides = [1, 1]} : vector<18x128xf32> to vector<16x128xf32>
    %218 = vector.broadcast %6 : vector<1x128xf32> to vector<16x128xf32>
    %219 = arith.mulf %217, %218 : vector<16x128xf32>
    %220 = arith.addf %216, %219 : vector<16x128xf32>
    %221 = vector.extract_strided_slice %212 {offsets = [2, 0], sizes = [16, 128], strides = [1, 1]} : vector<18x128xf32> to vector<16x128xf32>
    %222 = vector.broadcast %7 : vector<1x128xf32> to vector<16x128xf32>
    %223 = arith.mulf %221, %222 : vector<16x128xf32>
    %224 = arith.addf %220, %223 : vector<16x128xf32>
    %c3_i32_76 = arith.constant 3 : i32
    %225 = arith.addi %0, %c3_i32_76 : i32
    %c2_i32_77 = arith.constant 2 : i32
    %226 = arith.addi %225, %c2_i32_77 : i32
    %c0_78 = arith.constant 0 : index
    %227 = arith.index_cast %226 : i32 to index
    %c0_79 = arith.constant 0 : index
    %c0_80 = arith.constant 0 : index
    %c0_81 = arith.constant 0 : index
    %228 = vector.load %arg2[%c0_78, %227, %c0_79, %c0_80, %c0_81] : memref<1x18x1x18x128xf32, #tpu.memory_space<vmem>>, vector<1x1x1x18x128xf32>
    %229 = vector.shape_cast %228 : vector<1x1x1x18x128xf32> to vector<18x128xf32>
    %230 = vector.extract_strided_slice %229 {offsets = [0, 0], sizes = [16, 128], strides = [1, 1]} : vector<18x128xf32> to vector<16x128xf32>
    %231 = vector.broadcast %8 : vector<1x128xf32> to vector<16x128xf32>
    %232 = arith.mulf %230, %231 : vector<16x128xf32>
    %233 = arith.addf %224, %232 : vector<16x128xf32>
    %234 = vector.extract_strided_slice %229 {offsets = [1, 0], sizes = [16, 128], strides = [1, 1]} : vector<18x128xf32> to vector<16x128xf32>
    %235 = vector.broadcast %9 : vector<1x128xf32> to vector<16x128xf32>
    %236 = arith.mulf %234, %235 : vector<16x128xf32>
    %237 = arith.addf %233, %236 : vector<16x128xf32>
    %238 = vector.extract_strided_slice %229 {offsets = [2, 0], sizes = [16, 128], strides = [1, 1]} : vector<18x128xf32> to vector<16x128xf32>
    %239 = vector.broadcast %10 : vector<1x128xf32> to vector<16x128xf32>
    %240 = arith.mulf %238, %239 : vector<16x128xf32>
    %241 = arith.addf %237, %240 : vector<16x128xf32>
    %242 = vector.broadcast %11 : vector<1x128xf32> to vector<16x128xf32>
    %243 = arith.mulf %241, %242 : vector<16x128xf32>
    %244 = vector.broadcast %12 : vector<1x128xf32> to vector<16x128xf32>
    %245 = arith.addf %243, %244 : vector<16x128xf32>
    %cst_82 = arith.constant 0.000000e+00 : f32
    %246 = vector.broadcast %cst_82 : f32 to vector<16x128xf32>
    %247 = arith.maximumf %245, %246 : vector<16x128xf32>
    %c48 = arith.constant 48 : index
    %c0_83 = arith.constant 0 : index
    %248 = vector.load %arg8[%c48, %c0_83] : memref<256x128xf32, #tpu.memory_space<vmem>>, vector<16x128xf32>
    tpu.vector_store %arg8[%c48, %c0_83], %247 {strides = array<i32>} : memref<256x128xf32, #tpu.memory_space<vmem>>, vector<16x128xf32>,
    %cst_84 = arith.constant 0.000000e+00 : f32
    %249 = vector.broadcast %cst_84 : f32 to vector<16x128xf32>
    %c4_i32 = arith.constant 4 : i32
    %250 = arith.addi %0, %c4_i32 : i32
    %c0_i32_85 = arith.constant 0 : i32
    %251 = arith.addi %250, %c0_i32_85 : i32
    %c0_86 = arith.constant 0 : index
    %252 = arith.index_cast %251 : i32 to index
    %c0_87 = arith.constant 0 : index
    %c0_88 = arith.constant 0 : index
    %c0_89 = arith.constant 0 : index
    %253 = vector.load %arg2[%c0_86, %252, %c0_87, %c0_88, %c0_89] : memref<1x18x1x18x128xf32, #tpu.memory_space<vmem>>, vector<1x1x1x18x128xf32>
    %254 = vector.shape_cast %253 : vector<1x1x1x18x128xf32> to vector<18x128xf32>
    %255 = vector.extract_strided_slice %254 {offsets = [0, 0], sizes = [16, 128], strides = [1, 1]} : vector<18x128xf32> to vector<16x128xf32>
    %256 = vector.broadcast %2 : vector<1x128xf32> to vector<16x128xf32>
    %257 = arith.mulf %255, %256 : vector<16x128xf32>
    %258 = arith.addf %249, %257 : vector<16x128xf32>
    %259 = vector.extract_strided_slice %254 {offsets = [1, 0], sizes = [16, 128], strides = [1, 1]} : vector<18x128xf32> to vector<16x128xf32>
    %260 = vector.broadcast %3 : vector<1x128xf32> to vector<16x128xf32>
    %261 = arith.mulf %259, %260 : vector<16x128xf32>
    %262 = arith.addf %258, %261 : vector<16x128xf32>
    %263 = vector.extract_strided_slice %254 {offsets = [2, 0], sizes = [16, 128], strides = [1, 1]} : vector<18x128xf32> to vector<16x128xf32>
    %264 = vector.broadcast %4 : vector<1x128xf32> to vector<16x128xf32>
    %265 = arith.mulf %263, %264 : vector<16x128xf32>
    %266 = arith.addf %262, %265 : vector<16x128xf32>
    %c4_i32_90 = arith.constant 4 : i32
    %267 = arith.addi %0, %c4_i32_90 : i32
    %c1_i32_91 = arith.constant 1 : i32
    %268 = arith.addi %267, %c1_i32_91 : i32
    %c0_92 = arith.constant 0 : index
    %269 = arith.index_cast %268 : i32 to index
    %c0_93 = arith.constant 0 : index
    %c0_94 = arith.constant 0 : index
    %c0_95 = arith.constant 0 : index
    %270 = vector.load %arg2[%c0_92, %269, %c0_93, %c0_94, %c0_95] : memref<1x18x1x18x128xf32, #tpu.memory_space<vmem>>, vector<1x1x1x18x128xf32>
    %271 = vector.shape_cast %270 : vector<1x1x1x18x128xf32> to vector<18x128xf32>
    %272 = vector.extract_strided_slice %271 {offsets = [0, 0], sizes = [16, 128], strides = [1, 1]} : vector<18x128xf32> to vector<16x128xf32>
    %273 = vector.broadcast %5 : vector<1x128xf32> to vector<16x128xf32>
    %274 = arith.mulf %272, %273 : vector<16x128xf32>
    %275 = arith.addf %266, %274 : vector<16x128xf32>
    %276 = vector.extract_strided_slice %271 {offsets = [1, 0], sizes = [16, 128], strides = [1, 1]} : vector<18x128xf32> to vector<16x128xf32>
    %277 = vector.broadcast %6 : vector<1x128xf32> to vector<16x128xf32>
    %278 = arith.mulf %276, %277 : vector<16x128xf32>
    %279 = arith.addf %275, %278 : vector<16x128xf32>
    %280 = vector.extract_strided_slice %271 {offsets = [2, 0], sizes = [16, 128], strides = [1, 1]} : vector<18x128xf32> to vector<16x128xf32>
    %281 = vector.broadcast %7 : vector<1x128xf32> to vector<16x128xf32>
    %282 = arith.mulf %280, %281 : vector<16x128xf32>
    %283 = arith.addf %279, %282 : vector<16x128xf32>
    %c4_i32_96 = arith.constant 4 : i32
    %284 = arith.addi %0, %c4_i32_96 : i32
    %c2_i32_97 = arith.constant 2 : i32
    %285 = arith.addi %284, %c2_i32_97 : i32
    %c0_98 = arith.constant 0 : index
    %286 = arith.index_cast %285 : i32 to index
    %c0_99 = arith.constant 0 : index
    %c0_100 = arith.constant 0 : index
    %c0_101 = arith.constant 0 : index
    %287 = vector.load %arg2[%c0_98, %286, %c0_99, %c0_100, %c0_101] : memref<1x18x1x18x128xf32, #tpu.memory_space<vmem>>, vector<1x1x1x18x128xf32>
    %288 = vector.shape_cast %287 : vector<1x1x1x18x128xf32> to vector<18x128xf32>
    %289 = vector.extract_strided_slice %288 {offsets = [0, 0], sizes = [16, 128], strides = [1, 1]} : vector<18x128xf32> to vector<16x128xf32>
    %290 = vector.broadcast %8 : vector<1x128xf32> to vector<16x128xf32>
    %291 = arith.mulf %289, %290 : vector<16x128xf32>
    %292 = arith.addf %283, %291 : vector<16x128xf32>
    %293 = vector.extract_strided_slice %288 {offsets = [1, 0], sizes = [16, 128], strides = [1, 1]} : vector<18x128xf32> to vector<16x128xf32>
    %294 = vector.broadcast %9 : vector<1x128xf32> to vector<16x128xf32>
    %295 = arith.mulf %293, %294 : vector<16x128xf32>
    %296 = arith.addf %292, %295 : vector<16x128xf32>
    %297 = vector.extract_strided_slice %288 {offsets = [2, 0], sizes = [16, 128], strides = [1, 1]} : vector<18x128xf32> to vector<16x128xf32>
    %298 = vector.broadcast %10 : vector<1x128xf32> to vector<16x128xf32>
    %299 = arith.mulf %297, %298 : vector<16x128xf32>
    %300 = arith.addf %296, %299 : vector<16x128xf32>
    %301 = vector.broadcast %11 : vector<1x128xf32> to vector<16x128xf32>
    %302 = arith.mulf %300, %301 : vector<16x128xf32>
    %303 = vector.broadcast %12 : vector<1x128xf32> to vector<16x128xf32>
    %304 = arith.addf %302, %303 : vector<16x128xf32>
    %cst_102 = arith.constant 0.000000e+00 : f32
    %305 = vector.broadcast %cst_102 : f32 to vector<16x128xf32>
    %306 = arith.maximumf %304, %305 : vector<16x128xf32>
    %c64 = arith.constant 64 : index
    %c0_103 = arith.constant 0 : index
    %307 = vector.load %arg8[%c64, %c0_103] : memref<256x128xf32, #tpu.memory_space<vmem>>, vector<16x128xf32>
    tpu.vector_store %arg8[%c64, %c0_103], %306 {strides = array<i32>} : memref<256x128xf32, #tpu.memory_space<vmem>>, vector<16x128xf32>,
    %cst_104 = arith.constant 0.000000e+00 : f32
    %308 = vector.broadcast %cst_104 : f32 to vector<16x128xf32>
    %c5_i32 = arith.constant 5 : i32
    %309 = arith.addi %0, %c5_i32 : i32
    %c0_i32_105 = arith.constant 0 : i32
    %310 = arith.addi %309, %c0_i32_105 : i32
    %c0_106 = arith.constant 0 : index
    %311 = arith.index_cast %310 : i32 to index
    %c0_107 = arith.constant 0 : index
    %c0_108 = arith.constant 0 : index
    %c0_109 = arith.constant 0 : index
    %312 = vector.load %arg2[%c0_106, %311, %c0_107, %c0_108, %c0_109] : memref<1x18x1x18x128xf32, #tpu.memory_space<vmem>>, vector<1x1x1x18x128xf32>
    %313 = vector.shape_cast %312 : vector<1x1x1x18x128xf32> to vector<18x128xf32>
    %314 = vector.extract_strided_slice %313 {offsets = [0, 0], sizes = [16, 128], strides = [1, 1]} : vector<18x128xf32> to vector<16x128xf32>
    %315 = vector.broadcast %2 : vector<1x128xf32> to vector<16x128xf32>
    %316 = arith.mulf %314, %315 : vector<16x128xf32>
    %317 = arith.addf %308, %316 : vector<16x128xf32>
    %318 = vector.extract_strided_slice %313 {offsets = [1, 0], sizes = [16, 128], strides = [1, 1]} : vector<18x128xf32> to vector<16x128xf32>
    %319 = vector.broadcast %3 : vector<1x128xf32> to vector<16x128xf32>
    %320 = arith.mulf %318, %319 : vector<16x128xf32>
    %321 = arith.addf %317, %320 : vector<16x128xf32>
    %322 = vector.extract_strided_slice %313 {offsets = [2, 0], sizes = [16, 128], strides = [1, 1]} : vector<18x128xf32> to vector<16x128xf32>
    %323 = vector.broadcast %4 : vector<1x128xf32> to vector<16x128xf32>
    %324 = arith.mulf %322, %323 : vector<16x128xf32>
    %325 = arith.addf %321, %324 : vector<16x128xf32>
    %c5_i32_110 = arith.constant 5 : i32
    %326 = arith.addi %0, %c5_i32_110 : i32
    %c1_i32_111 = arith.constant 1 : i32
    %327 = arith.addi %326, %c1_i32_111 : i32
    %c0_112 = arith.constant 0 : index
    %328 = arith.index_cast %327 : i32 to index
    %c0_113 = arith.constant 0 : index
    %c0_114 = arith.constant 0 : index
    %c0_115 = arith.constant 0 : index
    %329 = vector.load %arg2[%c0_112, %328, %c0_113, %c0_114, %c0_115] : memref<1x18x1x18x128xf32, #tpu.memory_space<vmem>>, vector<1x1x1x18x128xf32>
    %330 = vector.shape_cast %329 : vector<1x1x1x18x128xf32> to vector<18x128xf32>
    %331 = vector.extract_strided_slice %330 {offsets = [0, 0], sizes = [16, 128], strides = [1, 1]} : vector<18x128xf32> to vector<16x128xf32>
    %332 = vector.broadcast %5 : vector<1x128xf32> to vector<16x128xf32>
    %333 = arith.mulf %331, %332 : vector<16x128xf32>
    %334 = arith.addf %325, %333 : vector<16x128xf32>
    %335 = vector.extract_strided_slice %330 {offsets = [1, 0], sizes = [16, 128], strides = [1, 1]} : vector<18x128xf32> to vector<16x128xf32>
    %336 = vector.broadcast %6 : vector<1x128xf32> to vector<16x128xf32>
    %337 = arith.mulf %335, %336 : vector<16x128xf32>
    %338 = arith.addf %334, %337 : vector<16x128xf32>
    %339 = vector.extract_strided_slice %330 {offsets = [2, 0], sizes = [16, 128], strides = [1, 1]} : vector<18x128xf32> to vector<16x128xf32>
    %340 = vector.broadcast %7 : vector<1x128xf32> to vector<16x128xf32>
    %341 = arith.mulf %339, %340 : vector<16x128xf32>
    %342 = arith.addf %338, %341 : vector<16x128xf32>
    %c5_i32_116 = arith.constant 5 : i32
    %343 = arith.addi %0, %c5_i32_116 : i32
    %c2_i32_117 = arith.constant 2 : i32
    %344 = arith.addi %343, %c2_i32_117 : i32
    %c0_118 = arith.constant 0 : index
    %345 = arith.index_cast %344 : i32 to index
    %c0_119 = arith.constant 0 : index
    %c0_120 = arith.constant 0 : index
    %c0_121 = arith.constant 0 : index
    %346 = vector.load %arg2[%c0_118, %345, %c0_119, %c0_120, %c0_121] : memref<1x18x1x18x128xf32, #tpu.memory_space<vmem>>, vector<1x1x1x18x128xf32>
    %347 = vector.shape_cast %346 : vector<1x1x1x18x128xf32> to vector<18x128xf32>
    %348 = vector.extract_strided_slice %347 {offsets = [0, 0], sizes = [16, 128], strides = [1, 1]} : vector<18x128xf32> to vector<16x128xf32>
    %349 = vector.broadcast %8 : vector<1x128xf32> to vector<16x128xf32>
    %350 = arith.mulf %348, %349 : vector<16x128xf32>
    %351 = arith.addf %342, %350 : vector<16x128xf32>
    %352 = vector.extract_strided_slice %347 {offsets = [1, 0], sizes = [16, 128], strides = [1, 1]} : vector<18x128xf32> to vector<16x128xf32>
    %353 = vector.broadcast %9 : vector<1x128xf32> to vector<16x128xf32>
    %354 = arith.mulf %352, %353 : vector<16x128xf32>
    %355 = arith.addf %351, %354 : vector<16x128xf32>
    %356 = vector.extract_strided_slice %347 {offsets = [2, 0], sizes = [16, 128], strides = [1, 1]} : vector<18x128xf32> to vector<16x128xf32>
    %357 = vector.broadcast %10 : vector<1x128xf32> to vector<16x128xf32>
    %358 = arith.mulf %356, %357 : vector<16x128xf32>
    %359 = arith.addf %355, %358 : vector<16x128xf32>
    %360 = vector.broadcast %11 : vector<1x128xf32> to vector<16x128xf32>
    %361 = arith.mulf %359, %360 : vector<16x128xf32>
    %362 = vector.broadcast %12 : vector<1x128xf32> to vector<16x128xf32>
    %363 = arith.addf %361, %362 : vector<16x128xf32>
    %cst_122 = arith.constant 0.000000e+00 : f32
    %364 = vector.broadcast %cst_122 : f32 to vector<16x128xf32>
    %365 = arith.maximumf %363, %364 : vector<16x128xf32>
    %c80 = arith.constant 80 : index
    %c0_123 = arith.constant 0 : index
    %366 = vector.load %arg8[%c80, %c0_123] : memref<256x128xf32, #tpu.memory_space<vmem>>, vector<16x128xf32>
    tpu.vector_store %arg8[%c80, %c0_123], %365 {strides = array<i32>} : memref<256x128xf32, #tpu.memory_space<vmem>>, vector<16x128xf32>,
    %cst_124 = arith.constant 0.000000e+00 : f32
    %367 = vector.broadcast %cst_124 : f32 to vector<16x128xf32>
    %c6_i32 = arith.constant 6 : i32
    %368 = arith.addi %0, %c6_i32 : i32
    %c0_i32_125 = arith.constant 0 : i32
    %369 = arith.addi %368, %c0_i32_125 : i32
    %c0_126 = arith.constant 0 : index
    %370 = arith.index_cast %369 : i32 to index
    %c0_127 = arith.constant 0 : index
    %c0_128 = arith.constant 0 : index
    %c0_129 = arith.constant 0 : index
    %371 = vector.load %arg2[%c0_126, %370, %c0_127, %c0_128, %c0_129] : memref<1x18x1x18x128xf32, #tpu.memory_space<vmem>>, vector<1x1x1x18x128xf32>
    %372 = vector.shape_cast %371 : vector<1x1x1x18x128xf32> to vector<18x128xf32>
    %373 = vector.extract_strided_slice %372 {offsets = [0, 0], sizes = [16, 128], strides = [1, 1]} : vector<18x128xf32> to vector<16x128xf32>
    %374 = vector.broadcast %2 : vector<1x128xf32> to vector<16x128xf32>
    %375 = arith.mulf %373, %374 : vector<16x128xf32>
    %376 = arith.addf %367, %375 : vector<16x128xf32>
    %377 = vector.extract_strided_slice %372 {offsets = [1, 0], sizes = [16, 128], strides = [1, 1]} : vector<18x128xf32> to vector<16x128xf32>
    %378 = vector.broadcast %3 : vector<1x128xf32> to vector<16x128xf32>
    %379 = arith.mulf %377, %378 : vector<16x128xf32>
    %380 = arith.addf %376, %379 : vector<16x128xf32>
    %381 = vector.extract_strided_slice %372 {offsets = [2, 0], sizes = [16, 128], strides = [1, 1]} : vector<18x128xf32> to vector<16x128xf32>
    %382 = vector.broadcast %4 : vector<1x128xf32> to vector<16x128xf32>
    %383 = arith.mulf %381, %382 : vector<16x128xf32>
    %384 = arith.addf %380, %383 : vector<16x128xf32>
    %c6_i32_130 = arith.constant 6 : i32
    %385 = arith.addi %0, %c6_i32_130 : i32
    %c1_i32_131 = arith.constant 1 : i32
    %386 = arith.addi %385, %c1_i32_131 : i32
    %c0_132 = arith.constant 0 : index
    %387 = arith.index_cast %386 : i32 to index
    %c0_133 = arith.constant 0 : index
    %c0_134 = arith.constant 0 : index
    %c0_135 = arith.constant 0 : index
    %388 = vector.load %arg2[%c0_132, %387, %c0_133, %c0_134, %c0_135] : memref<1x18x1x18x128xf32, #tpu.memory_space<vmem>>, vector<1x1x1x18x128xf32>
    %389 = vector.shape_cast %388 : vector<1x1x1x18x128xf32> to vector<18x128xf32>
    %390 = vector.extract_strided_slice %389 {offsets = [0, 0], sizes = [16, 128], strides = [1, 1]} : vector<18x128xf32> to vector<16x128xf32>
    %391 = vector.broadcast %5 : vector<1x128xf32> to vector<16x128xf32>
    %392 = arith.mulf %390, %391 : vector<16x128xf32>
    %393 = arith.addf %384, %392 : vector<16x128xf32>
    %394 = vector.extract_strided_slice %389 {offsets = [1, 0], sizes = [16, 128], strides = [1, 1]} : vector<18x128xf32> to vector<16x128xf32>
    %395 = vector.broadcast %6 : vector<1x128xf32> to vector<16x128xf32>
    %396 = arith.mulf %394, %395 : vector<16x128xf32>
    %397 = arith.addf %393, %396 : vector<16x128xf32>
    %398 = vector.extract_strided_slice %389 {offsets = [2, 0], sizes = [16, 128], strides = [1, 1]} : vector<18x128xf32> to vector<16x128xf32>
    %399 = vector.broadcast %7 : vector<1x128xf32> to vector<16x128xf32>
    %400 = arith.mulf %398, %399 : vector<16x128xf32>
    %401 = arith.addf %397, %400 : vector<16x128xf32>
    %c6_i32_136 = arith.constant 6 : i32
    %402 = arith.addi %0, %c6_i32_136 : i32
    %c2_i32_137 = arith.constant 2 : i32
    %403 = arith.addi %402, %c2_i32_137 : i32
    %c0_138 = arith.constant 0 : index
    %404 = arith.index_cast %403 : i32 to index
    %c0_139 = arith.constant 0 : index
    %c0_140 = arith.constant 0 : index
    %c0_141 = arith.constant 0 : index
    %405 = vector.load %arg2[%c0_138, %404, %c0_139, %c0_140, %c0_141] : memref<1x18x1x18x128xf32, #tpu.memory_space<vmem>>, vector<1x1x1x18x128xf32>
    %406 = vector.shape_cast %405 : vector<1x1x1x18x128xf32> to vector<18x128xf32>
    %407 = vector.extract_strided_slice %406 {offsets = [0, 0], sizes = [16, 128], strides = [1, 1]} : vector<18x128xf32> to vector<16x128xf32>
    %408 = vector.broadcast %8 : vector<1x128xf32> to vector<16x128xf32>
    %409 = arith.mulf %407, %408 : vector<16x128xf32>
    %410 = arith.addf %401, %409 : vector<16x128xf32>
    %411 = vector.extract_strided_slice %406 {offsets = [1, 0], sizes = [16, 128], strides = [1, 1]} : vector<18x128xf32> to vector<16x128xf32>
    %412 = vector.broadcast %9 : vector<1x128xf32> to vector<16x128xf32>
    %413 = arith.mulf %411, %412 : vector<16x128xf32>
    %414 = arith.addf %410, %413 : vector<16x128xf32>
    %415 = vector.extract_strided_slice %406 {offsets = [2, 0], sizes = [16, 128], strides = [1, 1]} : vector<18x128xf32> to vector<16x128xf32>
    %416 = vector.broadcast %10 : vector<1x128xf32> to vector<16x128xf32>
    %417 = arith.mulf %415, %416 : vector<16x128xf32>
    %418 = arith.addf %414, %417 : vector<16x128xf32>
    %419 = vector.broadcast %11 : vector<1x128xf32> to vector<16x128xf32>
    %420 = arith.mulf %418, %419 : vector<16x128xf32>
    %421 = vector.broadcast %12 : vector<1x128xf32> to vector<16x128xf32>
    %422 = arith.addf %420, %421 : vector<16x128xf32>
    %cst_142 = arith.constant 0.000000e+00 : f32
    %423 = vector.broadcast %cst_142 : f32 to vector<16x128xf32>
    %424 = arith.maximumf %422, %423 : vector<16x128xf32>
    %c96 = arith.constant 96 : index
    %c0_143 = arith.constant 0 : index
    %425 = vector.load %arg8[%c96, %c0_143] : memref<256x128xf32, #tpu.memory_space<vmem>>, vector<16x128xf32>
    tpu.vector_store %arg8[%c96, %c0_143], %424 {strides = array<i32>} : memref<256x128xf32, #tpu.memory_space<vmem>>, vector<16x128xf32>,
    %cst_144 = arith.constant 0.000000e+00 : f32
    %426 = vector.broadcast %cst_144 : f32 to vector<16x128xf32>
    %c7_i32 = arith.constant 7 : i32
    %427 = arith.addi %0, %c7_i32 : i32
    %c0_i32_145 = arith.constant 0 : i32
    %428 = arith.addi %427, %c0_i32_145 : i32
    %c0_146 = arith.constant 0 : index
    %429 = arith.index_cast %428 : i32 to index
    %c0_147 = arith.constant 0 : index
    %c0_148 = arith.constant 0 : index
    %c0_149 = arith.constant 0 : index
    %430 = vector.load %arg2[%c0_146, %429, %c0_147, %c0_148, %c0_149] : memref<1x18x1x18x128xf32, #tpu.memory_space<vmem>>, vector<1x1x1x18x128xf32>
    %431 = vector.shape_cast %430 : vector<1x1x1x18x128xf32> to vector<18x128xf32>
    %432 = vector.extract_strided_slice %431 {offsets = [0, 0], sizes = [16, 128], strides = [1, 1]} : vector<18x128xf32> to vector<16x128xf32>
    %433 = vector.broadcast %2 : vector<1x128xf32> to vector<16x128xf32>
    %434 = arith.mulf %432, %433 : vector<16x128xf32>
    %435 = arith.addf %426, %434 : vector<16x128xf32>
    %436 = vector.extract_strided_slice %431 {offsets = [1, 0], sizes = [16, 128], strides = [1, 1]} : vector<18x128xf32> to vector<16x128xf32>
    %437 = vector.broadcast %3 : vector<1x128xf32> to vector<16x128xf32>
    %438 = arith.mulf %436, %437 : vector<16x128xf32>
    %439 = arith.addf %435, %438 : vector<16x128xf32>
    %440 = vector.extract_strided_slice %431 {offsets = [2, 0], sizes = [16, 128], strides = [1, 1]} : vector<18x128xf32> to vector<16x128xf32>
    %441 = vector.broadcast %4 : vector<1x128xf32> to vector<16x128xf32>
    %442 = arith.mulf %440, %441 : vector<16x128xf32>
    %443 = arith.addf %439, %442 : vector<16x128xf32>
    %c7_i32_150 = arith.constant 7 : i32
    %444 = arith.addi %0, %c7_i32_150 : i32
    %c1_i32_151 = arith.constant 1 : i32
    %445 = arith.addi %444, %c1_i32_151 : i32
    %c0_152 = arith.constant 0 : index
    %446 = arith.index_cast %445 : i32 to index
    %c0_153 = arith.constant 0 : index
    %c0_154 = arith.constant 0 : index
    %c0_155 = arith.constant 0 : index
    %447 = vector.load %arg2[%c0_152, %446, %c0_153, %c0_154, %c0_155] : memref<1x18x1x18x128xf32, #tpu.memory_space<vmem>>, vector<1x1x1x18x128xf32>
    %448 = vector.shape_cast %447 : vector<1x1x1x18x128xf32> to vector<18x128xf32>
    %449 = vector.extract_strided_slice %448 {offsets = [0, 0], sizes = [16, 128], strides = [1, 1]} : vector<18x128xf32> to vector<16x128xf32>
    %450 = vector.broadcast %5 : vector<1x128xf32> to vector<16x128xf32>
    %451 = arith.mulf %449, %450 : vector<16x128xf32>
    %452 = arith.addf %443, %451 : vector<16x128xf32>
    %453 = vector.extract_strided_slice %448 {offsets = [1, 0], sizes = [16, 128], strides = [1, 1]} : vector<18x128xf32> to vector<16x128xf32>
    %454 = vector.broadcast %6 : vector<1x128xf32> to vector<16x128xf32>
    %455 = arith.mulf %453, %454 : vector<16x128xf32>
    %456 = arith.addf %452, %455 : vector<16x128xf32>
    %457 = vector.extract_strided_slice %448 {offsets = [2, 0], sizes = [16, 128], strides = [1, 1]} : vector<18x128xf32> to vector<16x128xf32>
    %458 = vector.broadcast %7 : vector<1x128xf32> to vector<16x128xf32>
    %459 = arith.mulf %457, %458 : vector<16x128xf32>
    %460 = arith.addf %456, %459 : vector<16x128xf32>
    %c7_i32_156 = arith.constant 7 : i32
    %461 = arith.addi %0, %c7_i32_156 : i32
    %c2_i32_157 = arith.constant 2 : i32
    %462 = arith.addi %461, %c2_i32_157 : i32
    %c0_158 = arith.constant 0 : index
    %463 = arith.index_cast %462 : i32 to index
    %c0_159 = arith.constant 0 : index
    %c0_160 = arith.constant 0 : index
    %c0_161 = arith.constant 0 : index
    %464 = vector.load %arg2[%c0_158, %463, %c0_159, %c0_160, %c0_161] : memref<1x18x1x18x128xf32, #tpu.memory_space<vmem>>, vector<1x1x1x18x128xf32>
    %465 = vector.shape_cast %464 : vector<1x1x1x18x128xf32> to vector<18x128xf32>
    %466 = vector.extract_strided_slice %465 {offsets = [0, 0], sizes = [16, 128], strides = [1, 1]} : vector<18x128xf32> to vector<16x128xf32>
    %467 = vector.broadcast %8 : vector<1x128xf32> to vector<16x128xf32>
    %468 = arith.mulf %466, %467 : vector<16x128xf32>
    %469 = arith.addf %460, %468 : vector<16x128xf32>
    %470 = vector.extract_strided_slice %465 {offsets = [1, 0], sizes = [16, 128], strides = [1, 1]} : vector<18x128xf32> to vector<16x128xf32>
    %471 = vector.broadcast %9 : vector<1x128xf32> to vector<16x128xf32>
    %472 = arith.mulf %470, %471 : vector<16x128xf32>
    %473 = arith.addf %469, %472 : vector<16x128xf32>
    %474 = vector.extract_strided_slice %465 {offsets = [2, 0], sizes = [16, 128], strides = [1, 1]} : vector<18x128xf32> to vector<16x128xf32>
    %475 = vector.broadcast %10 : vector<1x128xf32> to vector<16x128xf32>
    %476 = arith.mulf %474, %475 : vector<16x128xf32>
    %477 = arith.addf %473, %476 : vector<16x128xf32>
    %478 = vector.broadcast %11 : vector<1x128xf32> to vector<16x128xf32>
    %479 = arith.mulf %477, %478 : vector<16x128xf32>
    %480 = vector.broadcast %12 : vector<1x128xf32> to vector<16x128xf32>
    %481 = arith.addf %479, %480 : vector<16x128xf32>
    %cst_162 = arith.constant 0.000000e+00 : f32
    %482 = vector.broadcast %cst_162 : f32 to vector<16x128xf32>
    %483 = arith.maximumf %481, %482 : vector<16x128xf32>
    %c112 = arith.constant 112 : index
    %c0_163 = arith.constant 0 : index
    %484 = vector.load %arg8[%c112, %c0_163] : memref<256x128xf32, #tpu.memory_space<vmem>>, vector<16x128xf32>
    tpu.vector_store %arg8[%c112, %c0_163], %483 {strides = array<i32>} : memref<256x128xf32, #tpu.memory_space<vmem>>, vector<16x128xf32>,
    %cst_164 = arith.constant 0.000000e+00 : f32
    %485 = vector.broadcast %cst_164 : f32 to vector<16x128xf32>
    %c8_i32 = arith.constant 8 : i32
    %486 = arith.addi %0, %c8_i32 : i32
    %c0_i32_165 = arith.constant 0 : i32
    %487 = arith.addi %486, %c0_i32_165 : i32
    %c0_166 = arith.constant 0 : index
    %488 = arith.index_cast %487 : i32 to index
    %c0_167 = arith.constant 0 : index
    %c0_168 = arith.constant 0 : index
    %c0_169 = arith.constant 0 : index
    %489 = vector.load %arg2[%c0_166, %488, %c0_167, %c0_168, %c0_169] : memref<1x18x1x18x128xf32, #tpu.memory_space<vmem>>, vector<1x1x1x18x128xf32>
    %490 = vector.shape_cast %489 : vector<1x1x1x18x128xf32> to vector<18x128xf32>
    %491 = vector.extract_strided_slice %490 {offsets = [0, 0], sizes = [16, 128], strides = [1, 1]} : vector<18x128xf32> to vector<16x128xf32>
    %492 = vector.broadcast %2 : vector<1x128xf32> to vector<16x128xf32>
    %493 = arith.mulf %491, %492 : vector<16x128xf32>
    %494 = arith.addf %485, %493 : vector<16x128xf32>
    %495 = vector.extract_strided_slice %490 {offsets = [1, 0], sizes = [16, 128], strides = [1, 1]} : vector<18x128xf32> to vector<16x128xf32>
    %496 = vector.broadcast %3 : vector<1x128xf32> to vector<16x128xf32>
    %497 = arith.mulf %495, %496 : vector<16x128xf32>
    %498 = arith.addf %494, %497 : vector<16x128xf32>
    %499 = vector.extract_strided_slice %490 {offsets = [2, 0], sizes = [16, 128], strides = [1, 1]} : vector<18x128xf32> to vector<16x128xf32>
    %500 = vector.broadcast %4 : vector<1x128xf32> to vector<16x128xf32>
    %501 = arith.mulf %499, %500 : vector<16x128xf32>
    %502 = arith.addf %498, %501 : vector<16x128xf32>
    %c8_i32_170 = arith.constant 8 : i32
    %503 = arith.addi %0, %c8_i32_170 : i32
    %c1_i32_171 = arith.constant 1 : i32
    %504 = arith.addi %503, %c1_i32_171 : i32
    %c0_172 = arith.constant 0 : index
    %505 = arith.index_cast %504 : i32 to index
    %c0_173 = arith.constant 0 : index
    %c0_174 = arith.constant 0 : index
    %c0_175 = arith.constant 0 : index
    %506 = vector.load %arg2[%c0_172, %505, %c0_173, %c0_174, %c0_175] : memref<1x18x1x18x128xf32, #tpu.memory_space<vmem>>, vector<1x1x1x18x128xf32>
    %507 = vector.shape_cast %506 : vector<1x1x1x18x128xf32> to vector<18x128xf32>
    %508 = vector.extract_strided_slice %507 {offsets = [0, 0], sizes = [16, 128], strides = [1, 1]} : vector<18x128xf32> to vector<16x128xf32>
    %509 = vector.broadcast %5 : vector<1x128xf32> to vector<16x128xf32>
    %510 = arith.mulf %508, %509 : vector<16x128xf32>
    %511 = arith.addf %502, %510 : vector<16x128xf32>
    %512 = vector.extract_strided_slice %507 {offsets = [1, 0], sizes = [16, 128], strides = [1, 1]} : vector<18x128xf32> to vector<16x128xf32>
    %513 = vector.broadcast %6 : vector<1x128xf32> to vector<16x128xf32>
    %514 = arith.mulf %512, %513 : vector<16x128xf32>
    %515 = arith.addf %511, %514 : vector<16x128xf32>
    %516 = vector.extract_strided_slice %507 {offsets = [2, 0], sizes = [16, 128], strides = [1, 1]} : vector<18x128xf32> to vector<16x128xf32>
    %517 = vector.broadcast %7 : vector<1x128xf32> to vector<16x128xf32>
    %518 = arith.mulf %516, %517 : vector<16x128xf32>
    %519 = arith.addf %515, %518 : vector<16x128xf32>
    %c8_i32_176 = arith.constant 8 : i32
    %520 = arith.addi %0, %c8_i32_176 : i32
    %c2_i32_177 = arith.constant 2 : i32
    %521 = arith.addi %520, %c2_i32_177 : i32
    %c0_178 = arith.constant 0 : index
    %522 = arith.index_cast %521 : i32 to index
    %c0_179 = arith.constant 0 : index
    %c0_180 = arith.constant 0 : index
    %c0_181 = arith.constant 0 : index
    %523 = vector.load %arg2[%c0_178, %522, %c0_179, %c0_180, %c0_181] : memref<1x18x1x18x128xf32, #tpu.memory_space<vmem>>, vector<1x1x1x18x128xf32>
    %524 = vector.shape_cast %523 : vector<1x1x1x18x128xf32> to vector<18x128xf32>
    %525 = vector.extract_strided_slice %524 {offsets = [0, 0], sizes = [16, 128], strides = [1, 1]} : vector<18x128xf32> to vector<16x128xf32>
    %526 = vector.broadcast %8 : vector<1x128xf32> to vector<16x128xf32>
    %527 = arith.mulf %525, %526 : vector<16x128xf32>
    %528 = arith.addf %519, %527 : vector<16x128xf32>
    %529 = vector.extract_strided_slice %524 {offsets = [1, 0], sizes = [16, 128], strides = [1, 1]} : vector<18x128xf32> to vector<16x128xf32>
    %530 = vector.broadcast %9 : vector<1x128xf32> to vector<16x128xf32>
    %531 = arith.mulf %529, %530 : vector<16x128xf32>
    %532 = arith.addf %528, %531 : vector<16x128xf32>
    %533 = vector.extract_strided_slice %524 {offsets = [2, 0], sizes = [16, 128], strides = [1, 1]} : vector<18x128xf32> to vector<16x128xf32>
    %534 = vector.broadcast %10 : vector<1x128xf32> to vector<16x128xf32>
    %535 = arith.mulf %533, %534 : vector<16x128xf32>
    %536 = arith.addf %532, %535 : vector<16x128xf32>
    %537 = vector.broadcast %11 : vector<1x128xf32> to vector<16x128xf32>
    %538 = arith.mulf %536, %537 : vector<16x128xf32>
    %539 = vector.broadcast %12 : vector<1x128xf32> to vector<16x128xf32>
    %540 = arith.addf %538, %539 : vector<16x128xf32>
    %cst_182 = arith.constant 0.000000e+00 : f32
    %541 = vector.broadcast %cst_182 : f32 to vector<16x128xf32>
    %542 = arith.maximumf %540, %541 : vector<16x128xf32>
    %c128 = arith.constant 128 : index
    %c0_183 = arith.constant 0 : index
    %543 = vector.load %arg8[%c128, %c0_183] : memref<256x128xf32, #tpu.memory_space<vmem>>, vector<16x128xf32>
    tpu.vector_store %arg8[%c128, %c0_183], %542 {strides = array<i32>} : memref<256x128xf32, #tpu.memory_space<vmem>>, vector<16x128xf32>,
    %cst_184 = arith.constant 0.000000e+00 : f32
    %544 = vector.broadcast %cst_184 : f32 to vector<16x128xf32>
    %c9_i32 = arith.constant 9 : i32
    %545 = arith.addi %0, %c9_i32 : i32
    %c0_i32_185 = arith.constant 0 : i32
    %546 = arith.addi %545, %c0_i32_185 : i32
    %c0_186 = arith.constant 0 : index
    %547 = arith.index_cast %546 : i32 to index
    %c0_187 = arith.constant 0 : index
    %c0_188 = arith.constant 0 : index
    %c0_189 = arith.constant 0 : index
    %548 = vector.load %arg2[%c0_186, %547, %c0_187, %c0_188, %c0_189] : memref<1x18x1x18x128xf32, #tpu.memory_space<vmem>>, vector<1x1x1x18x128xf32>
    %549 = vector.shape_cast %548 : vector<1x1x1x18x128xf32> to vector<18x128xf32>
    %550 = vector.extract_strided_slice %549 {offsets = [0, 0], sizes = [16, 128], strides = [1, 1]} : vector<18x128xf32> to vector<16x128xf32>
    %551 = vector.broadcast %2 : vector<1x128xf32> to vector<16x128xf32>
    %552 = arith.mulf %550, %551 : vector<16x128xf32>
    %553 = arith.addf %544, %552 : vector<16x128xf32>
    %554 = vector.extract_strided_slice %549 {offsets = [1, 0], sizes = [16, 128], strides = [1, 1]} : vector<18x128xf32> to vector<16x128xf32>
    %555 = vector.broadcast %3 : vector<1x128xf32> to vector<16x128xf32>
    %556 = arith.mulf %554, %555 : vector<16x128xf32>
    %557 = arith.addf %553, %556 : vector<16x128xf32>
    %558 = vector.extract_strided_slice %549 {offsets = [2, 0], sizes = [16, 128], strides = [1, 1]} : vector<18x128xf32> to vector<16x128xf32>
    %559 = vector.broadcast %4 : vector<1x128xf32> to vector<16x128xf32>
    %560 = arith.mulf %558, %559 : vector<16x128xf32>
    %561 = arith.addf %557, %560 : vector<16x128xf32>
    %c9_i32_190 = arith.constant 9 : i32
    %562 = arith.addi %0, %c9_i32_190 : i32
    %c1_i32_191 = arith.constant 1 : i32
    %563 = arith.addi %562, %c1_i32_191 : i32
    %c0_192 = arith.constant 0 : index
    %564 = arith.index_cast %563 : i32 to index
    %c0_193 = arith.constant 0 : index
    %c0_194 = arith.constant 0 : index
    %c0_195 = arith.constant 0 : index
    %565 = vector.load %arg2[%c0_192, %564, %c0_193, %c0_194, %c0_195] : memref<1x18x1x18x128xf32, #tpu.memory_space<vmem>>, vector<1x1x1x18x128xf32>
    %566 = vector.shape_cast %565 : vector<1x1x1x18x128xf32> to vector<18x128xf32>
    %567 = vector.extract_strided_slice %566 {offsets = [0, 0], sizes = [16, 128], strides = [1, 1]} : vector<18x128xf32> to vector<16x128xf32>
    %568 = vector.broadcast %5 : vector<1x128xf32> to vector<16x128xf32>
    %569 = arith.mulf %567, %568 : vector<16x128xf32>
    %570 = arith.addf %561, %569 : vector<16x128xf32>
    %571 = vector.extract_strided_slice %566 {offsets = [1, 0], sizes = [16, 128], strides = [1, 1]} : vector<18x128xf32> to vector<16x128xf32>
    %572 = vector.broadcast %6 : vector<1x128xf32> to vector<16x128xf32>
    %573 = arith.mulf %571, %572 : vector<16x128xf32>
    %574 = arith.addf %570, %573 : vector<16x128xf32>
    %575 = vector.extract_strided_slice %566 {offsets = [2, 0], sizes = [16, 128], strides = [1, 1]} : vector<18x128xf32> to vector<16x128xf32>
    %576 = vector.broadcast %7 : vector<1x128xf32> to vector<16x128xf32>
    %577 = arith.mulf %575, %576 : vector<16x128xf32>
    %578 = arith.addf %574, %577 : vector<16x128xf32>
    %c9_i32_196 = arith.constant 9 : i32
    %579 = arith.addi %0, %c9_i32_196 : i32
    %c2_i32_197 = arith.constant 2 : i32
    %580 = arith.addi %579, %c2_i32_197 : i32
    %c0_198 = arith.constant 0 : index
    %581 = arith.index_cast %580 : i32 to index
    %c0_199 = arith.constant 0 : index
    %c0_200 = arith.constant 0 : index
    %c0_201 = arith.constant 0 : index
    %582 = vector.load %arg2[%c0_198, %581, %c0_199, %c0_200, %c0_201] : memref<1x18x1x18x128xf32, #tpu.memory_space<vmem>>, vector<1x1x1x18x128xf32>
    %583 = vector.shape_cast %582 : vector<1x1x1x18x128xf32> to vector<18x128xf32>
    %584 = vector.extract_strided_slice %583 {offsets = [0, 0], sizes = [16, 128], strides = [1, 1]} : vector<18x128xf32> to vector<16x128xf32>
    %585 = vector.broadcast %8 : vector<1x128xf32> to vector<16x128xf32>
    %586 = arith.mulf %584, %585 : vector<16x128xf32>
    %587 = arith.addf %578, %586 : vector<16x128xf32>
    %588 = vector.extract_strided_slice %583 {offsets = [1, 0], sizes = [16, 128], strides = [1, 1]} : vector<18x128xf32> to vector<16x128xf32>
    %589 = vector.broadcast %9 : vector<1x128xf32> to vector<16x128xf32>
    %590 = arith.mulf %588, %589 : vector<16x128xf32>
    %591 = arith.addf %587, %590 : vector<16x128xf32>
    %592 = vector.extract_strided_slice %583 {offsets = [2, 0], sizes = [16, 128], strides = [1, 1]} : vector<18x128xf32> to vector<16x128xf32>
    %593 = vector.broadcast %10 : vector<1x128xf32> to vector<16x128xf32>
    %594 = arith.mulf %592, %593 : vector<16x128xf32>
    %595 = arith.addf %591, %594 : vector<16x128xf32>
    %596 = vector.broadcast %11 : vector<1x128xf32> to vector<16x128xf32>
    %597 = arith.mulf %595, %596 : vector<16x128xf32>
    %598 = vector.broadcast %12 : vector<1x128xf32> to vector<16x128xf32>
    %599 = arith.addf %597, %598 : vector<16x128xf32>
    %cst_202 = arith.constant 0.000000e+00 : f32
    %600 = vector.broadcast %cst_202 : f32 to vector<16x128xf32>
    %601 = arith.maximumf %599, %600 : vector<16x128xf32>
    %c144 = arith.constant 144 : index
    %c0_203 = arith.constant 0 : index
    %602 = vector.load %arg8[%c144, %c0_203] : memref<256x128xf32, #tpu.memory_space<vmem>>, vector<16x128xf32>
    tpu.vector_store %arg8[%c144, %c0_203], %601 {strides = array<i32>} : memref<256x128xf32, #tpu.memory_space<vmem>>, vector<16x128xf32>,
    %cst_204 = arith.constant 0.000000e+00 : f32
    %603 = vector.broadcast %cst_204 : f32 to vector<16x128xf32>
    %c10_i32 = arith.constant 10 : i32
    %604 = arith.addi %0, %c10_i32 : i32
    %c0_i32_205 = arith.constant 0 : i32
    %605 = arith.addi %604, %c0_i32_205 : i32
    %c0_206 = arith.constant 0 : index
    %606 = arith.index_cast %605 : i32 to index
    %c0_207 = arith.constant 0 : index
    %c0_208 = arith.constant 0 : index
    %c0_209 = arith.constant 0 : index
    %607 = vector.load %arg2[%c0_206, %606, %c0_207, %c0_208, %c0_209] : memref<1x18x1x18x128xf32, #tpu.memory_space<vmem>>, vector<1x1x1x18x128xf32>
    %608 = vector.shape_cast %607 : vector<1x1x1x18x128xf32> to vector<18x128xf32>
    %609 = vector.extract_strided_slice %608 {offsets = [0, 0], sizes = [16, 128], strides = [1, 1]} : vector<18x128xf32> to vector<16x128xf32>
    %610 = vector.broadcast %2 : vector<1x128xf32> to vector<16x128xf32>
    %611 = arith.mulf %609, %610 : vector<16x128xf32>
    %612 = arith.addf %603, %611 : vector<16x128xf32>
    %613 = vector.extract_strided_slice %608 {offsets = [1, 0], sizes = [16, 128], strides = [1, 1]} : vector<18x128xf32> to vector<16x128xf32>
    %614 = vector.broadcast %3 : vector<1x128xf32> to vector<16x128xf32>
    %615 = arith.mulf %613, %614 : vector<16x128xf32>
    %616 = arith.addf %612, %615 : vector<16x128xf32>
    %617 = vector.extract_strided_slice %608 {offsets = [2, 0], sizes = [16, 128], strides = [1, 1]} : vector<18x128xf32> to vector<16x128xf32>
    %618 = vector.broadcast %4 : vector<1x128xf32> to vector<16x128xf32>
    %619 = arith.mulf %617, %618 : vector<16x128xf32>
    %620 = arith.addf %616, %619 : vector<16x128xf32>
    %c10_i32_210 = arith.constant 10 : i32
    %621 = arith.addi %0, %c10_i32_210 : i32
    %c1_i32_211 = arith.constant 1 : i32
    %622 = arith.addi %621, %c1_i32_211 : i32
    %c0_212 = arith.constant 0 : index
    %623 = arith.index_cast %622 : i32 to index
    %c0_213 = arith.constant 0 : index
    %c0_214 = arith.constant 0 : index
    %c0_215 = arith.constant 0 : index
    %624 = vector.load %arg2[%c0_212, %623, %c0_213, %c0_214, %c0_215] : memref<1x18x1x18x128xf32, #tpu.memory_space<vmem>>, vector<1x1x1x18x128xf32>
    %625 = vector.shape_cast %624 : vector<1x1x1x18x128xf32> to vector<18x128xf32>
    %626 = vector.extract_strided_slice %625 {offsets = [0, 0], sizes = [16, 128], strides = [1, 1]} : vector<18x128xf32> to vector<16x128xf32>
    %627 = vector.broadcast %5 : vector<1x128xf32> to vector<16x128xf32>
    %628 = arith.mulf %626, %627 : vector<16x128xf32>
    %629 = arith.addf %620, %628 : vector<16x128xf32>
    %630 = vector.extract_strided_slice %625 {offsets = [1, 0], sizes = [16, 128], strides = [1, 1]} : vector<18x128xf32> to vector<16x128xf32>
    %631 = vector.broadcast %6 : vector<1x128xf32> to vector<16x128xf32>
    %632 = arith.mulf %630, %631 : vector<16x128xf32>
    %633 = arith.addf %629, %632 : vector<16x128xf32>
    %634 = vector.extract_strided_slice %625 {offsets = [2, 0], sizes = [16, 128], strides = [1, 1]} : vector<18x128xf32> to vector<16x128xf32>
    %635 = vector.broadcast %7 : vector<1x128xf32> to vector<16x128xf32>
    %636 = arith.mulf %634, %635 : vector<16x128xf32>
    %637 = arith.addf %633, %636 : vector<16x128xf32>
    %c10_i32_216 = arith.constant 10 : i32
    %638 = arith.addi %0, %c10_i32_216 : i32
    %c2_i32_217 = arith.constant 2 : i32
    %639 = arith.addi %638, %c2_i32_217 : i32
    %c0_218 = arith.constant 0 : index
    %640 = arith.index_cast %639 : i32 to index
    %c0_219 = arith.constant 0 : index
    %c0_220 = arith.constant 0 : index
    %c0_221 = arith.constant 0 : index
    %641 = vector.load %arg2[%c0_218, %640, %c0_219, %c0_220, %c0_221] : memref<1x18x1x18x128xf32, #tpu.memory_space<vmem>>, vector<1x1x1x18x128xf32>
    %642 = vector.shape_cast %641 : vector<1x1x1x18x128xf32> to vector<18x128xf32>
    %643 = vector.extract_strided_slice %642 {offsets = [0, 0], sizes = [16, 128], strides = [1, 1]} : vector<18x128xf32> to vector<16x128xf32>
    %644 = vector.broadcast %8 : vector<1x128xf32> to vector<16x128xf32>
    %645 = arith.mulf %643, %644 : vector<16x128xf32>
    %646 = arith.addf %637, %645 : vector<16x128xf32>
    %647 = vector.extract_strided_slice %642 {offsets = [1, 0], sizes = [16, 128], strides = [1, 1]} : vector<18x128xf32> to vector<16x128xf32>
    %648 = vector.broadcast %9 : vector<1x128xf32> to vector<16x128xf32>
    %649 = arith.mulf %647, %648 : vector<16x128xf32>
    %650 = arith.addf %646, %649 : vector<16x128xf32>
    %651 = vector.extract_strided_slice %642 {offsets = [2, 0], sizes = [16, 128], strides = [1, 1]} : vector<18x128xf32> to vector<16x128xf32>
    %652 = vector.broadcast %10 : vector<1x128xf32> to vector<16x128xf32>
    %653 = arith.mulf %651, %652 : vector<16x128xf32>
    %654 = arith.addf %650, %653 : vector<16x128xf32>
    %655 = vector.broadcast %11 : vector<1x128xf32> to vector<16x128xf32>
    %656 = arith.mulf %654, %655 : vector<16x128xf32>
    %657 = vector.broadcast %12 : vector<1x128xf32> to vector<16x128xf32>
    %658 = arith.addf %656, %657 : vector<16x128xf32>
    %cst_222 = arith.constant 0.000000e+00 : f32
    %659 = vector.broadcast %cst_222 : f32 to vector<16x128xf32>
    %660 = arith.maximumf %658, %659 : vector<16x128xf32>
    %c160 = arith.constant 160 : index
    %c0_223 = arith.constant 0 : index
    %661 = vector.load %arg8[%c160, %c0_223] : memref<256x128xf32, #tpu.memory_space<vmem>>, vector<16x128xf32>
    tpu.vector_store %arg8[%c160, %c0_223], %660 {strides = array<i32>} : memref<256x128xf32, #tpu.memory_space<vmem>>, vector<16x128xf32>,
    %cst_224 = arith.constant 0.000000e+00 : f32
    %662 = vector.broadcast %cst_224 : f32 to vector<16x128xf32>
    %c11_i32 = arith.constant 11 : i32
    %663 = arith.addi %0, %c11_i32 : i32
    %c0_i32_225 = arith.constant 0 : i32
    %664 = arith.addi %663, %c0_i32_225 : i32
    %c0_226 = arith.constant 0 : index
    %665 = arith.index_cast %664 : i32 to index
    %c0_227 = arith.constant 0 : index
    %c0_228 = arith.constant 0 : index
    %c0_229 = arith.constant 0 : index
    %666 = vector.load %arg2[%c0_226, %665, %c0_227, %c0_228, %c0_229] : memref<1x18x1x18x128xf32, #tpu.memory_space<vmem>>, vector<1x1x1x18x128xf32>
    %667 = vector.shape_cast %666 : vector<1x1x1x18x128xf32> to vector<18x128xf32>
    %668 = vector.extract_strided_slice %667 {offsets = [0, 0], sizes = [16, 128], strides = [1, 1]} : vector<18x128xf32> to vector<16x128xf32>
    %669 = vector.broadcast %2 : vector<1x128xf32> to vector<16x128xf32>
    %670 = arith.mulf %668, %669 : vector<16x128xf32>
    %671 = arith.addf %662, %670 : vector<16x128xf32>
    %672 = vector.extract_strided_slice %667 {offsets = [1, 0], sizes = [16, 128], strides = [1, 1]} : vector<18x128xf32> to vector<16x128xf32>
    %673 = vector.broadcast %3 : vector<1x128xf32> to vector<16x128xf32>
    %674 = arith.mulf %672, %673 : vector<16x128xf32>
    %675 = arith.addf %671, %674 : vector<16x128xf32>
    %676 = vector.extract_strided_slice %667 {offsets = [2, 0], sizes = [16, 128], strides = [1, 1]} : vector<18x128xf32> to vector<16x128xf32>
    %677 = vector.broadcast %4 : vector<1x128xf32> to vector<16x128xf32>
    %678 = arith.mulf %676, %677 : vector<16x128xf32>
    %679 = arith.addf %675, %678 : vector<16x128xf32>
    %c11_i32_230 = arith.constant 11 : i32
    %680 = arith.addi %0, %c11_i32_230 : i32
    %c1_i32_231 = arith.constant 1 : i32
    %681 = arith.addi %680, %c1_i32_231 : i32
    %c0_232 = arith.constant 0 : index
    %682 = arith.index_cast %681 : i32 to index
    %c0_233 = arith.constant 0 : index
    %c0_234 = arith.constant 0 : index
    %c0_235 = arith.constant 0 : index
    %683 = vector.load %arg2[%c0_232, %682, %c0_233, %c0_234, %c0_235] : memref<1x18x1x18x128xf32, #tpu.memory_space<vmem>>, vector<1x1x1x18x128xf32>
    %684 = vector.shape_cast %683 : vector<1x1x1x18x128xf32> to vector<18x128xf32>
    %685 = vector.extract_strided_slice %684 {offsets = [0, 0], sizes = [16, 128], strides = [1, 1]} : vector<18x128xf32> to vector<16x128xf32>
    %686 = vector.broadcast %5 : vector<1x128xf32> to vector<16x128xf32>
    %687 = arith.mulf %685, %686 : vector<16x128xf32>
    %688 = arith.addf %679, %687 : vector<16x128xf32>
    %689 = vector.extract_strided_slice %684 {offsets = [1, 0], sizes = [16, 128], strides = [1, 1]} : vector<18x128xf32> to vector<16x128xf32>
    %690 = vector.broadcast %6 : vector<1x128xf32> to vector<16x128xf32>
    %691 = arith.mulf %689, %690 : vector<16x128xf32>
    %692 = arith.addf %688, %691 : vector<16x128xf32>
    %693 = vector.extract_strided_slice %684 {offsets = [2, 0], sizes = [16, 128], strides = [1, 1]} : vector<18x128xf32> to vector<16x128xf32>
    %694 = vector.broadcast %7 : vector<1x128xf32> to vector<16x128xf32>
    %695 = arith.mulf %693, %694 : vector<16x128xf32>
    %696 = arith.addf %692, %695 : vector<16x128xf32>
    %c11_i32_236 = arith.constant 11 : i32
    %697 = arith.addi %0, %c11_i32_236 : i32
    %c2_i32_237 = arith.constant 2 : i32
    %698 = arith.addi %697, %c2_i32_237 : i32
    %c0_238 = arith.constant 0 : index
    %699 = arith.index_cast %698 : i32 to index
    %c0_239 = arith.constant 0 : index
    %c0_240 = arith.constant 0 : index
    %c0_241 = arith.constant 0 : index
    %700 = vector.load %arg2[%c0_238, %699, %c0_239, %c0_240, %c0_241] : memref<1x18x1x18x128xf32, #tpu.memory_space<vmem>>, vector<1x1x1x18x128xf32>
    %701 = vector.shape_cast %700 : vector<1x1x1x18x128xf32> to vector<18x128xf32>
    %702 = vector.extract_strided_slice %701 {offsets = [0, 0], sizes = [16, 128], strides = [1, 1]} : vector<18x128xf32> to vector<16x128xf32>
    %703 = vector.broadcast %8 : vector<1x128xf32> to vector<16x128xf32>
    %704 = arith.mulf %702, %703 : vector<16x128xf32>
    %705 = arith.addf %696, %704 : vector<16x128xf32>
    %706 = vector.extract_strided_slice %701 {offsets = [1, 0], sizes = [16, 128], strides = [1, 1]} : vector<18x128xf32> to vector<16x128xf32>
    %707 = vector.broadcast %9 : vector<1x128xf32> to vector<16x128xf32>
    %708 = arith.mulf %706, %707 : vector<16x128xf32>
    %709 = arith.addf %705, %708 : vector<16x128xf32>
    %710 = vector.extract_strided_slice %701 {offsets = [2, 0], sizes = [16, 128], strides = [1, 1]} : vector<18x128xf32> to vector<16x128xf32>
    %711 = vector.broadcast %10 : vector<1x128xf32> to vector<16x128xf32>
    %712 = arith.mulf %710, %711 : vector<16x128xf32>
    %713 = arith.addf %709, %712 : vector<16x128xf32>
    %714 = vector.broadcast %11 : vector<1x128xf32> to vector<16x128xf32>
    %715 = arith.mulf %713, %714 : vector<16x128xf32>
    %716 = vector.broadcast %12 : vector<1x128xf32> to vector<16x128xf32>
    %717 = arith.addf %715, %716 : vector<16x128xf32>
    %cst_242 = arith.constant 0.000000e+00 : f32
    %718 = vector.broadcast %cst_242 : f32 to vector<16x128xf32>
    %719 = arith.maximumf %717, %718 : vector<16x128xf32>
    %c176 = arith.constant 176 : index
    %c0_243 = arith.constant 0 : index
    %720 = vector.load %arg8[%c176, %c0_243] : memref<256x128xf32, #tpu.memory_space<vmem>>, vector<16x128xf32>
    tpu.vector_store %arg8[%c176, %c0_243], %719 {strides = array<i32>} : memref<256x128xf32, #tpu.memory_space<vmem>>, vector<16x128xf32>,
    %cst_244 = arith.constant 0.000000e+00 : f32
    %721 = vector.broadcast %cst_244 : f32 to vector<16x128xf32>
    %c12_i32 = arith.constant 12 : i32
    %722 = arith.addi %0, %c12_i32 : i32
    %c0_i32_245 = arith.constant 0 : i32
    %723 = arith.addi %722, %c0_i32_245 : i32
    %c0_246 = arith.constant 0 : index
    %724 = arith.index_cast %723 : i32 to index
    %c0_247 = arith.constant 0 : index
    %c0_248 = arith.constant 0 : index
    %c0_249 = arith.constant 0 : index
    %725 = vector.load %arg2[%c0_246, %724, %c0_247, %c0_248, %c0_249] : memref<1x18x1x18x128xf32, #tpu.memory_space<vmem>>, vector<1x1x1x18x128xf32>
    %726 = vector.shape_cast %725 : vector<1x1x1x18x128xf32> to vector<18x128xf32>
    %727 = vector.extract_strided_slice %726 {offsets = [0, 0], sizes = [16, 128], strides = [1, 1]} : vector<18x128xf32> to vector<16x128xf32>
    %728 = vector.broadcast %2 : vector<1x128xf32> to vector<16x128xf32>
    %729 = arith.mulf %727, %728 : vector<16x128xf32>
    %730 = arith.addf %721, %729 : vector<16x128xf32>
    %731 = vector.extract_strided_slice %726 {offsets = [1, 0], sizes = [16, 128], strides = [1, 1]} : vector<18x128xf32> to vector<16x128xf32>
    %732 = vector.broadcast %3 : vector<1x128xf32> to vector<16x128xf32>
    %733 = arith.mulf %731, %732 : vector<16x128xf32>
    %734 = arith.addf %730, %733 : vector<16x128xf32>
    %735 = vector.extract_strided_slice %726 {offsets = [2, 0], sizes = [16, 128], strides = [1, 1]} : vector<18x128xf32> to vector<16x128xf32>
    %736 = vector.broadcast %4 : vector<1x128xf32> to vector<16x128xf32>
    %737 = arith.mulf %735, %736 : vector<16x128xf32>
    %738 = arith.addf %734, %737 : vector<16x128xf32>
    %c12_i32_250 = arith.constant 12 : i32
    %739 = arith.addi %0, %c12_i32_250 : i32
    %c1_i32_251 = arith.constant 1 : i32
    %740 = arith.addi %739, %c1_i32_251 : i32
    %c0_252 = arith.constant 0 : index
    %741 = arith.index_cast %740 : i32 to index
    %c0_253 = arith.constant 0 : index
    %c0_254 = arith.constant 0 : index
    %c0_255 = arith.constant 0 : index
    %742 = vector.load %arg2[%c0_252, %741, %c0_253, %c0_254, %c0_255] : memref<1x18x1x18x128xf32, #tpu.memory_space<vmem>>, vector<1x1x1x18x128xf32>
    %743 = vector.shape_cast %742 : vector<1x1x1x18x128xf32> to vector<18x128xf32>
    %744 = vector.extract_strided_slice %743 {offsets = [0, 0], sizes = [16, 128], strides = [1, 1]} : vector<18x128xf32> to vector<16x128xf32>
    %745 = vector.broadcast %5 : vector<1x128xf32> to vector<16x128xf32>
    %746 = arith.mulf %744, %745 : vector<16x128xf32>
    %747 = arith.addf %738, %746 : vector<16x128xf32>
    %748 = vector.extract_strided_slice %743 {offsets = [1, 0], sizes = [16, 128], strides = [1, 1]} : vector<18x128xf32> to vector<16x128xf32>
    %749 = vector.broadcast %6 : vector<1x128xf32> to vector<16x128xf32>
    %750 = arith.mulf %748, %749 : vector<16x128xf32>
    %751 = arith.addf %747, %750 : vector<16x128xf32>
    %752 = vector.extract_strided_slice %743 {offsets = [2, 0], sizes = [16, 128], strides = [1, 1]} : vector<18x128xf32> to vector<16x128xf32>
    %753 = vector.broadcast %7 : vector<1x128xf32> to vector<16x128xf32>
    %754 = arith.mulf %752, %753 : vector<16x128xf32>
    %755 = arith.addf %751, %754 : vector<16x128xf32>
    %c12_i32_256 = arith.constant 12 : i32
    %756 = arith.addi %0, %c12_i32_256 : i32
    %c2_i32_257 = arith.constant 2 : i32
    %757 = arith.addi %756, %c2_i32_257 : i32
    %c0_258 = arith.constant 0 : index
    %758 = arith.index_cast %757 : i32 to index
    %c0_259 = arith.constant 0 : index
    %c0_260 = arith.constant 0 : index
    %c0_261 = arith.constant 0 : index
    %759 = vector.load %arg2[%c0_258, %758, %c0_259, %c0_260, %c0_261] : memref<1x18x1x18x128xf32, #tpu.memory_space<vmem>>, vector<1x1x1x18x128xf32>
    %760 = vector.shape_cast %759 : vector<1x1x1x18x128xf32> to vector<18x128xf32>
    %761 = vector.extract_strided_slice %760 {offsets = [0, 0], sizes = [16, 128], strides = [1, 1]} : vector<18x128xf32> to vector<16x128xf32>
    %762 = vector.broadcast %8 : vector<1x128xf32> to vector<16x128xf32>
    %763 = arith.mulf %761, %762 : vector<16x128xf32>
    %764 = arith.addf %755, %763 : vector<16x128xf32>
    %765 = vector.extract_strided_slice %760 {offsets = [1, 0], sizes = [16, 128], strides = [1, 1]} : vector<18x128xf32> to vector<16x128xf32>
    %766 = vector.broadcast %9 : vector<1x128xf32> to vector<16x128xf32>
    %767 = arith.mulf %765, %766 : vector<16x128xf32>
    %768 = arith.addf %764, %767 : vector<16x128xf32>
    %769 = vector.extract_strided_slice %760 {offsets = [2, 0], sizes = [16, 128], strides = [1, 1]} : vector<18x128xf32> to vector<16x128xf32>
    %770 = vector.broadcast %10 : vector<1x128xf32> to vector<16x128xf32>
    %771 = arith.mulf %769, %770 : vector<16x128xf32>
    %772 = arith.addf %768, %771 : vector<16x128xf32>
    %773 = vector.broadcast %11 : vector<1x128xf32> to vector<16x128xf32>
    %774 = arith.mulf %772, %773 : vector<16x128xf32>
    %775 = vector.broadcast %12 : vector<1x128xf32> to vector<16x128xf32>
    %776 = arith.addf %774, %775 : vector<16x128xf32>
    %cst_262 = arith.constant 0.000000e+00 : f32
    %777 = vector.broadcast %cst_262 : f32 to vector<16x128xf32>
    %778 = arith.maximumf %776, %777 : vector<16x128xf32>
    %c192 = arith.constant 192 : index
    %c0_263 = arith.constant 0 : index
    %779 = vector.load %arg8[%c192, %c0_263] : memref<256x128xf32, #tpu.memory_space<vmem>>, vector<16x128xf32>
    tpu.vector_store %arg8[%c192, %c0_263], %778 {strides = array<i32>} : memref<256x128xf32, #tpu.memory_space<vmem>>, vector<16x128xf32>,
    %cst_264 = arith.constant 0.000000e+00 : f32
    %780 = vector.broadcast %cst_264 : f32 to vector<16x128xf32>
    %c13_i32 = arith.constant 13 : i32
    %781 = arith.addi %0, %c13_i32 : i32
    %c0_i32_265 = arith.constant 0 : i32
    %782 = arith.addi %781, %c0_i32_265 : i32
    %c0_266 = arith.constant 0 : index
    %783 = arith.index_cast %782 : i32 to index
    %c0_267 = arith.constant 0 : index
    %c0_268 = arith.constant 0 : index
    %c0_269 = arith.constant 0 : index
    %784 = vector.load %arg2[%c0_266, %783, %c0_267, %c0_268, %c0_269] : memref<1x18x1x18x128xf32, #tpu.memory_space<vmem>>, vector<1x1x1x18x128xf32>
    %785 = vector.shape_cast %784 : vector<1x1x1x18x128xf32> to vector<18x128xf32>
    %786 = vector.extract_strided_slice %785 {offsets = [0, 0], sizes = [16, 128], strides = [1, 1]} : vector<18x128xf32> to vector<16x128xf32>
    %787 = vector.broadcast %2 : vector<1x128xf32> to vector<16x128xf32>
    %788 = arith.mulf %786, %787 : vector<16x128xf32>
    %789 = arith.addf %780, %788 : vector<16x128xf32>
    %790 = vector.extract_strided_slice %785 {offsets = [1, 0], sizes = [16, 128], strides = [1, 1]} : vector<18x128xf32> to vector<16x128xf32>
    %791 = vector.broadcast %3 : vector<1x128xf32> to vector<16x128xf32>
    %792 = arith.mulf %790, %791 : vector<16x128xf32>
    %793 = arith.addf %789, %792 : vector<16x128xf32>
    %794 = vector.extract_strided_slice %785 {offsets = [2, 0], sizes = [16, 128], strides = [1, 1]} : vector<18x128xf32> to vector<16x128xf32>
    %795 = vector.broadcast %4 : vector<1x128xf32> to vector<16x128xf32>
    %796 = arith.mulf %794, %795 : vector<16x128xf32>
    %797 = arith.addf %793, %796 : vector<16x128xf32>
    %c13_i32_270 = arith.constant 13 : i32
    %798 = arith.addi %0, %c13_i32_270 : i32
    %c1_i32_271 = arith.constant 1 : i32
    %799 = arith.addi %798, %c1_i32_271 : i32
    %c0_272 = arith.constant 0 : index
    %800 = arith.index_cast %799 : i32 to index
    %c0_273 = arith.constant 0 : index
    %c0_274 = arith.constant 0 : index
    %c0_275 = arith.constant 0 : index
    %801 = vector.load %arg2[%c0_272, %800, %c0_273, %c0_274, %c0_275] : memref<1x18x1x18x128xf32, #tpu.memory_space<vmem>>, vector<1x1x1x18x128xf32>
    %802 = vector.shape_cast %801 : vector<1x1x1x18x128xf32> to vector<18x128xf32>
    %803 = vector.extract_strided_slice %802 {offsets = [0, 0], sizes = [16, 128], strides = [1, 1]} : vector<18x128xf32> to vector<16x128xf32>
    %804 = vector.broadcast %5 : vector<1x128xf32> to vector<16x128xf32>
    %805 = arith.mulf %803, %804 : vector<16x128xf32>
    %806 = arith.addf %797, %805 : vector<16x128xf32>
    %807 = vector.extract_strided_slice %802 {offsets = [1, 0], sizes = [16, 128], strides = [1, 1]} : vector<18x128xf32> to vector<16x128xf32>
    %808 = vector.broadcast %6 : vector<1x128xf32> to vector<16x128xf32>
    %809 = arith.mulf %807, %808 : vector<16x128xf32>
    %810 = arith.addf %806, %809 : vector<16x128xf32>
    %811 = vector.extract_strided_slice %802 {offsets = [2, 0], sizes = [16, 128], strides = [1, 1]} : vector<18x128xf32> to vector<16x128xf32>
    %812 = vector.broadcast %7 : vector<1x128xf32> to vector<16x128xf32>
    %813 = arith.mulf %811, %812 : vector<16x128xf32>
    %814 = arith.addf %810, %813 : vector<16x128xf32>
    %c13_i32_276 = arith.constant 13 : i32
    %815 = arith.addi %0, %c13_i32_276 : i32
    %c2_i32_277 = arith.constant 2 : i32
    %816 = arith.addi %815, %c2_i32_277 : i32
    %c0_278 = arith.constant 0 : index
    %817 = arith.index_cast %816 : i32 to index
    %c0_279 = arith.constant 0 : index
    %c0_280 = arith.constant 0 : index
    %c0_281 = arith.constant 0 : index
    %818 = vector.load %arg2[%c0_278, %817, %c0_279, %c0_280, %c0_281] : memref<1x18x1x18x128xf32, #tpu.memory_space<vmem>>, vector<1x1x1x18x128xf32>
    %819 = vector.shape_cast %818 : vector<1x1x1x18x128xf32> to vector<18x128xf32>
    %820 = vector.extract_strided_slice %819 {offsets = [0, 0], sizes = [16, 128], strides = [1, 1]} : vector<18x128xf32> to vector<16x128xf32>
    %821 = vector.broadcast %8 : vector<1x128xf32> to vector<16x128xf32>
    %822 = arith.mulf %820, %821 : vector<16x128xf32>
    %823 = arith.addf %814, %822 : vector<16x128xf32>
    %824 = vector.extract_strided_slice %819 {offsets = [1, 0], sizes = [16, 128], strides = [1, 1]} : vector<18x128xf32> to vector<16x128xf32>
    %825 = vector.broadcast %9 : vector<1x128xf32> to vector<16x128xf32>
    %826 = arith.mulf %824, %825 : vector<16x128xf32>
    %827 = arith.addf %823, %826 : vector<16x128xf32>
    %828 = vector.extract_strided_slice %819 {offsets = [2, 0], sizes = [16, 128], strides = [1, 1]} : vector<18x128xf32> to vector<16x128xf32>
    %829 = vector.broadcast %10 : vector<1x128xf32> to vector<16x128xf32>
    %830 = arith.mulf %828, %829 : vector<16x128xf32>
    %831 = arith.addf %827, %830 : vector<16x128xf32>
    %832 = vector.broadcast %11 : vector<1x128xf32> to vector<16x128xf32>
    %833 = arith.mulf %831, %832 : vector<16x128xf32>
    %834 = vector.broadcast %12 : vector<1x128xf32> to vector<16x128xf32>
    %835 = arith.addf %833, %834 : vector<16x128xf32>
    %cst_282 = arith.constant 0.000000e+00 : f32
    %836 = vector.broadcast %cst_282 : f32 to vector<16x128xf32>
    %837 = arith.maximumf %835, %836 : vector<16x128xf32>
    %c208 = arith.constant 208 : index
    %c0_283 = arith.constant 0 : index
    %838 = vector.load %arg8[%c208, %c0_283] : memref<256x128xf32, #tpu.memory_space<vmem>>, vector<16x128xf32>
    tpu.vector_store %arg8[%c208, %c0_283], %837 {strides = array<i32>} : memref<256x128xf32, #tpu.memory_space<vmem>>, vector<16x128xf32>,
    %cst_284 = arith.constant 0.000000e+00 : f32
    %839 = vector.broadcast %cst_284 : f32 to vector<16x128xf32>
    %c14_i32 = arith.constant 14 : i32
    %840 = arith.addi %0, %c14_i32 : i32
    %c0_i32_285 = arith.constant 0 : i32
    %841 = arith.addi %840, %c0_i32_285 : i32
    %c0_286 = arith.constant 0 : index
    %842 = arith.index_cast %841 : i32 to index
    %c0_287 = arith.constant 0 : index
    %c0_288 = arith.constant 0 : index
    %c0_289 = arith.constant 0 : index
    %843 = vector.load %arg2[%c0_286, %842, %c0_287, %c0_288, %c0_289] : memref<1x18x1x18x128xf32, #tpu.memory_space<vmem>>, vector<1x1x1x18x128xf32>
    %844 = vector.shape_cast %843 : vector<1x1x1x18x128xf32> to vector<18x128xf32>
    %845 = vector.extract_strided_slice %844 {offsets = [0, 0], sizes = [16, 128], strides = [1, 1]} : vector<18x128xf32> to vector<16x128xf32>
    %846 = vector.broadcast %2 : vector<1x128xf32> to vector<16x128xf32>
    %847 = arith.mulf %845, %846 : vector<16x128xf32>
    %848 = arith.addf %839, %847 : vector<16x128xf32>
    %849 = vector.extract_strided_slice %844 {offsets = [1, 0], sizes = [16, 128], strides = [1, 1]} : vector<18x128xf32> to vector<16x128xf32>
    %850 = vector.broadcast %3 : vector<1x128xf32> to vector<16x128xf32>
    %851 = arith.mulf %849, %850 : vector<16x128xf32>
    %852 = arith.addf %848, %851 : vector<16x128xf32>
    %853 = vector.extract_strided_slice %844 {offsets = [2, 0], sizes = [16, 128], strides = [1, 1]} : vector<18x128xf32> to vector<16x128xf32>
    %854 = vector.broadcast %4 : vector<1x128xf32> to vector<16x128xf32>
    %855 = arith.mulf %853, %854 : vector<16x128xf32>
    %856 = arith.addf %852, %855 : vector<16x128xf32>
    %c14_i32_290 = arith.constant 14 : i32
    %857 = arith.addi %0, %c14_i32_290 : i32
    %c1_i32_291 = arith.constant 1 : i32
    %858 = arith.addi %857, %c1_i32_291 : i32
    %c0_292 = arith.constant 0 : index
    %859 = arith.index_cast %858 : i32 to index
    %c0_293 = arith.constant 0 : index
    %c0_294 = arith.constant 0 : index
    %c0_295 = arith.constant 0 : index
    %860 = vector.load %arg2[%c0_292, %859, %c0_293, %c0_294, %c0_295] : memref<1x18x1x18x128xf32, #tpu.memory_space<vmem>>, vector<1x1x1x18x128xf32>
    %861 = vector.shape_cast %860 : vector<1x1x1x18x128xf32> to vector<18x128xf32>
    %862 = vector.extract_strided_slice %861 {offsets = [0, 0], sizes = [16, 128], strides = [1, 1]} : vector<18x128xf32> to vector<16x128xf32>
    %863 = vector.broadcast %5 : vector<1x128xf32> to vector<16x128xf32>
    %864 = arith.mulf %862, %863 : vector<16x128xf32>
    %865 = arith.addf %856, %864 : vector<16x128xf32>
    %866 = vector.extract_strided_slice %861 {offsets = [1, 0], sizes = [16, 128], strides = [1, 1]} : vector<18x128xf32> to vector<16x128xf32>
    %867 = vector.broadcast %6 : vector<1x128xf32> to vector<16x128xf32>
    %868 = arith.mulf %866, %867 : vector<16x128xf32>
    %869 = arith.addf %865, %868 : vector<16x128xf32>
    %870 = vector.extract_strided_slice %861 {offsets = [2, 0], sizes = [16, 128], strides = [1, 1]} : vector<18x128xf32> to vector<16x128xf32>
    %871 = vector.broadcast %7 : vector<1x128xf32> to vector<16x128xf32>
    %872 = arith.mulf %870, %871 : vector<16x128xf32>
    %873 = arith.addf %869, %872 : vector<16x128xf32>
    %c14_i32_296 = arith.constant 14 : i32
    %874 = arith.addi %0, %c14_i32_296 : i32
    %c2_i32_297 = arith.constant 2 : i32
    %875 = arith.addi %874, %c2_i32_297 : i32
    %c0_298 = arith.constant 0 : index
    %876 = arith.index_cast %875 : i32 to index
    %c0_299 = arith.constant 0 : index
    %c0_300 = arith.constant 0 : index
    %c0_301 = arith.constant 0 : index
    %877 = vector.load %arg2[%c0_298, %876, %c0_299, %c0_300, %c0_301] : memref<1x18x1x18x128xf32, #tpu.memory_space<vmem>>, vector<1x1x1x18x128xf32>
    %878 = vector.shape_cast %877 : vector<1x1x1x18x128xf32> to vector<18x128xf32>
    %879 = vector.extract_strided_slice %878 {offsets = [0, 0], sizes = [16, 128], strides = [1, 1]} : vector<18x128xf32> to vector<16x128xf32>
    %880 = vector.broadcast %8 : vector<1x128xf32> to vector<16x128xf32>
    %881 = arith.mulf %879, %880 : vector<16x128xf32>
    %882 = arith.addf %873, %881 : vector<16x128xf32>
    %883 = vector.extract_strided_slice %878 {offsets = [1, 0], sizes = [16, 128], strides = [1, 1]} : vector<18x128xf32> to vector<16x128xf32>
    %884 = vector.broadcast %9 : vector<1x128xf32> to vector<16x128xf32>
    %885 = arith.mulf %883, %884 : vector<16x128xf32>
    %886 = arith.addf %882, %885 : vector<16x128xf32>
    %887 = vector.extract_strided_slice %878 {offsets = [2, 0], sizes = [16, 128], strides = [1, 1]} : vector<18x128xf32> to vector<16x128xf32>
    %888 = vector.broadcast %10 : vector<1x128xf32> to vector<16x128xf32>
    %889 = arith.mulf %887, %888 : vector<16x128xf32>
    %890 = arith.addf %886, %889 : vector<16x128xf32>
    %891 = vector.broadcast %11 : vector<1x128xf32> to vector<16x128xf32>
    %892 = arith.mulf %890, %891 : vector<16x128xf32>
    %893 = vector.broadcast %12 : vector<1x128xf32> to vector<16x128xf32>
    %894 = arith.addf %892, %893 : vector<16x128xf32>
    %cst_302 = arith.constant 0.000000e+00 : f32
    %895 = vector.broadcast %cst_302 : f32 to vector<16x128xf32>
    %896 = arith.maximumf %894, %895 : vector<16x128xf32>
    %c224 = arith.constant 224 : index
    %c0_303 = arith.constant 0 : index
    %897 = vector.load %arg8[%c224, %c0_303] : memref<256x128xf32, #tpu.memory_space<vmem>>, vector<16x128xf32>
    tpu.vector_store %arg8[%c224, %c0_303], %896 {strides = array<i32>} : memref<256x128xf32, #tpu.memory_space<vmem>>, vector<16x128xf32>,
    %cst_304 = arith.constant 0.000000e+00 : f32
    %898 = vector.broadcast %cst_304 : f32 to vector<16x128xf32>
    %c15_i32 = arith.constant 15 : i32
    %899 = arith.addi %0, %c15_i32 : i32
    %c0_i32_305 = arith.constant 0 : i32
    %900 = arith.addi %899, %c0_i32_305 : i32
    %c0_306 = arith.constant 0 : index
    %901 = arith.index_cast %900 : i32 to index
    %c0_307 = arith.constant 0 : index
    %c0_308 = arith.constant 0 : index
    %c0_309 = arith.constant 0 : index
    %902 = vector.load %arg2[%c0_306, %901, %c0_307, %c0_308, %c0_309] : memref<1x18x1x18x128xf32, #tpu.memory_space<vmem>>, vector<1x1x1x18x128xf32>
    %903 = vector.shape_cast %902 : vector<1x1x1x18x128xf32> to vector<18x128xf32>
    %904 = vector.extract_strided_slice %903 {offsets = [0, 0], sizes = [16, 128], strides = [1, 1]} : vector<18x128xf32> to vector<16x128xf32>
    %905 = vector.broadcast %2 : vector<1x128xf32> to vector<16x128xf32>
    %906 = arith.mulf %904, %905 : vector<16x128xf32>
    %907 = arith.addf %898, %906 : vector<16x128xf32>
    %908 = vector.extract_strided_slice %903 {offsets = [1, 0], sizes = [16, 128], strides = [1, 1]} : vector<18x128xf32> to vector<16x128xf32>
    %909 = vector.broadcast %3 : vector<1x128xf32> to vector<16x128xf32>
    %910 = arith.mulf %908, %909 : vector<16x128xf32>
    %911 = arith.addf %907, %910 : vector<16x128xf32>
    %912 = vector.extract_strided_slice %903 {offsets = [2, 0], sizes = [16, 128], strides = [1, 1]} : vector<18x128xf32> to vector<16x128xf32>
    %913 = vector.broadcast %4 : vector<1x128xf32> to vector<16x128xf32>
    %914 = arith.mulf %912, %913 : vector<16x128xf32>
    %915 = arith.addf %911, %914 : vector<16x128xf32>
    %c15_i32_310 = arith.constant 15 : i32
    %916 = arith.addi %0, %c15_i32_310 : i32
    %c1_i32_311 = arith.constant 1 : i32
    %917 = arith.addi %916, %c1_i32_311 : i32
    %c0_312 = arith.constant 0 : index
    %918 = arith.index_cast %917 : i32 to index
    %c0_313 = arith.constant 0 : index
    %c0_314 = arith.constant 0 : index
    %c0_315 = arith.constant 0 : index
    %919 = vector.load %arg2[%c0_312, %918, %c0_313, %c0_314, %c0_315] : memref<1x18x1x18x128xf32, #tpu.memory_space<vmem>>, vector<1x1x1x18x128xf32>
    %920 = vector.shape_cast %919 : vector<1x1x1x18x128xf32> to vector<18x128xf32>
    %921 = vector.extract_strided_slice %920 {offsets = [0, 0], sizes = [16, 128], strides = [1, 1]} : vector<18x128xf32> to vector<16x128xf32>
    %922 = vector.broadcast %5 : vector<1x128xf32> to vector<16x128xf32>
    %923 = arith.mulf %921, %922 : vector<16x128xf32>
    %924 = arith.addf %915, %923 : vector<16x128xf32>
    %925 = vector.extract_strided_slice %920 {offsets = [1, 0], sizes = [16, 128], strides = [1, 1]} : vector<18x128xf32> to vector<16x128xf32>
    %926 = vector.broadcast %6 : vector<1x128xf32> to vector<16x128xf32>
    %927 = arith.mulf %925, %926 : vector<16x128xf32>
    %928 = arith.addf %924, %927 : vector<16x128xf32>
    %929 = vector.extract_strided_slice %920 {offsets = [2, 0], sizes = [16, 128], strides = [1, 1]} : vector<18x128xf32> to vector<16x128xf32>
    %930 = vector.broadcast %7 : vector<1x128xf32> to vector<16x128xf32>
    %931 = arith.mulf %929, %930 : vector<16x128xf32>
    %932 = arith.addf %928, %931 : vector<16x128xf32>
    %c15_i32_316 = arith.constant 15 : i32
    %933 = arith.addi %0, %c15_i32_316 : i32
    %c2_i32_317 = arith.constant 2 : i32
    %934 = arith.addi %933, %c2_i32_317 : i32
    %c0_318 = arith.constant 0 : index
    %935 = arith.index_cast %934 : i32 to index
    %c0_319 = arith.constant 0 : index
    %c0_320 = arith.constant 0 : index
    %c0_321 = arith.constant 0 : index
    %936 = vector.load %arg2[%c0_318, %935, %c0_319, %c0_320, %c0_321] : memref<1x18x1x18x128xf32, #tpu.memory_space<vmem>>, vector<1x1x1x18x128xf32>
    %937 = vector.shape_cast %936 : vector<1x1x1x18x128xf32> to vector<18x128xf32>
    %938 = vector.extract_strided_slice %937 {offsets = [0, 0], sizes = [16, 128], strides = [1, 1]} : vector<18x128xf32> to vector<16x128xf32>
    %939 = vector.broadcast %8 : vector<1x128xf32> to vector<16x128xf32>
    %940 = arith.mulf %938, %939 : vector<16x128xf32>
    %941 = arith.addf %932, %940 : vector<16x128xf32>
    %942 = vector.extract_strided_slice %937 {offsets = [1, 0], sizes = [16, 128], strides = [1, 1]} : vector<18x128xf32> to vector<16x128xf32>
    %943 = vector.broadcast %9 : vector<1x128xf32> to vector<16x128xf32>
    %944 = arith.mulf %942, %943 : vector<16x128xf32>
    %945 = arith.addf %941, %944 : vector<16x128xf32>
    %946 = vector.extract_strided_slice %937 {offsets = [2, 0], sizes = [16, 128], strides = [1, 1]} : vector<18x128xf32> to vector<16x128xf32>
    %947 = vector.broadcast %10 : vector<1x128xf32> to vector<16x128xf32>
    %948 = arith.mulf %946, %947 : vector<16x128xf32>
    %949 = arith.addf %945, %948 : vector<16x128xf32>
    %950 = vector.broadcast %11 : vector<1x128xf32> to vector<16x128xf32>
    %951 = arith.mulf %949, %950 : vector<16x128xf32>
    %952 = vector.broadcast %12 : vector<1x128xf32> to vector<16x128xf32>
    %953 = arith.addf %951, %952 : vector<16x128xf32>
    %cst_322 = arith.constant 0.000000e+00 : f32
    %954 = vector.broadcast %cst_322 : f32 to vector<16x128xf32>
    %955 = arith.maximumf %953, %954 : vector<16x128xf32>
    %c240 = arith.constant 240 : index
    %c0_323 = arith.constant 0 : index
    %956 = vector.load %arg8[%c240, %c0_323] : memref<256x128xf32, #tpu.memory_space<vmem>>, vector<16x128xf32>
    tpu.vector_store %arg8[%c240, %c0_323], %955 {strides = array<i32>} : memref<256x128xf32, #tpu.memory_space<vmem>>, vector<16x128xf32>,
    %c0_324 = arith.constant 0 : index
    %c0_325 = arith.constant 0 : index
    %957 = vector.load %arg8[%c0_324, %c0_325] : memref<256x128xf32, #tpu.memory_space<vmem>>, vector<256x128xf32>
    %c0_326 = arith.constant 0 : index
    %c0_327 = arith.constant 0 : index
    %958 = vector.load %arg5[%c0_326, %c0_327] : memref<128x128xf32, #tpu.memory_space<vmem>>, vector<128x128xf32>
    %cst_328 = arith.constant dense<0.000000e+00> : vector<256x128xf32>
    %959 = tpu.matmul %957, %958, %cst_328 {dimension_numbers = #tpu.dot_dimension_numbers<[1], [0], [0], [1], [0, 0, 1, 1], [], []>} : vector<256x128xf32>, vector<128x128xf32>, vector<256x128xf32> -> vector<256x128xf32>
    %c0_329 = arith.constant 0 : index
    %c0_330 = arith.constant 0 : index
    %960 = vector.load %arg6[%c0_329, %c0_330] : memref<2x128xf32, #tpu.memory_space<vmem>>, vector<1x128xf32>
    %c1_331 = arith.constant 1 : index
    %c0_332 = arith.constant 0 : index
    %961 = vector.load %arg6[%c1_331, %c0_332] : memref<2x128xf32, #tpu.memory_space<vmem>>, vector<1x128xf32>
    %962 = vector.broadcast %960 : vector<1x128xf32> to vector<256x128xf32>
    %963 = arith.mulf %959, %962 : vector<256x128xf32>
    %964 = vector.broadcast %961 : vector<1x128xf32> to vector<256x128xf32>
    %965 = arith.addf %963, %964 : vector<256x128xf32>
    %cst_333 = arith.constant 0.000000e+00 : f32
    %966 = vector.broadcast %cst_333 : f32 to vector<256x128xf32>
    %967 = arith.maximumf %965, %966 : vector<256x128xf32>
    %c0_334 = arith.constant 0 : index
    %c0_335 = arith.constant 0 : index
    %c0_336 = arith.constant 0 : index
    %968 = vector.load %arg7[%c0_334, %c0_335, %c0_336] : memref<1x256x128xf32, #tpu.memory_space<vmem>>, vector<1x256x128xf32>
    %969 = vector.shape_cast %968 : vector<1x256x128xf32> to vector<256x128xf32>
    %970 = vector.shape_cast %967 : vector<256x128xf32> to vector<1x256x128xf32>
    tpu.vector_store %arg7[%c0_334, %c0_335, %c0_336], %970 {strides = array<i32>} : memref<1x256x128xf32, #tpu.memory_space<vmem>>, vector<1x256x128xf32>,
    return
  }
  func.func @transform_0(%arg0: i32, %arg1: i32) -> (i32, i32, i32, i32, i32) {
    %c0_i32 = arith.constant 0 : i32
    %c0_i32_0 = arith.constant 0 : i32
    %c0_i32_1 = arith.constant 0 : i32
    %c0_i32_2 = arith.constant 0 : i32
    %c0_i32_3 = arith.constant 0 : i32
    return %arg0, %c0_i32, %c0_i32_0, %c0_i32_1, %c0_i32_2 : i32, i32, i32, i32, i32
  }
  func.func @transform_1(%arg0: i32, %arg1: i32) -> (i32, i32) {
    %c0_i32 = arith.constant 0 : i32
    %c0_i32_0 = arith.constant 0 : i32
    %c0_i32_1 = arith.constant 0 : i32
    return %c0_i32, %c0_i32_0 : i32, i32
  }
  func.func @transform_2(%arg0: i32, %arg1: i32) -> (i32, i32) {
    %c0_i32 = arith.constant 0 : i32
    %c0_i32_0 = arith.constant 0 : i32
    %c0_i32_1 = arith.constant 0 : i32
    return %c0_i32, %c0_i32_0 : i32, i32
  }
  func.func @transform_3(%arg0: i32, %arg1: i32) -> (i32, i32) {
    %c0_i32 = arith.constant 0 : i32
    %c0_i32_0 = arith.constant 0 : i32
    %c0_i32_1 = arith.constant 0 : i32
    return %c0_i32, %c0_i32_0 : i32, i32
  }
  func.func @transform_4(%arg0: i32, %arg1: i32) -> (i32, i32) {
    %c0_i32 = arith.constant 0 : i32
    %c0_i32_0 = arith.constant 0 : i32
    %c0_i32_1 = arith.constant 0 : i32
    return %c0_i32, %c0_i32_0 : i32, i32
  }
  func.func @transform_5(%arg0: i32, %arg1: i32) -> (i32, i32, i32) {
    %c0_i32 = arith.constant 0 : i32
    %c0_i32_0 = arith.constant 0 : i32
    return %arg0, %arg1, %c0_i32 : i32, i32, i32
  }
}

</mosaic_0001>

<llo_original>
// kernel: depthwise_block_forward.1
$region0: #{depthwise_block_forward.1}
  #allocation0 [shape = 'u32[]', space=smem, size = 0x4, offset = 0x4, fixed_abs, tag = 'smem constant byte address 0x4 - core index']
  #allocation1 [shape = 'u32[144,128]{1,0:T(1,128)}', space=vmem, size = 0x12000, scoped, tag = 'internal scratch']
  #allocation2 [shape = 'f32[256,128]{1,0:T(8,128)}', space=vmem, size = 0x20000, scoped, tag = 'scratch operand']
  %s0 = inlined_call_operand.vmem [shape: f32[2,18,1,18,128], index: 0, kind: input, shape index: {}]
  %s1 = inlined_call_operand.vmem [shape: f32[9,128], index: 1, kind: input, shape index: {}]
  %s2 = inlined_call_operand.vmem [shape: f32[2,128], index: 2, kind: input, shape index: {}]
  %s3 = inlined_call_operand.vmem [shape: f32[128,128], index: 3, kind: input, shape index: {}]
  %s4 = inlined_call_operand.vmem [shape: f32[2,128], index: 4, kind: input, shape index: {}]
  %s5 = inlined_call_operand.vmem [shape: f32[2,256,128], index: 5, kind: output, shape index: {}]
  %s6 = sld [smem:[#allocation0]]
  $region53: #{depthwise_block_forward.1} parent=0
    _
  %s8 = ssub.s32 1, %s6
  %s9 = scalar_select 0, %s8, %s6
  loop: start=0, step=1, limit=4
  $region2: #{depthwise_block_forward.1} parent=0 // loop_pre_header
    _
  $region3: #{depthwise_block_forward.1} parent=0 // loop_header
    %s11 = sphi 0, %s15
    %p12 = scmp.ge.s32.totalorder %s11, 4
    %s18 = sphi 0, %s30
    %s19 = sphi 0, %s26
    %s20 = sphi 0, %s18
    %s21 = sphi 0, %s19
    %s22 = sphi 0, %s20
    %s23 = sphi 0, %s21
    %s33 = sphi 0, %s35
    %s36 = sphi 0, %s33
    %s37 = sphi 0, %s36
    %s53 = sphi 0, %s37
    %s57 = sphi 0, %s57
    %s59 = sphi 0, %s57
    %s60 = sphi 0, %s59
    %s74 = sphi 0, %s60
    %s78 = sphi 0, %s78
    %s80 = sphi 0, %s78
    %s81 = sphi 0, %s80
    %s95 = sphi 0, %s81
    %s99 = sphi 0, %s99
    %s101 = sphi 0, %s99
    %s102 = sphi 0, %s101
    %s116 = sphi 0, %s102
    %s120 = sphi 0, %s120
    %s122 = sphi 0, %s120
    %s123 = sphi 0, %s122
    %s137 = sphi 0, %s123
    %s145 = sphi 0, %s147
    %s148 = sphi 0, %s145
    %s149 = sphi 0, %s148
    %s165 = sphi 0, %s149
  $region4: #{depthwise_block_forward.1} parent=0 // loop_header_branch
    %14 = sbr.rel (%p12) target = $region8
  $region5: #{depthwise_block_forward.1} parent=0 // loop_body
    %s16 = ssub.s32 %s11, 1
    %s17 = ssub.s32 %s11, 2
    %s24 = sadd.s32 1, %s19
    %p25 = scmp.ge.s32.totalorder %s24, 1
    %s26 = scalar_select %p25, 0, %s24
    %s27 = sadd.s32 1, %s18
    %s28 = scalar_select %p25, %s27, %s18
    %p29 = scmp.ge.s32.totalorder %s28, 2
    %s30 = scalar_select %p29, 0, %s28
    %s31 = ssub.s32 %s18, %s30
    %p32 = scmp.eq.s32.totalorder %s31, 0
    %s34 = sadd.s32 %s33, 1
    %s35 = scalar_select %p32, %s33, %s34
    %p38 = pneg %p32
    %p39 = scmp.eq.s32.totalorder %s11, 1
    %p40 = por %p38, %p39
    %p41 = scmp.ne.s32.totalorder %s33, %s36
    %p42 = scmp.eq.s32.totalorder %s11, 0
    %p43 = por %p41, %p42
    %p44 = scmp.ne.s32.totalorder %s33, %s36
    %p45 = scmp.eq.s32.totalorder %s16, 1
    %p46 = por %p44, %p45
    %p47 = scmp.ne.s32.totalorder %s36, %s37
    %p48 = scmp.eq.s32.totalorder %s16, 0
    %p49 = por %p47, %p48
    %p50 = scmp.ne.s32.totalorder %s36, %s37
    %p51 = scmp.eq.s32.totalorder %s17, 1
    %p52 = por %p50, %p51
    %p54 = scmp.ne.s32.totalorder %s37, %s53
    %p55 = scmp.eq.s32.totalorder %s17, 0
    %p56 = por %p54, %p55
    %s58 = sadd.s32 %s57, 1
    %p61 = scmp.eq.s32.totalorder %s11, 1
    %p62 = scmp.ne.s32.totalorder %s57, %s59
    %p63 = scmp.eq.s32.totalorder %s11, 0
    %p64 = por %p62, %p63
    %p65 = scmp.ne.s32.totalorder %s57, %s59
    %p66 = scmp.eq.s32.totalorder %s16, 1
    %p67 = por %p65, %p66
    %p68 = scmp.ne.s32.totalorder %s59, %s60
    %p69 = scmp.eq.s32.totalorder %s16, 0
    %p70 = por %p68, %p69
    %p71 = scmp.ne.s32.totalorder %s59, %s60
    %p72 = scmp.eq.s32.totalorder %s17, 1
    %p73 = por %p71, %p72
    %p75 = scmp.ne.s32.totalorder %s60, %s74
    %p76 = scmp.eq.s32.totalorder %s17, 0
    %p77 = por %p75, %p76
    %s79 = sadd.s32 %s78, 1
    %p82 = scmp.eq.s32.totalorder %s11, 1
    %p83 = scmp.ne.s32.totalorder %s78, %s80
    %p84 = scmp.eq.s32.totalorder %s11, 0
    %p85 = por %p83, %p84
    %p86 = scmp.ne.s32.totalorder %s78, %s80
    %p87 = scmp.eq.s32.totalorder %s16, 1
    %p88 = por %p86, %p87
    %p89 = scmp.ne.s32.totalorder %s80, %s81
    %p90 = scmp.eq.s32.totalorder %s16, 0
    %p91 = por %p89, %p90
    %p92 = scmp.ne.s32.totalorder %s80, %s81
    %p93 = scmp.eq.s32.totalorder %s17, 1
    %p94 = por %p92, %p93
    %p96 = scmp.ne.s32.totalorder %s81, %s95
    %p97 = scmp.eq.s32.totalorder %s17, 0
    %p98 = por %p96, %p97
    %s100 = sadd.s32 %s99, 1
    %p103 = scmp.eq.s32.totalorder %s11, 1
    %p104 = scmp.ne.s32.totalorder %s99, %s101
    %p105 = scmp.eq.s32.totalorder %s11, 0
    %p106 = por %p104, %p105
    %p107 = scmp.ne.s32.totalorder %s99, %s101
    %p108 = scmp.eq.s32.totalorder %s16, 1
    %p109 = por %p107, %p108
    %p110 = scmp.ne.s32.totalorder %s101, %s102
    %p111 = scmp.eq.s32.totalorder %s16, 0
    %p112 = por %p110, %p111
    %p113 = scmp.ne.s32.totalorder %s101, %s102
    %p114 = scmp.eq.s32.totalorder %s17, 1
    %p115 = por %p113, %p114
    %p117 = scmp.ne.s32.totalorder %s102, %s116
    %p118 = scmp.eq.s32.totalorder %s17, 0
    %p119 = por %p117, %p118
    %s121 = sadd.s32 %s120, 1
    %p124 = scmp.eq.s32.totalorder %s11, 1
    %p125 = scmp.ne.s32.totalorder %s120, %s122
    %p126 = scmp.eq.s32.totalorder %s11, 0
    %p127 = por %p125, %p126
    %p128 = scmp.ne.s32.totalorder %s120, %s122
    %p129 = scmp.eq.s32.totalorder %s16, 1
    %p130 = por %p128, %p129
    %p131 = scmp.ne.s32.totalorder %s122, %s123
    %p132 = scmp.eq.s32.totalorder %s16, 0
    %p133 = por %p131, %p132
    %p134 = scmp.ne.s32.totalorder %s122, %s123
    %p135 = scmp.eq.s32.totalorder %s17, 1
    %p136 = por %p134, %p135
    %p138 = scmp.ne.s32.totalorder %s123, %s137
    %p139 = scmp.eq.s32.totalorder %s17, 0
    %p140 = por %p138, %p139
    %s141 = ssub.s32 %s18, %s30
    %s142 = ssub.s32 %s19, %s26
    %s143 = sor.u32 %s141, %s142
    %p144 = scmp.eq.s32.totalorder %s143, 0
    %s146 = sadd.s32 %s145, 1
    %s147 = scalar_select %p144, %s145, %s146
    %p150 = pneg %p144
    %p151 = scmp.eq.s32.totalorder %s11, 1
    %p152 = por %p150, %p151
    %p153 = scmp.ne.s32.totalorder %s145, %s148
    %p154 = scmp.eq.s32.totalorder %s11, 0
    %p155 = por %p153, %p154
    %p156 = scmp.ne.s32.totalorder %s145, %s148
    %p157 = scmp.eq.s32.totalorder %s16, 1
    %p158 = por %p156, %p157
    %p159 = scmp.ne.s32.totalorder %s148, %s149
    %p160 = scmp.eq.s32.totalorder %s16, 0
    %p161 = por %p159, %p160
    %p162 = scmp.ne.s32.totalorder %s148, %s149
    %p163 = scmp.eq.s32.totalorder %s17, 1
    %p164 = por %p162, %p163
    %p166 = scmp.ne.s32.totalorder %s149, %s165
    %p167 = scmp.eq.s32.totalorder %s17, 0
    %p168 = por %p166, %p167
    %p169 = scmp.le.s32.totalorder 1, %s11
    %p170 = scmp.lt.s32.totalorder %s11, 3
    %p171 = pnand %p169, %p170
    %p172 = pneg %p171
    // Predicated region
    $region9: #{depthwise_block_forward.1} parent=5 // pred_check
      _
    $region10: #{depthwise_block_forward.1} parent=5 // pred_check_branch
      %174 = sbr.rel (%p171) target = $region12
    $region11: #{depthwise_block_forward.1} parent=5 // pred_region
      %s175 = ssub.s32 %s11, 1
      // Predicated region
      $region13: #{depthwise_block_forward.1} parent=11 // pred_check
        %p176 = pneg %p70
      $region14: #{depthwise_block_forward.1} parent=11 // pred_check_branch
        %178 = sbr.rel (%p176) target = $region16
      $region15: #{depthwise_block_forward.1} parent=11 // pred_region
        _
      $region16: #{depthwise_block_forward.1} parent=11 // pred_fallthru
        _
      // Predicated region
      $region17: #{depthwise_block_forward.1} parent=11 // pred_check
        %p179 = pneg %p91
      $region18: #{depthwise_block_forward.1} parent=11 // pred_check_branch
        %181 = sbr.rel (%p179) target = $region20
      $region19: #{depthwise_block_forward.1} parent=11 // pred_region
        _
      $region20: #{depthwise_block_forward.1} parent=11 // pred_fallthru
        _
      // Predicated region
      $region21: #{depthwise_block_forward.1} parent=11 // pred_check
        %p182 = pneg %p112
      $region22: #{depthwise_block_forward.1} parent=11 // pred_check_branch
        %184 = sbr.rel (%p182) target = $region24
      $region23: #{depthwise_block_forward.1} parent=11 // pred_region
        _
      $region24: #{depthwise_block_forward.1} parent=11 // pred_fallthru
        _
      // Predicated region
      $region25: #{depthwise_block_forward.1} parent=11 // pred_check
        %p185 = pneg %p133
      $region26: #{depthwise_block_forward.1} parent=11 // pred_check_branch
        %187 = sbr.rel (%p185) target = $region28
      $region27: #{depthwise_block_forward.1} parent=11 // pred_region
        _
      $region28: #{depthwise_block_forward.1} parent=11 // pred_fallthru
        _
    $region12: #{depthwise_block_forward.1} parent=5 // pred_fallthru
      _
    %p188 = scmp.lt.s32.totalorder %s11, 2
    // Predicated region
    $region29: #{depthwise_block_forward.1} parent=5 // pred_check
      %p189 = pneg %p188
    $region30: #{depthwise_block_forward.1} parent=5 // pred_check_branch
      %191 = sbr.rel (%p189) target = $region32
    $region31: #{depthwise_block_forward.1} parent=5 // pred_region
      // Predicated region
      $region33: #{depthwise_block_forward.1} parent=31 // pred_check
        %p192 = pneg %p43
      $region34: #{depthwise_block_forward.1} parent=31 // pred_check_branch
        %194 = sbr.rel (%p192) target = $region36
      $region35: #{depthwise_block_forward.1} parent=31 // pred_region
        %p195 = scmp.lt.s32.totalorder %s18, 1
        %s196 = scalar_select %p195, %s18, 1
        %s197 = smul.addr %s196, 54
        %s198 = smul.addr %s197, 8
        %s199 = scalar_lea.vmem %s0, %s198
      $region36: #{depthwise_block_forward.1} parent=31 // pred_fallthru
        _
    $region32: #{depthwise_block_forward.1} parent=5 // pred_fallthru
      _
    %p200 = scmp.le.s32.totalorder 1, %s11
    %p201 = scmp.lt.s32.totalorder %s11, 3
    %p202 = pnand %p200, %p201
    %p203 = pneg %p202
    // Predicated region
    $region37: #{depthwise_block_forward.1} parent=5 // pred_check
      _
    $region38: #{depthwise_block_forward.1} parent=5 // pred_check_branch
      %205 = sbr.rel (%p202) target = $region40
    $region39: #{depthwise_block_forward.1} parent=5 // pred_region
      %s206 = ssub.s32 %s11, 1
      %p207 = scmp.lt.s32.totalorder %s20, 1
      %s208 = scalar_select %p207, %s20, 1
      %s209 = smul.addr %s208, 54
      %s210 = smul.addr %s209, 8
      %s211 = scalar_lea.vmem %s0, %s210
      %p212 = pneg %p49
      %p213 = pneg %p46
      %p214 = pneg %p70
      %p215 = pneg %p67
      %p216 = pneg %p91
      %p217 = pneg %p88
      %p218 = pneg %p112
      %p219 = pneg %p109
      %p220 = pneg %p133
      %p221 = pneg %p130
      %p222 = pneg %p161
      %p223 = pneg %p158
      %s224 = smul.u32 32, %s21
      %p225 = scmp.lt.s32.totalorder %s20, 1
      %s226 = scalar_select %p225, %s20, 1
      %p227 = scmp.lt.s32.totalorder %s224, 31
      %s228 = scalar_select %p227, %s224, 31
      %s229 = smul.addr %s226, 32
      %s230 = sadd.s32 %s228, %s229
      %s231 = smul.addr %s230, 8
      %s232 = scalar_lea.vmem %s5, %s231
      %p233 = scmp.lt.s32.totalorder %s20, 1
      %s234 = scalar_select %p233, %s20, 1
      %s235 = smul.addr %s234, 54
      %s236 = smul.addr %s235, 8
      %s237 = scalar_lea.vmem %s0, %s236
      %s238 = smul.u32 32, %s21
      %p239 = scmp.lt.s32.totalorder %s20, 1
      %s240 = scalar_select %p239, %s20, 1
      %p241 = scmp.lt.s32.totalorder %s238, 31
      %s242 = scalar_select %p241, %s238, 31
      %s243 = smul.addr %s240, 32
      %s244 = sadd.s32 %s242, %s243
      %s245 = smul.addr %s244, 8
      %s246 = scalar_lea.vmem %s5, %s245
      %s247 = smul.u32 32, %s21
      %s248 = smul.u32 %s21, 16
      %v249 = vld [vmem:[%s1] sm:$0xff]
      %v250 = vld [vmem:[%s1 + $0x8] sm:$0x1]
      %v251 = vld [vmem:[%s2] sm:$0x1]
      %v252 = vld [vmem:[%s2 + $0x1] sm:$0x1]
      %s253 = smul.u32 %s248, 24
      %s254 = scalar_lea.vmem %s237, %s253
      %v255 = vld [vmem:[%s254] sm:$0xff]
      %v256 = vld [vmem:[%s254 + $0x8] sm:$0xff]
      %v257 = vld [vmem:[%s254 + $0x10] sm:$0x3]
      %v258 = vlaneseq
      %v259 = vshrl.u32 %v258, 7
      %v260 = vsub.s32 0, %v259
      %v261 = vrot.slane %v249, %v260
      %v262 = vmul.f32 %v255, %v261
      %v263 = vmul.f32 %v256, %v261
      %v264 = vadd.f32 %v262, 0.0
      %v265 = vadd.f32 %v263, 0.0
      %v266 = vlaneseq
      %v267 = vshrl.u32 %v266, 7
      %v268 = vsub.s32 1, %v267
      %v269 = vrot.slane %v249, %v268
      %v270 = vmul.f32 %v255, %v269
      %v271 = vmul.f32 %v256, %v269
      %v272 = vmul.f32 %v257, %v269
      %vm276 = vcmask 1046528
      %v277 = vrot.slane %v270, 1
      %v278 = vrot.slane %v271, 1
      %v279 = vsel %vm276, %v277, %v278
      %v280 = vrot.slane %v272, 1
      %v281 = vsel %vm276, %v278, %v280
      %v284 = vadd.f32 %v264, %v279
      %v285 = vadd.f32 %v265, %v281
      %v286 = vlaneseq
      %v287 = vshrl.u32 %v286, 7
      %v288 = vsub.s32 2, %v287
      %v289 = vrot.slane %v249, %v288
      %v290 = vmul.f32 %v255, %v289
      %v291 = vmul.f32 %v256, %v289
      %v292 = vmul.f32 %v257, %v289
      %vm296 = vcmask 1045504
      %v297 = vrot.slane %v290, 2
      %v298 = vrot.slane %v291, 2
      %v299 = vsel %vm296, %v297, %v298
      %v300 = vrot.slane %v292, 2
      %v301 = vsel %vm296, %v298, %v300
      %v304 = vadd.f32 %v284, %v299
      %v305 = vadd.f32 %v285, %v301
      %s306 = sadd.s32 %s248, 1
      %s307 = smul.u32 %s306, 24
      %s308 = scalar_lea.vmem %s237, %s307
      %v309 = vld [vmem:[%s308] sm:$0xff]
      %v310 = vld [vmem:[%s308 + $0x8] sm:$0xff]
      %v311 = vld [vmem:[%s308 + $0x10] sm:$0x3]
      %v312 = vlaneseq
      %v313 = vshrl.u32 %v312, 7
      %v314 = vsub.s32 3, %v313
      %v315 = vrot.slane %v249, %v314
      %v316 = vmul.f32 %v309, %v315
      %v317 = vmul.f32 %v310, %v315
      %v318 = vadd.f32 %v304, %v316
      %v319 = vadd.f32 %v305, %v317
      %v320 = vlaneseq
      %v321 = vshrl.u32 %v320, 7
      %v322 = vsub.s32 4, %v321
      %v323 = vrot.slane %v249, %v322
      %v324 = vmul.f32 %v309, %v323
      %v325 = vmul.f32 %v310, %v323
      %v326 = vmul.f32 %v311, %v323
      %v330 = vrot.slane %v324, 1
      %v331 = vrot.slane %v325, 1
      %v332 = vsel %vm276, %v330, %v331
      %v333 = vrot.slane %v326, 1
      %v334 = vsel %vm276, %v331, %v333
      %v337 = vadd.f32 %v318, %v332
      %v338 = vadd.f32 %v319, %v334
      %v339 = vlaneseq
      %v340 = vshrl.u32 %v339, 7
      %v341 = vsub.s32 5, %v340
      %v342 = vrot.slane %v249, %v341
      %v343 = vmul.f32 %v309, %v342
      %v344 = vmul.f32 %v310, %v342
      %v345 = vmul.f32 %v311, %v342
      %v349 = vrot.slane %v343, 2
      %v350 = vrot.slane %v344, 2
      %v351 = vsel %vm296, %v349, %v350
      %v352 = vrot.slane %v345, 2
      %v353 = vsel %vm296, %v350, %v352
      %v356 = vadd.f32 %v337, %v351
      %v357 = vadd.f32 %v338, %v353
      %s358 = sadd.s32 %s248, 2
      %s359 = smul.u32 %s358, 24
      %s360 = scalar_lea.vmem %s237, %s359
      %v361 = vld [vmem:[%s360] sm:$0xff]
      %v362 = vld [vmem:[%s360 + $0x8] sm:$0xff]
      %v363 = vld [vmem:[%s360 + $0x10] sm:$0x3]
      %v364 = vlaneseq
      %v365 = vshrl.u32 %v364, 7
      %v366 = vsub.s32 6, %v365
      %v367 = vrot.slane %v249, %v366
      %v368 = vmul.f32 %v361, %v367
      %v369 = vmul.f32 %v362, %v367
      %v370 = vadd.f32 %v356, %v368
      %v371 = vadd.f32 %v357, %v369
      %v372 = vlaneseq
      %v373 = vshrl.u32 %v372, 7
      %v374 = vsub.s32 7, %v373
      %v375 = vrot.slane %v249, %v374
      %v376 = vmul.f32 %v361, %v375
      %v377 = vmul.f32 %v362, %v375
      %v378 = vmul.f32 %v363, %v375
      %v382 = vrot.slane %v376, 1
      %v383 = vrot.slane %v377, 1
      %v384 = vsel %vm276, %v382, %v383
      %v385 = vrot.slane %v378, 1
      %v386 = vsel %vm276, %v383, %v385
      %v389 = vadd.f32 %v370, %v384
      %v390 = vadd.f32 %v371, %v386
      %v391 = vlaneseq
      %v392 = vshrl.u32 %v391, 7
      %v393 = vsub.s32 0, %v392
      %v394 = vrot.slane %v250, %v393
      %v395 = vmul.f32 %v361, %v394
      %v396 = vmul.f32 %v362, %v394
      %v397 = vmul.f32 %v363, %v394
      %v401 = vrot.slane %v395, 2
      %v402 = vrot.slane %v396, 2
      %v403 = vsel %vm296, %v401, %v402
      %v404 = vrot.slane %v397, 2
      %v405 = vsel %vm296, %v402, %v404
      %v408 = vadd.f32 %v389, %v403
      %v409 = vadd.f32 %v390, %v405
      %v410 = vlaneseq
      %v411 = vshrl.u32 %v410, 7
      %v412 = vsub.s32 0, %v411
      %v413 = vrot.slane %v251, %v412
      %v414 = vmul.f32 %v408, %v413
      %v415 = vmul.f32 %v409, %v413
      %v416 = vlaneseq
      %v417 = vshrl.u32 %v416, 7
      %v418 = vsub.s32 0, %v417
      %v419 = vrot.slane %v252, %v418
      %v420 = vadd.f32 %v414, %v419
      %v421 = vadd.f32 %v415, %v419
      %v422 = vmax.f32 %v420, 0.0
      %v423 = vmax.f32 %v421, 0.0
      %424 = vst [vmem:[#allocation2] sm:$0xff] %v422
      %425 = vst [vmem:[#allocation2 + $0x8] sm:$0xff] %v423
      %v426 = vld [vmem:[%s308] sm:$0xff]
      %v427 = vld [vmem:[%s308 + $0x8] sm:$0xff]
      %v428 = vld [vmem:[%s308 + $0x10] sm:$0x3]
      %v429 = vmul.f32 %v426, %v261
      %v430 = vmul.f32 %v427, %v261
      %v431 = vadd.f32 %v429, 0.0
      %v432 = vadd.f32 %v430, 0.0
      %v433 = vmul.f32 %v426, %v269
      %v434 = vmul.f32 %v427, %v269
      %v435 = vmul.f32 %v428, %v269
      %v439 = vrot.slane %v433, 1
      %v440 = vrot.slane %v434, 1
      %v441 = vsel %vm276, %v439, %v440
      %v442 = vrot.slane %v435, 1
      %v443 = vsel %vm276, %v440, %v442
      %v446 = vadd.f32 %v431, %v441
      %v447 = vadd.f32 %v432, %v443
      %v448 = vmul.f32 %v426, %v289
      %v449 = vmul.f32 %v427, %v289
      %v450 = vmul.f32 %v428, %v289
      %v454 = vrot.slane %v448, 2
      %v455 = vrot.slane %v449, 2
      %v456 = vsel %vm296, %v454, %v455
      %v457 = vrot.slane %v450, 2
      %v458 = vsel %vm296, %v455, %v457
      %v461 = vadd.f32 %v446, %v456
      %v462 = vadd.f32 %v447, %v458
      %v463 = vld [vmem:[%s360] sm:$0xff]
      %v464 = vld [vmem:[%s360 + $0x8] sm:$0xff]
      %v465 = vld [vmem:[%s360 + $0x10] sm:$0x3]
      %v466 = vmul.f32 %v463, %v315
      %v467 = vmul.f32 %v464, %v315
      %v468 = vadd.f32 %v461, %v466
      %v469 = vadd.f32 %v462, %v467
      %v470 = vmul.f32 %v463, %v323
      %v471 = vmul.f32 %v464, %v323
      %v472 = vmul.f32 %v465, %v323
      %v476 = vrot.slane %v470, 1
      %v477 = vrot.slane %v471, 1
      %v478 = vsel %vm276, %v476, %v477
      %v479 = vrot.slane %v472, 1
      %v480 = vsel %vm276, %v477, %v479
      %v483 = vadd.f32 %v468, %v478
      %v484 = vadd.f32 %v469, %v480
      %v485 = vmul.f32 %v463, %v342
      %v486 = vmul.f32 %v464, %v342
      %v487 = vmul.f32 %v465, %v342
      %v491 = vrot.slane %v485, 2
      %v492 = vrot.slane %v486, 2
      %v493 = vsel %vm296, %v491, %v492
      %v494 = vrot.slane %v487, 2
      %v495 = vsel %vm296, %v492, %v494
      %v498 = vadd.f32 %v483, %v493
      %v499 = vadd.f32 %v484, %v495
      %s500 = sadd.s32 %s248, 3
      %s501 = smul.u32 %s500, 24
      %s502 = scalar_lea.vmem %s237, %s501
      %v503 = vld [vmem:[%s502] sm:$0xff]
      %v504 = vld [vmem:[%s502 + $0x8] sm:$0xff]
      %v505 = vld [vmem:[%s502 + $0x10] sm:$0x3]
      %v506 = vmul.f32 %v503, %v367
      %v507 = vmul.f32 %v504, %v367
      %v508 = vadd.f32 %v498, %v506
      %v509 = vadd.f32 %v499, %v507
      %v510 = vmul.f32 %v503, %v375
      %v511 = vmul.f32 %v504, %v375
      %v512 = vmul.f32 %v505, %v375
      %v516 = vrot.slane %v510, 1
      %v517 = vrot.slane %v511, 1
      %v518 = vsel %vm276, %v516, %v517
      %v519 = vrot.slane %v512, 1
      %v520 = vsel %vm276, %v517, %v519
      %v523 = vadd.f32 %v508, %v518
      %v524 = vadd.f32 %v509, %v520
      %v525 = vmul.f32 %v503, %v394
      %v526 = vmul.f32 %v504, %v394
      %v527 = vmul.f32 %v505, %v394
      %v531 = vrot.slane %v525, 2
      %v532 = vrot.slane %v526, 2
      %v533 = vsel %vm296, %v531, %v532
      %v534 = vrot.slane %v527, 2
      %v535 = vsel %vm296, %v532, %v534
      %v538 = vadd.f32 %v523, %v533
      %v539 = vadd.f32 %v524, %v535
      %v540 = vmul.f32 %v538, %v413
      %v541 = vmul.f32 %v539, %v413
      %v542 = vadd.f32 %v540, %v419
      %v543 = vadd.f32 %v541, %v419
      %v544 = vmax.f32 %v542, 0.0
      %v545 = vmax.f32 %v543, 0.0
      %546 = vst [vmem:[#allocation2 + $0x10] sm:$0xff] %v544
      %547 = vst [vmem:[#allocation2 + $0x18] sm:$0xff] %v545
      %v548 = vld [vmem:[%s360] sm:$0xff]
      %v549 = vld [vmem:[%s360 + $0x8] sm:$0xff]
      %v550 = vld [vmem:[%s360 + $0x10] sm:$0x3]
      %v551 = vmul.f32 %v548, %v261
      %v552 = vmul.f32 %v549, %v261
      %v553 = vadd.f32 %v551, 0.0
      %v554 = vadd.f32 %v552, 0.0
      %v555 = vmul.f32 %v548, %v269
      %v556 = vmul.f32 %v549, %v269
      %v557 = vmul.f32 %v550, %v269
      %v561 = vrot.slane %v555, 1
      %v562 = vrot.slane %v556, 1
      %v563 = vsel %vm276, %v561, %v562
      %v564 = vrot.slane %v557, 1
      %v565 = vsel %vm276, %v562, %v564
      %v568 = vadd.f32 %v553, %v563
      %v569 = vadd.f32 %v554, %v565
      %v570 = vmul.f32 %v548, %v289
      %v571 = vmul.f32 %v549, %v289
      %v572 = vmul.f32 %v550, %v289
      %v576 = vrot.slane %v570, 2
      %v577 = vrot.slane %v571, 2
      %v578 = vsel %vm296, %v576, %v577
      %v579 = vrot.slane %v572, 2
      %v580 = vsel %vm296, %v577, %v579
      %v583 = vadd.f32 %v568, %v578
      %v584 = vadd.f32 %v569, %v580
      %v585 = vld [vmem:[%s502] sm:$0xff]
      %v586 = vld [vmem:[%s502 + $0x8] sm:$0xff]
      %v587 = vld [vmem:[%s502 + $0x10] sm:$0x3]
      %v588 = vmul.f32 %v585, %v315
      %v589 = vmul.f32 %v586, %v315
      %v590 = vadd.f32 %v583, %v588
      %v591 = vadd.f32 %v584, %v589
      %v592 = vmul.f32 %v585, %v323
      %v593 = vmul.f32 %v586, %v323
      %v594 = vmul.f32 %v587, %v323
      %v598 = vrot.slane %v592, 1
      %v599 = vrot.slane %v593, 1
      %v600 = vsel %vm276, %v598, %v599
      %v601 = vrot.slane %v594, 1
      %v602 = vsel %vm276, %v599, %v601
      %v605 = vadd.f32 %v590, %v600
      %v606 = vadd.f32 %v591, %v602
      %v607 = vmul.f32 %v585, %v342
      %v608 = vmul.f32 %v586, %v342
      %v609 = vmul.f32 %v587, %v342
      %v613 = vrot.slane %v607, 2
      %v614 = vrot.slane %v608, 2
      %v615 = vsel %vm296, %v613, %v614
      %v616 = vrot.slane %v609, 2
      %v617 = vsel %vm296, %v614, %v616
      %v620 = vadd.f32 %v605, %v615
      %v621 = vadd.f32 %v606, %v617
      %s622 = sadd.s32 %s248, 4
      %s623 = smul.u32 %s622, 24
      %s624 = scalar_lea.vmem %s237, %s623
      %v625 = vld [vmem:[%s624] sm:$0xff]
      %v626 = vld [vmem:[%s624 + $0x8] sm:$0xff]
      %v627 = vld [vmem:[%s624 + $0x10] sm:$0x3]
      %v628 = vmul.f32 %v625, %v367
      %v629 = vmul.f32 %v626, %v367
      %v630 = vadd.f32 %v620, %v628
      %v631 = vadd.f32 %v621, %v629
      %v632 = vmul.f32 %v625, %v375
      %v633 = vmul.f32 %v626, %v375
      %v634 = vmul.f32 %v627, %v375
      %v638 = vrot.slane %v632, 1
      %v639 = vrot.slane %v633, 1
      %v640 = vsel %vm276, %v638, %v639
      %v641 = vrot.slane %v634, 1
      %v642 = vsel %vm276, %v639, %v641
      %v645 = vadd.f32 %v630, %v640
      %v646 = vadd.f32 %v631, %v642
      %v647 = vmul.f32 %v625, %v394
      %v648 = vmul.f32 %v626, %v394
      %v649 = vmul.f32 %v627, %v394
      %v653 = vrot.slane %v647, 2
      %v654 = vrot.slane %v648, 2
      %v655 = vsel %vm296, %v653, %v654
      %v656 = vrot.slane %v649, 2
      %v657 = vsel %vm296, %v654, %v656
      %v660 = vadd.f32 %v645, %v655
      %v661 = vadd.f32 %v646, %v657
      %v662 = vmul.f32 %v660, %v413
      %v663 = vmul.f32 %v661, %v413
      %v664 = vadd.f32 %v662, %v419
      %v665 = vadd.f32 %v663, %v419
      %v666 = vmax.f32 %v664, 0.0
      %v667 = vmax.f32 %v665, 0.0
      %668 = vst [vmem:[#allocation2 + $0x20] sm:$0xff] %v666
      %669 = vst [vmem:[#allocation2 + $0x28] sm:$0xff] %v667
      %v670 = vld [vmem:[%s502] sm:$0xff]
      %v671 = vld [vmem:[%s502 + $0x8] sm:$0xff]
      %v672 = vld [vmem:[%s502 + $0x10] sm:$0x3]
      %v673 = vmul.f32 %v670, %v261
      %v674 = vmul.f32 %v671, %v261
      %v675 = vadd.f32 %v673, 0.0
      %v676 = vadd.f32 %v674, 0.0
      %v677 = vmul.f32 %v670, %v269
      %v678 = vmul.f32 %v671, %v269
      %v679 = vmul.f32 %v672, %v269
      %v683 = vrot.slane %v677, 1
      %v684 = vrot.slane %v678, 1
      %v685 = vsel %vm276, %v683, %v684
      %v686 = vrot.slane %v679, 1
      %v687 = vsel %vm276, %v684, %v686
      %v690 = vadd.f32 %v675, %v685
      %v691 = vadd.f32 %v676, %v687
      %v692 = vmul.f32 %v670, %v289
      %v693 = vmul.f32 %v671, %v289
      %v694 = vmul.f32 %v672, %v289
      %v698 = vrot.slane %v692, 2
      %v699 = vrot.slane %v693, 2
      %v700 = vsel %vm296, %v698, %v699
      %v701 = vrot.slane %v694, 2
      %v702 = vsel %vm296, %v699, %v701
      %v705 = vadd.f32 %v690, %v700
      %v706 = vadd.f32 %v691, %v702
      %v707 = vld [vmem:[%s624] sm:$0xff]
      %v708 = vld [vmem:[%s624 + $0x8] sm:$0xff]
      %v709 = vld [vmem:[%s624 + $0x10] sm:$0x3]
      %v710 = vmul.f32 %v707, %v315
      %v711 = vmul.f32 %v708, %v315
      %v712 = vadd.f32 %v705, %v710
      %v713 = vadd.f32 %v706, %v711
      %v714 = vmul.f32 %v707, %v323
      %v715 = vmul.f32 %v708, %v323
      %v716 = vmul.f32 %v709, %v323
      %v720 = vrot.slane %v714, 1
      %v721 = vrot.slane %v715, 1
      %v722 = vsel %vm276, %v720, %v721
      %v723 = vrot.slane %v716, 1
      %v724 = vsel %vm276, %v721, %v723
      %v727 = vadd.f32 %v712, %v722
      %v728 = vadd.f32 %v713, %v724
      %v729 = vmul.f32 %v707, %v342
      %v730 = vmul.f32 %v708, %v342
      %v731 = vmul.f32 %v709, %v342
      %v735 = vrot.slane %v729, 2
      %v736 = vrot.slane %v730, 2
      %v737 = vsel %vm296, %v735, %v736
      %v738 = vrot.slane %v731, 2
      %v739 = vsel %vm296, %v736, %v738
      %v742 = vadd.f32 %v727, %v737
      %v743 = vadd.f32 %v728, %v739
      %s744 = sadd.s32 %s248, 5
      %s745 = smul.u32 %s744, 24
      %s746 = scalar_lea.vmem %s237, %s745
      %v747 = vld [vmem:[%s746] sm:$0xff]
      %v748 = vld [vmem:[%s746 + $0x8] sm:$0xff]
      %v749 = vld [vmem:[%s746 + $0x10] sm:$0x3]
      %v750 = vmul.f32 %v747, %v367
      %v751 = vmul.f32 %v748, %v367
      %v752 = vadd.f32 %v742, %v750
      %v753 = vadd.f32 %v743, %v751
      %v754 = vmul.f32 %v747, %v375
      %v755 = vmul.f32 %v748, %v375
      %v756 = vmul.f32 %v749, %v375
      %v760 = vrot.slane %v754, 1
      %v761 = vrot.slane %v755, 1
      %v762 = vsel %vm276, %v760, %v761
      %v763 = vrot.slane %v756, 1
      %v764 = vsel %vm276, %v761, %v763
      %v767 = vadd.f32 %v752, %v762
      %v768 = vadd.f32 %v753, %v764
      %v769 = vmul.f32 %v747, %v394
      %v770 = vmul.f32 %v748, %v394
      %v771 = vmul.f32 %v749, %v394
      %v775 = vrot.slane %v769, 2
      %v776 = vrot.slane %v770, 2
      %v777 = vsel %vm296, %v775, %v776
      %v778 = vrot.slane %v771, 2
      %v779 = vsel %vm296, %v776, %v778
      %v782 = vadd.f32 %v767, %v777
      %v783 = vadd.f32 %v768, %v779
      %v784 = vmul.f32 %v782, %v413
      %v785 = vmul.f32 %v783, %v413
      %v786 = vadd.f32 %v784, %v419
      %v787 = vadd.f32 %v785, %v419
      %v788 = vmax.f32 %v786, 0.0
      %v789 = vmax.f32 %v787, 0.0
      %790 = vst [vmem:[#allocation2 + $0x30] sm:$0xff] %v788
      %791 = vst [vmem:[#allocation2 + $0x38] sm:$0xff] %v789
      %v792 = vld [vmem:[%s624] sm:$0xff]
      %v793 = vld [vmem:[%s624 + $0x8] sm:$0xff]
      %v794 = vld [vmem:[%s624 + $0x10] sm:$0x3]
      %v795 = vmul.f32 %v792, %v261
      %v796 = vmul.f32 %v793, %v261
      %v797 = vadd.f32 %v795, 0.0
      %v798 = vadd.f32 %v796, 0.0
      %v799 = vmul.f32 %v792, %v269
      %v800 = vmul.f32 %v793, %v269
      %v801 = vmul.f32 %v794, %v269
      %v805 = vrot.slane %v799, 1
      %v806 = vrot.slane %v800, 1
      %v807 = vsel %vm276, %v805, %v806
      %v808 = vrot.slane %v801, 1
      %v809 = vsel %vm276, %v806, %v808
      %v812 = vadd.f32 %v797, %v807
      %v813 = vadd.f32 %v798, %v809
      %v814 = vmul.f32 %v792, %v289
      %v815 = vmul.f32 %v793, %v289
      %v816 = vmul.f32 %v794, %v289
      %v820 = vrot.slane %v814, 2
      %v821 = vrot.slane %v815, 2
      %v822 = vsel %vm296, %v820, %v821
      %v823 = vrot.slane %v816, 2
      %v824 = vsel %vm296, %v821, %v823
      %v827 = vadd.f32 %v812, %v822
      %v828 = vadd.f32 %v813, %v824
      %v829 = vld [vmem:[%s746] sm:$0xff]
      %v830 = vld [vmem:[%s746 + $0x8] sm:$0xff]
      %v831 = vld [vmem:[%s746 + $0x10] sm:$0x3]
      %v832 = vmul.f32 %v829, %v315
      %v833 = vmul.f32 %v830, %v315
      %v834 = vadd.f32 %v827, %v832
      %v835 = vadd.f32 %v828, %v833
      %v836 = vmul.f32 %v829, %v323
      %v837 = vmul.f32 %v830, %v323
      %v838 = vmul.f32 %v831, %v323
      %v842 = vrot.slane %v836, 1
      %v843 = vrot.slane %v837, 1
      %v844 = vsel %vm276, %v842, %v843
      %v845 = vrot.slane %v838, 1
      %v846 = vsel %vm276, %v843, %v845
      %v849 = vadd.f32 %v834, %v844
      %v850 = vadd.f32 %v835, %v846
      %v851 = vmul.f32 %v829, %v342
      %v852 = vmul.f32 %v830, %v342
      %v853 = vmul.f32 %v831, %v342
      %v857 = vrot.slane %v851, 2
      %v858 = vrot.slane %v852, 2
      %v859 = vsel %vm296, %v857, %v858
      %v860 = vrot.slane %v853, 2
      %v861 = vsel %vm296, %v858, %v860
      %v864 = vadd.f32 %v849, %v859
      %v865 = vadd.f32 %v850, %v861
      %s866 = sadd.s32 %s248, 6
      %s867 = smul.u32 %s866, 24
      %s868 = scalar_lea.vmem %s237, %s867
      %v869 = vld [vmem:[%s868] sm:$0xff]
      %v870 = vld [vmem:[%s868 + $0x8] sm:$0xff]
      %v871 = vld [vmem:[%s868 + $0x10] sm:$0x3]
      %v872 = vmul.f32 %v869, %v367
      %v873 = vmul.f32 %v870, %v367
      %v874 = vadd.f32 %v864, %v872
      %v875 = vadd.f32 %v865, %v873
      %v876 = vmul.f32 %v869, %v375
      %v877 = vmul.f32 %v870, %v375
      %v878 = vmul.f32 %v871, %v375
      %v882 = vrot.slane %v876, 1
      %v883 = vrot.slane %v877, 1
      %v884 = vsel %vm276, %v882, %v883
      %v885 = vrot.slane %v878, 1
      %v886 = vsel %vm276, %v883, %v885
      %v889 = vadd.f32 %v874, %v884
      %v890 = vadd.f32 %v875, %v886
      %v891 = vmul.f32 %v869, %v394
      %v892 = vmul.f32 %v870, %v394
      %v893 = vmul.f32 %v871, %v394
      %v897 = vrot.slane %v891, 2
      %v898 = vrot.slane %v892, 2
      %v899 = vsel %vm296, %v897, %v898
      %v900 = vrot.slane %v893, 2
      %v901 = vsel %vm296, %v898, %v900
      %v904 = vadd.f32 %v889, %v899
      %v905 = vadd.f32 %v890, %v901
      %v906 = vmul.f32 %v904, %v413
      %v907 = vmul.f32 %v905, %v413
      %v908 = vadd.f32 %v906, %v419
      %v909 = vadd.f32 %v907, %v419
      %v910 = vmax.f32 %v908, 0.0
      %v911 = vmax.f32 %v909, 0.0
      %912 = vst [vmem:[#allocation2 + $0x40] sm:$0xff] %v910
      %913 = vst [vmem:[#allocation2 + $0x48] sm:$0xff] %v911
      %v914 = vld [vmem:[%s746] sm:$0xff]
      %v915 = vld [vmem:[%s746 + $0x8] sm:$0xff]
      %v916 = vld [vmem:[%s746 + $0x10] sm:$0x3]
      %v917 = vmul.f32 %v914, %v261
      %v918 = vmul.f32 %v915, %v261
      %v919 = vadd.f32 %v917, 0.0
      %v920 = vadd.f32 %v918, 0.0
      %v921 = vmul.f32 %v914, %v269
      %v922 = vmul.f32 %v915, %v269
      %v923 = vmul.f32 %v916, %v269
      %v927 = vrot.slane %v921, 1
      %v928 = vrot.slane %v922, 1
      %v929 = vsel %vm276, %v927, %v928
      %v930 = vrot.slane %v923, 1
      %v931 = vsel %vm276, %v928, %v930
      %v934 = vadd.f32 %v919, %v929
      %v935 = vadd.f32 %v920, %v931
      %v936 = vmul.f32 %v914, %v289
      %v937 = vmul.f32 %v915, %v289
      %v938 = vmul.f32 %v916, %v289
      %v942 = vrot.slane %v936, 2
      %v943 = vrot.slane %v937, 2
      %v944 = vsel %vm296, %v942, %v943
      %v945 = vrot.slane %v938, 2
      %v946 = vsel %vm296, %v943, %v945
      %v949 = vadd.f32 %v934, %v944
      %v950 = vadd.f32 %v935, %v946
      %v951 = vld [vmem:[%s868] sm:$0xff]
      %v952 = vld [vmem:[%s868 + $0x8] sm:$0xff]
      %v953 = vld [vmem:[%s868 + $0x10] sm:$0x3]
      %v954 = vmul.f32 %v951, %v315
      %v955 = vmul.f32 %v952, %v315
      %v956 = vadd.f32 %v949, %v954
      %v957 = vadd.f32 %v950, %v955
      %v958 = vmul.f32 %v951, %v323
      %v959 = vmul.f32 %v952, %v323
      %v960 = vmul.f32 %v953, %v323
      %v964 = vrot.slane %v958, 1
      %v965 = vrot.slane %v959, 1
      %v966 = vsel %vm276, %v964, %v965
      %v967 = vrot.slane %v960, 1
      %v968 = vsel %vm276, %v965, %v967
      %v971 = vadd.f32 %v956, %v966
      %v972 = vadd.f32 %v957, %v968
      %v973 = vmul.f32 %v951, %v342
      %v974 = vmul.f32 %v952, %v342
      %v975 = vmul.f32 %v953, %v342
      %v979 = vrot.slane %v973, 2
      %v980 = vrot.slane %v974, 2
      %v981 = vsel %vm296, %v979, %v980
      %v982 = vrot.slane %v975, 2
      %v983 = vsel %vm296, %v980, %v982
      %v986 = vadd.f32 %v971, %v981
      %v987 = vadd.f32 %v972, %v983
      %s988 = sadd.s32 %s248, 7
      %s989 = smul.u32 %s988, 24
      %s990 = scalar_lea.vmem %s237, %s989
      %v991 = vld [vmem:[%s990] sm:$0xff]
      %v992 = vld [vmem:[%s990 + $0x8] sm:$0xff]
      %v993 = vld [vmem:[%s990 + $0x10] sm:$0x3]
      %v994 = vmul.f32 %v991, %v367
      %v995 = vmul.f32 %v992, %v367
      %v996 = vadd.f32 %v986, %v994
      %v997 = vadd.f32 %v987, %v995
      %v998 = vmul.f32 %v991, %v375
      %v999 = vmul.f32 %v992, %v375
      %v1000 = vmul.f32 %v993, %v375
      %v1004 = vrot.slane %v998, 1
      %v1005 = vrot.slane %v999, 1
      %v1006 = vsel %vm276, %v1004, %v1005
      %v1007 = vrot.slane %v1000, 1
      %v1008 = vsel %vm276, %v1005, %v1007
      %v1011 = vadd.f32 %v996, %v1006
      %v1012 = vadd.f32 %v997, %v1008
      %v1013 = vmul.f32 %v991, %v394
      %v1014 = vmul.f32 %v992, %v394
      %v1015 = vmul.f32 %v993, %v394
      %v1019 = vrot.slane %v1013, 2
      %v1020 = vrot.slane %v1014, 2
      %v1021 = vsel %vm296, %v1019, %v1020
      %v1022 = vrot.slane %v1015, 2
      %v1023 = vsel %vm296, %v1020, %v1022
      %v1026 = vadd.f32 %v1011, %v1021
      %v1027 = vadd.f32 %v1012, %v1023
      %v1028 = vmul.f32 %v1026, %v413
      %v1029 = vmul.f32 %v1027, %v413
      %v1030 = vadd.f32 %v1028, %v419
      %v1031 = vadd.f32 %v1029, %v419
      %v1032 = vmax.f32 %v1030, 0.0
      %v1033 = vmax.f32 %v1031, 0.0
      %1034 = vst [vmem:[#allocation2 + $0x50] sm:$0xff] %v1032
      %1035 = vst [vmem:[#allocation2 + $0x58] sm:$0xff] %v1033
      %v1036 = vld [vmem:[%s868] sm:$0xff]
      %v1037 = vld [vmem:[%s868 + $0x8] sm:$0xff]
      %v1038 = vld [vmem:[%s868 + $0x10] sm:$0x3]
      %v1039 = vmul.f32 %v1036, %v261
      %v1040 = vmul.f32 %v1037, %v261
      %v1041 = vadd.f32 %v1039, 0.0
      %v1042 = vadd.f32 %v1040, 0.0
      %v1043 = vmul.f32 %v1036, %v269
      %v1044 = vmul.f32 %v1037, %v269
      %v1045 = vmul.f32 %v1038, %v269
      %v1049 = vrot.slane %v1043, 1
      %v1050 = vrot.slane %v1044, 1
      %v1051 = vsel %vm276, %v1049, %v1050
      %v1052 = vrot.slane %v1045, 1
      %v1053 = vsel %vm276, %v1050, %v1052
      %v1056 = vadd.f32 %v1041, %v1051
      %v1057 = vadd.f32 %v1042, %v1053
      %v1058 = vmul.f32 %v1036, %v289
      %v1059 = vmul.f32 %v1037, %v289
      %v1060 = vmul.f32 %v1038, %v289
      %v1064 = vrot.slane %v1058, 2
      %v1065 = vrot.slane %v1059, 2
      %v1066 = vsel %vm296, %v1064, %v1065
      %v1067 = vrot.slane %v1060, 2
      %v1068 = vsel %vm296, %v1065, %v1067
      %v1071 = vadd.f32 %v1056, %v1066
      %v1072 = vadd.f32 %v1057, %v1068
      %v1073 = vld [vmem:[%s990] sm:$0xff]
      %v1074 = vld [vmem:[%s990 + $0x8] sm:$0xff]
      %v1075 = vld [vmem:[%s990 + $0x10] sm:$0x3]
      %v1076 = vmul.f32 %v1073, %v315
      %v1077 = vmul.f32 %v1074, %v315
      %v1078 = vadd.f32 %v1071, %v1076
      %v1079 = vadd.f32 %v1072, %v1077
      %v1080 = vmul.f32 %v1073, %v323
      %v1081 = vmul.f32 %v1074, %v323
      %v1082 = vmul.f32 %v1075, %v323
      %v1086 = vrot.slane %v1080, 1
      %v1087 = vrot.slane %v1081, 1
      %v1088 = vsel %vm276, %v1086, %v1087
      %v1089 = vrot.slane %v1082, 1
      %v1090 = vsel %vm276, %v1087, %v1089
      %v1093 = vadd.f32 %v1078, %v1088
      %v1094 = vadd.f32 %v1079, %v1090
      %v1095 = vmul.f32 %v1073, %v342
      %v1096 = vmul.f32 %v1074, %v342
      %v1097 = vmul.f32 %v1075, %v342
      %v1101 = vrot.slane %v1095, 2
      %v1102 = vrot.slane %v1096, 2
      %v1103 = vsel %vm296, %v1101, %v1102
      %v1104 = vrot.slane %v1097, 2
      %v1105 = vsel %vm296, %v1102, %v1104
      %v1108 = vadd.f32 %v1093, %v1103
      %v1109 = vadd.f32 %v1094, %v1105
      %s1110 = sadd.s32 %s248, 8
      %s1111 = smul.u32 %s1110, 24
      %s1112 = scalar_lea.vmem %s237, %s1111
      %v1113 = vld [vmem:[%s1112] sm:$0xff]
      %v1114 = vld [vmem:[%s1112 + $0x8] sm:$0xff]
      %v1115 = vld [vmem:[%s1112 + $0x10] sm:$0x3]
      %v1116 = vmul.f32 %v1113, %v367
      %v1117 = vmul.f32 %v1114, %v367
      %v1118 = vadd.f32 %v1108, %v1116
      %v1119 = vadd.f32 %v1109, %v1117
      %v1120 = vmul.f32 %v1113, %v375
      %v1121 = vmul.f32 %v1114, %v375
      %v1122 = vmul.f32 %v1115, %v375
      %v1126 = vrot.slane %v1120, 1
      %v1127 = vrot.slane %v1121, 1
      %v1128 = vsel %vm276, %v1126, %v1127
      %v1129 = vrot.slane %v1122, 1
      %v1130 = vsel %vm276, %v1127, %v1129
      %v1133 = vadd.f32 %v1118, %v1128
      %v1134 = vadd.f32 %v1119, %v1130
      %v1135 = vmul.f32 %v1113, %v394
      %v1136 = vmul.f32 %v1114, %v394
      %v1137 = vmul.f32 %v1115, %v394
      %v1141 = vrot.slane %v1135, 2
      %v1142 = vrot.slane %v1136, 2
      %v1143 = vsel %vm296, %v1141, %v1142
      %v1144 = vrot.slane %v1137, 2
      %v1145 = vsel %vm296, %v1142, %v1144
      %v1148 = vadd.f32 %v1133, %v1143
      %v1149 = vadd.f32 %v1134, %v1145
      %v1150 = vmul.f32 %v1148, %v413
      %v1151 = vmul.f32 %v1149, %v413
      %v1152 = vadd.f32 %v1150, %v419
      %v1153 = vadd.f32 %v1151, %v419
      %v1154 = vmax.f32 %v1152, 0.0
      %v1155 = vmax.f32 %v1153, 0.0
      %1156 = vst [vmem:[#allocation2 + $0x60] sm:$0xff] %v1154
      %1157 = vst [vmem:[#allocation2 + $0x68] sm:$0xff] %v1155
      %v1158 = vld [vmem:[%s990] sm:$0xff]
      %v1159 = vld [vmem:[%s990 + $0x8] sm:$0xff]
      %v1160 = vld [vmem:[%s990 + $0x10] sm:$0x3]
      %v1161 = vmul.f32 %v1158, %v261
      %v1162 = vmul.f32 %v1159, %v261
      %v1163 = vadd.f32 %v1161, 0.0
      %v1164 = vadd.f32 %v1162, 0.0
      %v1165 = vmul.f32 %v1158, %v269
      %v1166 = vmul.f32 %v1159, %v269
      %v1167 = vmul.f32 %v1160, %v269
      %v1171 = vrot.slane %v1165, 1
      %v1172 = vrot.slane %v1166, 1
      %v1173 = vsel %vm276, %v1171, %v1172
      %v1174 = vrot.slane %v1167, 1
      %v1175 = vsel %vm276, %v1172, %v1174
      %v1178 = vadd.f32 %v1163, %v1173
      %v1179 = vadd.f32 %v1164, %v1175
      %v1180 = vmul.f32 %v1158, %v289
      %v1181 = vmul.f32 %v1159, %v289
      %v1182 = vmul.f32 %v1160, %v289
      %v1186 = vrot.slane %v1180, 2
      %v1187 = vrot.slane %v1181, 2
      %v1188 = vsel %vm296, %v1186, %v1187
      %v1189 = vrot.slane %v1182, 2
      %v1190 = vsel %vm296, %v1187, %v1189
      %v1193 = vadd.f32 %v1178, %v1188
      %v1194 = vadd.f32 %v1179, %v1190
      %v1195 = vld [vmem:[%s1112] sm:$0xff]
      %v1196 = vld [vmem:[%s1112 + $0x8] sm:$0xff]
      %v1197 = vld [vmem:[%s1112 + $0x10] sm:$0x3]
      %v1198 = vmul.f32 %v1195, %v315
      %v1199 = vmul.f32 %v1196, %v315
      %v1200 = vadd.f32 %v1193, %v1198
      %v1201 = vadd.f32 %v1194, %v1199
      %v1202 = vmul.f32 %v1195, %v323
      %v1203 = vmul.f32 %v1196, %v323
      %v1204 = vmul.f32 %v1197, %v323
      %v1208 = vrot.slane %v1202, 1
      %v1209 = vrot.slane %v1203, 1
      %v1210 = vsel %vm276, %v1208, %v1209
      %v1211 = vrot.slane %v1204, 1
      %v1212 = vsel %vm276, %v1209, %v1211
      %v1215 = vadd.f32 %v1200, %v1210
      %v1216 = vadd.f32 %v1201, %v1212
      %v1217 = vmul.f32 %v1195, %v342
      %v1218 = vmul.f32 %v1196, %v342
      %v1219 = vmul.f32 %v1197, %v342
      %v1223 = vrot.slane %v1217, 2
      %v1224 = vrot.slane %v1218, 2
      %v1225 = vsel %vm296, %v1223, %v1224
      %v1226 = vrot.slane %v1219, 2
      %v1227 = vsel %vm296, %v1224, %v1226
      %v1230 = vadd.f32 %v1215, %v1225
      %v1231 = vadd.f32 %v1216, %v1227
      %s1232 = sadd.s32 %s248, 9
      %s1233 = smul.u32 %s1232, 24
      %s1234 = scalar_lea.vmem %s237, %s1233
      %v1235 = vld [vmem:[%s1234] sm:$0xff]
      %v1236 = vld [vmem:[%s1234 + $0x8] sm:$0xff]
      %v1237 = vld [vmem:[%s1234 + $0x10] sm:$0x3]
      %v1238 = vmul.f32 %v1235, %v367
      %v1239 = vmul.f32 %v1236, %v367
      %v1240 = vadd.f32 %v1230, %v1238
      %v1241 = vadd.f32 %v1231, %v1239
      %v1242 = vmul.f32 %v1235, %v375
      %v1243 = vmul.f32 %v1236, %v375
      %v1244 = vmul.f32 %v1237, %v375
      %v1248 = vrot.slane %v1242, 1
      %v1249 = vrot.slane %v1243, 1
      %v1250 = vsel %vm276, %v1248, %v1249
      %v1251 = vrot.slane %v1244, 1
      %v1252 = vsel %vm276, %v1249, %v1251
      %v1255 = vadd.f32 %v1240, %v1250
      %v1256 = vadd.f32 %v1241, %v1252
      %v1257 = vmul.f32 %v1235, %v394
      %v1258 = vmul.f32 %v1236, %v394
      %v1259 = vmul.f32 %v1237, %v394
      %v1263 = vrot.slane %v1257, 2
      %v1264 = vrot.slane %v1258, 2
      %v1265 = vsel %vm296, %v1263, %v1264
      %v1266 = vrot.slane %v1259, 2
      %v1267 = vsel %vm296, %v1264, %v1266
      %v1270 = vadd.f32 %v1255, %v1265
      %v1271 = vadd.f32 %v1256, %v1267
      %v1272 = vmul.f32 %v1270, %v413
      %v1273 = vmul.f32 %v1271, %v413
      %v1274 = vadd.f32 %v1272, %v419
      %v1275 = vadd.f32 %v1273, %v419
      %v1276 = vmax.f32 %v1274, 0.0
      %v1277 = vmax.f32 %v1275, 0.0
      %1278 = vst [vmem:[#allocation2 + $0x70] sm:$0xff] %v1276
      %1279 = vst [vmem:[#allocation2 + $0x78] sm:$0xff] %v1277
      %v1280 = vld [vmem:[%s1112] sm:$0xff]
      %v1281 = vld [vmem:[%s1112 + $0x8] sm:$0xff]
      %v1282 = vld [vmem:[%s1112 + $0x10] sm:$0x3]
      %v1283 = vmul.f32 %v1280, %v261
      %v1284 = vmul.f32 %v1281, %v261
      %v1285 = vadd.f32 %v1283, 0.0
      %v1286 = vadd.f32 %v1284, 0.0
      %v1287 = vmul.f32 %v1280, %v269
      %v1288 = vmul.f32 %v1281, %v269
      %v1289 = vmul.f32 %v1282, %v269
      %v1293 = vrot.slane %v1287, 1
      %v1294 = vrot.slane %v1288, 1
      %v1295 = vsel %vm276, %v1293, %v1294
      %v1296 = vrot.slane %v1289, 1
      %v1297 = vsel %vm276, %v1294, %v1296
      %v1300 = vadd.f32 %v1285, %v1295
      %v1301 = vadd.f32 %v1286, %v1297
      %v1302 = vmul.f32 %v1280, %v289
      %v1303 = vmul.f32 %v1281, %v289
      %v1304 = vmul.f32 %v1282, %v289
      %v1308 = vrot.slane %v1302, 2
      %v1309 = vrot.slane %v1303, 2
      %v1310 = vsel %vm296, %v1308, %v1309
      %v1311 = vrot.slane %v1304, 2
      %v1312 = vsel %vm296, %v1309, %v1311
      %v1315 = vadd.f32 %v1300, %v1310
      %v1316 = vadd.f32 %v1301, %v1312
      %v1317 = vld [vmem:[%s1234] sm:$0xff]
      %v1318 = vld [vmem:[%s1234 + $0x8] sm:$0xff]
      %v1319 = vld [vmem:[%s1234 + $0x10] sm:$0x3]
      %v1320 = vmul.f32 %v1317, %v315
      %v1321 = vmul.f32 %v1318, %v315
      %v1322 = vadd.f32 %v1315, %v1320
      %v1323 = vadd.f32 %v1316, %v1321
      %v1324 = vmul.f32 %v1317, %v323
      %v1325 = vmul.f32 %v1318, %v323
      %v1326 = vmul.f32 %v1319, %v323
      %v1330 = vrot.slane %v1324, 1
      %v1331 = vrot.slane %v1325, 1
      %v1332 = vsel %vm276, %v1330, %v1331
      %v1333 = vrot.slane %v1326, 1
      %v1334 = vsel %vm276, %v1331, %v1333
      %v1337 = vadd.f32 %v1322, %v1332
      %v1338 = vadd.f32 %v1323, %v1334
      %v1339 = vmul.f32 %v1317, %v342
      %v1340 = vmul.f32 %v1318, %v342
      %v1341 = vmul.f32 %v1319, %v342
      %v1345 = vrot.slane %v1339, 2
      %v1346 = vrot.slane %v1340, 2
      %v1347 = vsel %vm296, %v1345, %v1346
      %v1348 = vrot.slane %v1341, 2
      %v1349 = vsel %vm296, %v1346, %v1348
      %v1352 = vadd.f32 %v1337, %v1347
      %v1353 = vadd.f32 %v1338, %v1349
      %s1354 = sadd.s32 %s248, 10
      %s1355 = smul.u32 %s1354, 24
      %s1356 = scalar_lea.vmem %s237, %s1355
      %v1357 = vld [vmem:[%s1356] sm:$0xff]
      %v1358 = vld [vmem:[%s1356 + $0x8] sm:$0xff]
      %v1359 = vld [vmem:[%s1356 + $0x10] sm:$0x3]
      %v1360 = vmul.f32 %v1357, %v367
      %v1361 = vmul.f32 %v1358, %v367
      %v1362 = vadd.f32 %v1352, %v1360
      %v1363 = vadd.f32 %v1353, %v1361
      %v1364 = vmul.f32 %v1357, %v375
      %v1365 = vmul.f32 %v1358, %v375
      %v1366 = vmul.f32 %v1359, %v375
      %v1370 = vrot.slane %v1364, 1
      %v1371 = vrot.slane %v1365, 1
      %v1372 = vsel %vm276, %v1370, %v1371
      %v1373 = vrot.slane %v1366, 1
      %v1374 = vsel %vm276, %v1371, %v1373
      %v1377 = vadd.f32 %v1362, %v1372
      %v1378 = vadd.f32 %v1363, %v1374
      %v1379 = vmul.f32 %v1357, %v394
      %v1380 = vmul.f32 %v1358, %v394
      %v1381 = vmul.f32 %v1359, %v394
      %v1385 = vrot.slane %v1379, 2
      %v1386 = vrot.slane %v1380, 2
      %v1387 = vsel %vm296, %v1385, %v1386
      %v1388 = vrot.slane %v1381, 2
      %v1389 = vsel %vm296, %v1386, %v1388
      %v1392 = vadd.f32 %v1377, %v1387
      %v1393 = vadd.f32 %v1378, %v1389
      %v1394 = vmul.f32 %v1392, %v413
      %v1395 = vmul.f32 %v1393, %v413
      %v1396 = vadd.f32 %v1394, %v419
      %v1397 = vadd.f32 %v1395, %v419
      %v1398 = vmax.f32 %v1396, 0.0
      %v1399 = vmax.f32 %v1397, 0.0
      %1400 = vst [vmem:[#allocation2 + $0x80] sm:$0xff] %v1398
      %1401 = vst [vmem:[#allocation2 + $0x88] sm:$0xff] %v1399
      %v1402 = vld [vmem:[%s1234] sm:$0xff]
      %v1403 = vld [vmem:[%s1234 + $0x8] sm:$0xff]
      %v1404 = vld [vmem:[%s1234 + $0x10] sm:$0x3]
      %v1405 = vmul.f32 %v1402, %v261
      %v1406 = vmul.f32 %v1403, %v261
      %v1407 = vadd.f32 %v1405, 0.0
      %v1408 = vadd.f32 %v1406, 0.0
      %v1409 = vmul.f32 %v1402, %v269
      %v1410 = vmul.f32 %v1403, %v269
      %v1411 = vmul.f32 %v1404, %v269
      %v1415 = vrot.slane %v1409, 1
      %v1416 = vrot.slane %v1410, 1
      %v1417 = vsel %vm276, %v1415, %v1416
      %v1418 = vrot.slane %v1411, 1
      %v1419 = vsel %vm276, %v1416, %v1418
      %v1422 = vadd.f32 %v1407, %v1417
      %v1423 = vadd.f32 %v1408, %v1419
      %v1424 = vmul.f32 %v1402, %v289
      %v1425 = vmul.f32 %v1403, %v289
      %v1426 = vmul.f32 %v1404, %v289
      %v1430 = vrot.slane %v1424, 2
      %v1431 = vrot.slane %v1425, 2
      %v1432 = vsel %vm296, %v1430, %v1431
      %v1433 = vrot.slane %v1426, 2
      %v1434 = vsel %vm296, %v1431, %v1433
      %v1437 = vadd.f32 %v1422, %v1432
      %v1438 = vadd.f32 %v1423, %v1434
      %v1439 = vld [vmem:[%s1356] sm:$0xff]
      %v1440 = vld [vmem:[%s1356 + $0x8] sm:$0xff]
      %v1441 = vld [vmem:[%s1356 + $0x10] sm:$0x3]
      %v1442 = vmul.f32 %v1439, %v315
      %v1443 = vmul.f32 %v1440, %v315
      %v1444 = vadd.f32 %v1437, %v1442
      %v1445 = vadd.f32 %v1438, %v1443
      %v1446 = vmul.f32 %v1439, %v323
      %v1447 = vmul.f32 %v1440, %v323
      %v1448 = vmul.f32 %v1441, %v323
      %v1452 = vrot.slane %v1446, 1
      %v1453 = vrot.slane %v1447, 1
      %v1454 = vsel %vm276, %v1452, %v1453
      %v1455 = vrot.slane %v1448, 1
      %v1456 = vsel %vm276, %v1453, %v1455
      %v1459 = vadd.f32 %v1444, %v1454
      %v1460 = vadd.f32 %v1445, %v1456
      %v1461 = vmul.f32 %v1439, %v342
      %v1462 = vmul.f32 %v1440, %v342
      %v1463 = vmul.f32 %v1441, %v342
      %v1467 = vrot.slane %v1461, 2
      %v1468 = vrot.slane %v1462, 2
      %v1469 = vsel %vm296, %v1467, %v1468
      %v1470 = vrot.slane %v1463, 2
      %v1471 = vsel %vm296, %v1468, %v1470
      %v1474 = vadd.f32 %v1459, %v1469
      %v1475 = vadd.f32 %v1460, %v1471
      %s1476 = sadd.s32 %s248, 11
      %s1477 = smul.u32 %s1476, 24
      %s1478 = scalar_lea.vmem %s237, %s1477
      %v1479 = vld [vmem:[%s1478] sm:$0xff]
      %v1480 = vld [vmem:[%s1478 + $0x8] sm:$0xff]
      %v1481 = vld [vmem:[%s1478 + $0x10] sm:$0x3]
      %v1482 = vmul.f32 %v1479, %v367
      %v1483 = vmul.f32 %v1480, %v367
      %v1484 = vadd.f32 %v1474, %v1482
      %v1485 = vadd.f32 %v1475, %v1483
      %v1486 = vmul.f32 %v1479, %v375
      %v1487 = vmul.f32 %v1480, %v375
      %v1488 = vmul.f32 %v1481, %v375
      %v1492 = vrot.slane %v1486, 1
      %v1493 = vrot.slane %v1487, 1
      %v1494 = vsel %vm276, %v1492, %v1493
      %v1495 = vrot.slane %v1488, 1
      %v1496 = vsel %vm276, %v1493, %v1495
      %v1499 = vadd.f32 %v1484, %v1494
      %v1500 = vadd.f32 %v1485, %v1496
      %v1501 = vmul.f32 %v1479, %v394
      %v1502 = vmul.f32 %v1480, %v394
      %v1503 = vmul.f32 %v1481, %v394
      %v1507 = vrot.slane %v1501, 2
      %v1508 = vrot.slane %v1502, 2
      %v1509 = vsel %vm296, %v1507, %v1508
      %v1510 = vrot.slane %v1503, 2
      %v1511 = vsel %vm296, %v1508, %v1510
      %v1514 = vadd.f32 %v1499, %v1509
      %v1515 = vadd.f32 %v1500, %v1511
      %v1516 = vmul.f32 %v1514, %v413
      %v1517 = vmul.f32 %v1515, %v413
      %v1518 = vadd.f32 %v1516, %v419
      %v1519 = vadd.f32 %v1517, %v419
      %v1520 = vmax.f32 %v1518, 0.0
      %v1521 = vmax.f32 %v1519, 0.0
      %1522 = vst [vmem:[#allocation2 + $0x90] sm:$0xff] %v1520
      %1523 = vst [vmem:[#allocation2 + $0x98] sm:$0xff] %v1521
      %v1524 = vld [vmem:[%s1356] sm:$0xff]
      %v1525 = vld [vmem:[%s1356 + $0x8] sm:$0xff]
      %v1526 = vld [vmem:[%s1356 + $0x10] sm:$0x3]
      %v1527 = vmul.f32 %v1524, %v261
      %v1528 = vmul.f32 %v1525, %v261
      %v1529 = vadd.f32 %v1527, 0.0
      %v1530 = vadd.f32 %v1528, 0.0
      %v1531 = vmul.f32 %v1524, %v269
      %v1532 = vmul.f32 %v1525, %v269
      %v1533 = vmul.f32 %v1526, %v269
      %v1537 = vrot.slane %v1531, 1
      %v1538 = vrot.slane %v1532, 1
      %v1539 = vsel %vm276, %v1537, %v1538
      %v1540 = vrot.slane %v1533, 1
      %v1541 = vsel %vm276, %v1538, %v1540
      %v1544 = vadd.f32 %v1529, %v1539
      %v1545 = vadd.f32 %v1530, %v1541
      %v1546 = vmul.f32 %v1524, %v289
      %v1547 = vmul.f32 %v1525, %v289
      %v1548 = vmul.f32 %v1526, %v289
      %v1552 = vrot.slane %v1546, 2
      %v1553 = vrot.slane %v1547, 2
      %v1554 = vsel %vm296, %v1552, %v1553
      %v1555 = vrot.slane %v1548, 2
      %v1556 = vsel %vm296, %v1553, %v1555
      %v1559 = vadd.f32 %v1544, %v1554
      %v1560 = vadd.f32 %v1545, %v1556
      %v1561 = vld [vmem:[%s1478] sm:$0xff]
      %v1562 = vld [vmem:[%s1478 + $0x8] sm:$0xff]
      %v1563 = vld [vmem:[%s1478 + $0x10] sm:$0x3]
      %v1564 = vmul.f32 %v1561, %v315
      %v1565 = vmul.f32 %v1562, %v315
      %v1566 = vadd.f32 %v1559, %v1564
      %v1567 = vadd.f32 %v1560, %v1565
      %v1568 = vmul.f32 %v1561, %v323
      %v1569 = vmul.f32 %v1562, %v323
      %v1570 = vmul.f32 %v1563, %v323
      %v1574 = vrot.slane %v1568, 1
      %v1575 = vrot.slane %v1569, 1
      %v1576 = vsel %vm276, %v1574, %v1575
      %v1577 = vrot.slane %v1570, 1
      %v1578 = vsel %vm276, %v1575, %v1577
      %v1581 = vadd.f32 %v1566, %v1576
      %v1582 = vadd.f32 %v1567, %v1578
      %v1583 = vmul.f32 %v1561, %v342
      %v1584 = vmul.f32 %v1562, %v342
      %v1585 = vmul.f32 %v1563, %v342
      %v1589 = vrot.slane %v1583, 2
      %v1590 = vrot.slane %v1584, 2
      %v1591 = vsel %vm296, %v1589, %v1590
      %v1592 = vrot.slane %v1585, 2
      %v1593 = vsel %vm296, %v1590, %v1592
      %v1596 = vadd.f32 %v1581, %v1591
      %v1597 = vadd.f32 %v1582, %v1593
      %s1598 = sadd.s32 %s248, 12
      %s1599 = smul.u32 %s1598, 24
      %s1600 = scalar_lea.vmem %s237, %s1599
      %v1601 = vld [vmem:[%s1600] sm:$0xff]
      %v1602 = vld [vmem:[%s1600 + $0x8] sm:$0xff]
      %v1603 = vld [vmem:[%s1600 + $0x10] sm:$0x3]
      %v1604 = vmul.f32 %v1601, %v367
      %v1605 = vmul.f32 %v1602, %v367
      %v1606 = vadd.f32 %v1596, %v1604
      %v1607 = vadd.f32 %v1597, %v1605
      %v1608 = vmul.f32 %v1601, %v375
      %v1609 = vmul.f32 %v1602, %v375
      %v1610 = vmul.f32 %v1603, %v375
      %v1614 = vrot.slane %v1608, 1
      %v1615 = vrot.slane %v1609, 1
      %v1616 = vsel %vm276, %v1614, %v1615
      %v1617 = vrot.slane %v1610, 1
      %v1618 = vsel %vm276, %v1615, %v1617
      %v1621 = vadd.f32 %v1606, %v1616
      %v1622 = vadd.f32 %v1607, %v1618
      %v1623 = vmul.f32 %v1601, %v394
      %v1624 = vmul.f32 %v1602, %v394
      %v1625 = vmul.f32 %v1603, %v394
      %v1629 = vrot.slane %v1623, 2
      %v1630 = vrot.slane %v1624, 2
      %v1631 = vsel %vm296, %v1629, %v1630
      %v1632 = vrot.slane %v1625, 2
      %v1633 = vsel %vm296, %v1630, %v1632
      %v1636 = vadd.f32 %v1621, %v1631
      %v1637 = vadd.f32 %v1622, %v1633
      %v1638 = vmul.f32 %v1636, %v413
      %v1639 = vmul.f32 %v1637, %v413
      %v1640 = vadd.f32 %v1638, %v419
      %v1641 = vadd.f32 %v1639, %v419
      %v1642 = vmax.f32 %v1640, 0.0
      %v1643 = vmax.f32 %v1641, 0.0
      %1644 = vst [vmem:[#allocation2 + $0xa0] sm:$0xff] %v1642
      %1645 = vst [vmem:[#allocation2 + $0xa8] sm:$0xff] %v1643
      %v1646 = vld [vmem:[%s1478] sm:$0xff]
      %v1647 = vld [vmem:[%s1478 + $0x8] sm:$0xff]
      %v1648 = vld [vmem:[%s1478 + $0x10] sm:$0x3]
      %v1649 = vmul.f32 %v1646, %v261
      %v1650 = vmul.f32 %v1647, %v261
      %v1651 = vadd.f32 %v1649, 0.0
      %v1652 = vadd.f32 %v1650, 0.0
      %v1653 = vmul.f32 %v1646, %v269
      %v1654 = vmul.f32 %v1647, %v269
      %v1655 = vmul.f32 %v1648, %v269
      %v1659 = vrot.slane %v1653, 1
      %v1660 = vrot.slane %v1654, 1
      %v1661 = vsel %vm276, %v1659, %v1660
      %v1662 = vrot.slane %v1655, 1
      %v1663 = vsel %vm276, %v1660, %v1662
      %v1666 = vadd.f32 %v1651, %v1661
      %v1667 = vadd.f32 %v1652, %v1663
      %v1668 = vmul.f32 %v1646, %v289
      %v1669 = vmul.f32 %v1647, %v289
      %v1670 = vmul.f32 %v1648, %v289
      %v1674 = vrot.slane %v1668, 2
      %v1675 = vrot.slane %v1669, 2
      %v1676 = vsel %vm296, %v1674, %v1675
      %v1677 = vrot.slane %v1670, 2
      %v1678 = vsel %vm296, %v1675, %v1677
      %v1681 = vadd.f32 %v1666, %v1676
      %v1682 = vadd.f32 %v1667, %v1678
      %v1683 = vld [vmem:[%s1600] sm:$0xff]
      %v1684 = vld [vmem:[%s1600 + $0x8] sm:$0xff]
      %v1685 = vld [vmem:[%s1600 + $0x10] sm:$0x3]
      %v1686 = vmul.f32 %v1683, %v315
      %v1687 = vmul.f32 %v1684, %v315
      %v1688 = vadd.f32 %v1681, %v1686
      %v1689 = vadd.f32 %v1682, %v1687
      %v1690 = vmul.f32 %v1683, %v323
      %v1691 = vmul.f32 %v1684, %v323
      %v1692 = vmul.f32 %v1685, %v323
      %v1696 = vrot.slane %v1690, 1
      %v1697 = vrot.slane %v1691, 1
      %v1698 = vsel %vm276, %v1696, %v1697
      %v1699 = vrot.slane %v1692, 1
      %v1700 = vsel %vm276, %v1697, %v1699
      %v1703 = vadd.f32 %v1688, %v1698
      %v1704 = vadd.f32 %v1689, %v1700
      %v1705 = vmul.f32 %v1683, %v342
      %v1706 = vmul.f32 %v1684, %v342
      %v1707 = vmul.f32 %v1685, %v342
      %v1711 = vrot.slane %v1705, 2
      %v1712 = vrot.slane %v1706, 2
      %v1713 = vsel %vm296, %v1711, %v1712
      %v1714 = vrot.slane %v1707, 2
      %v1715 = vsel %vm296, %v1712, %v1714
      %v1718 = vadd.f32 %v1703, %v1713
      %v1719 = vadd.f32 %v1704, %v1715
      %s1720 = sadd.s32 %s248, 13
      %s1721 = smul.u32 %s1720, 24
      %s1722 = scalar_lea.vmem %s237, %s1721
      %v1723 = vld [vmem:[%s1722] sm:$0xff]
      %v1724 = vld [vmem:[%s1722 + $0x8] sm:$0xff]
      %v1725 = vld [vmem:[%s1722 + $0x10] sm:$0x3]
      %v1726 = vmul.f32 %v1723, %v367
      %v1727 = vmul.f32 %v1724, %v367
      %v1728 = vadd.f32 %v1718, %v1726
      %v1729 = vadd.f32 %v1719, %v1727
      %v1730 = vmul.f32 %v1723, %v375
      %v1731 = vmul.f32 %v1724, %v375
      %v1732 = vmul.f32 %v1725, %v375
      %v1736 = vrot.slane %v1730, 1
      %v1737 = vrot.slane %v1731, 1
      %v1738 = vsel %vm276, %v1736, %v1737
      %v1739 = vrot.slane %v1732, 1
      %v1740 = vsel %vm276, %v1737, %v1739
      %v1743 = vadd.f32 %v1728, %v1738
      %v1744 = vadd.f32 %v1729, %v1740
      %v1745 = vmul.f32 %v1723, %v394
      %v1746 = vmul.f32 %v1724, %v394
      %v1747 = vmul.f32 %v1725, %v394
      %v1751 = vrot.slane %v1745, 2
      %v1752 = vrot.slane %v1746, 2
      %v1753 = vsel %vm296, %v1751, %v1752
      %v1754 = vrot.slane %v1747, 2
      %v1755 = vsel %vm296, %v1752, %v1754
      %v1758 = vadd.f32 %v1743, %v1753
      %v1759 = vadd.f32 %v1744, %v1755
      %v1760 = vmul.f32 %v1758, %v413
      %v1761 = vmul.f32 %v1759, %v413
      %v1762 = vadd.f32 %v1760, %v419
      %v1763 = vadd.f32 %v1761, %v419
      %v1764 = vmax.f32 %v1762, 0.0
      %v1765 = vmax.f32 %v1763, 0.0
      %1766 = vst [vmem:[#allocation2 + $0xb0] sm:$0xff] %v1764
      %1767 = vst [vmem:[#allocation2 + $0xb8] sm:$0xff] %v1765
      %v1768 = vld [vmem:[%s1600] sm:$0xff]
      %v1769 = vld [vmem:[%s1600 + $0x8] sm:$0xff]
      %v1770 = vld [vmem:[%s1600 + $0x10] sm:$0x3]
      %v1771 = vmul.f32 %v1768, %v261
      %v1772 = vmul.f32 %v1769, %v261
      %v1773 = vadd.f32 %v1771, 0.0
      %v1774 = vadd.f32 %v1772, 0.0
      %v1775 = vmul.f32 %v1768, %v269
      %v1776 = vmul.f32 %v1769, %v269
      %v1777 = vmul.f32 %v1770, %v269
      %v1781 = vrot.slane %v1775, 1
      %v1782 = vrot.slane %v1776, 1
      %v1783 = vsel %vm276, %v1781, %v1782
      %v1784 = vrot.slane %v1777, 1
      %v1785 = vsel %vm276, %v1782, %v1784
      %v1788 = vadd.f32 %v1773, %v1783
      %v1789 = vadd.f32 %v1774, %v1785
      %v1790 = vmul.f32 %v1768, %v289
      %v1791 = vmul.f32 %v1769, %v289
      %v1792 = vmul.f32 %v1770, %v289
      %v1796 = vrot.slane %v1790, 2
      %v1797 = vrot.slane %v1791, 2
      %v1798 = vsel %vm296, %v1796, %v1797
      %v1799 = vrot.slane %v1792, 2
      %v1800 = vsel %vm296, %v1797, %v1799
      %v1803 = vadd.f32 %v1788, %v1798
      %v1804 = vadd.f32 %v1789, %v1800
      %v1805 = vld [vmem:[%s1722] sm:$0xff]
      %v1806 = vld [vmem:[%s1722 + $0x8] sm:$0xff]
      %v1807 = vld [vmem:[%s1722 + $0x10] sm:$0x3]
      %v1808 = vmul.f32 %v1805, %v315
      %v1809 = vmul.f32 %v1806, %v315
      %v1810 = vadd.f32 %v1803, %v1808
      %v1811 = vadd.f32 %v1804, %v1809
      %v1812 = vmul.f32 %v1805, %v323
      %v1813 = vmul.f32 %v1806, %v323
      %v1814 = vmul.f32 %v1807, %v323
      %v1818 = vrot.slane %v1812, 1
      %v1819 = vrot.slane %v1813, 1
      %v1820 = vsel %vm276, %v1818, %v1819
      %v1821 = vrot.slane %v1814, 1
      %v1822 = vsel %vm276, %v1819, %v1821
      %v1825 = vadd.f32 %v1810, %v1820
      %v1826 = vadd.f32 %v1811, %v1822
      %v1827 = vmul.f32 %v1805, %v342
      %v1828 = vmul.f32 %v1806, %v342
      %v1829 = vmul.f32 %v1807, %v342
      %v1833 = vrot.slane %v1827, 2
      %v1834 = vrot.slane %v1828, 2
      %v1835 = vsel %vm296, %v1833, %v1834
      %v1836 = vrot.slane %v1829, 2
      %v1837 = vsel %vm296, %v1834, %v1836
      %v1840 = vadd.f32 %v1825, %v1835
      %v1841 = vadd.f32 %v1826, %v1837
      %s1842 = sadd.s32 %s248, 14
      %s1843 = smul.u32 %s1842, 24
      %s1844 = scalar_lea.vmem %s237, %s1843
      %v1845 = vld [vmem:[%s1844] sm:$0xff]
      %v1846 = vld [vmem:[%s1844 + $0x8] sm:$0xff]
      %v1847 = vld [vmem:[%s1844 + $0x10] sm:$0x3]
      %v1848 = vmul.f32 %v1845, %v367
      %v1849 = vmul.f32 %v1846, %v367
      %v1850 = vadd.f32 %v1840, %v1848
      %v1851 = vadd.f32 %v1841, %v1849
      %v1852 = vmul.f32 %v1845, %v375
      %v1853 = vmul.f32 %v1846, %v375
      %v1854 = vmul.f32 %v1847, %v375
      %v1858 = vrot.slane %v1852, 1
      %v1859 = vrot.slane %v1853, 1
      %v1860 = vsel %vm276, %v1858, %v1859
      %v1861 = vrot.slane %v1854, 1
      %v1862 = vsel %vm276, %v1859, %v1861
      %v1865 = vadd.f32 %v1850, %v1860
      %v1866 = vadd.f32 %v1851, %v1862
      %v1867 = vmul.f32 %v1845, %v394
      %v1868 = vmul.f32 %v1846, %v394
      %v1869 = vmul.f32 %v1847, %v394
      %v1873 = vrot.slane %v1867, 2
      %v1874 = vrot.slane %v1868, 2
      %v1875 = vsel %vm296, %v1873, %v1874
      %v1876 = vrot.slane %v1869, 2
      %v1877 = vsel %vm296, %v1874, %v1876
      %v1880 = vadd.f32 %v1865, %v1875
      %v1881 = vadd.f32 %v1866, %v1877
      %v1882 = vmul.f32 %v1880, %v413
      %v1883 = vmul.f32 %v1881, %v413
      %v1884 = vadd.f32 %v1882, %v419
      %v1885 = vadd.f32 %v1883, %v419
      %v1886 = vmax.f32 %v1884, 0.0
      %v1887 = vmax.f32 %v1885, 0.0
      %1888 = vst [vmem:[#allocation2 + $0xc0] sm:$0xff] %v1886
      %1889 = vst [vmem:[#allocation2 + $0xc8] sm:$0xff] %v1887
      %v1890 = vld [vmem:[%s1722] sm:$0xff]
      %v1891 = vld [vmem:[%s1722 + $0x8] sm:$0xff]
      %v1892 = vld [vmem:[%s1722 + $0x10] sm:$0x3]
      %v1893 = vmul.f32 %v1890, %v261
      %v1894 = vmul.f32 %v1891, %v261
      %v1895 = vadd.f32 %v1893, 0.0
      %v1896 = vadd.f32 %v1894, 0.0
      %v1897 = vmul.f32 %v1890, %v269
      %v1898 = vmul.f32 %v1891, %v269
      %v1899 = vmul.f32 %v1892, %v269
      %v1903 = vrot.slane %v1897, 1
      %v1904 = vrot.slane %v1898, 1
      %v1905 = vsel %vm276, %v1903, %v1904
      %v1906 = vrot.slane %v1899, 1
      %v1907 = vsel %vm276, %v1904, %v1906
      %v1910 = vadd.f32 %v1895, %v1905
      %v1911 = vadd.f32 %v1896, %v1907
      %v1912 = vmul.f32 %v1890, %v289
      %v1913 = vmul.f32 %v1891, %v289
      %v1914 = vmul.f32 %v1892, %v289
      %v1918 = vrot.slane %v1912, 2
      %v1919 = vrot.slane %v1913, 2
      %v1920 = vsel %vm296, %v1918, %v1919
      %v1921 = vrot.slane %v1914, 2
      %v1922 = vsel %vm296, %v1919, %v1921
      %v1925 = vadd.f32 %v1910, %v1920
      %v1926 = vadd.f32 %v1911, %v1922
      %v1927 = vld [vmem:[%s1844] sm:$0xff]
      %v1928 = vld [vmem:[%s1844 + $0x8] sm:$0xff]
      %v1929 = vld [vmem:[%s1844 + $0x10] sm:$0x3]
      %v1930 = vmul.f32 %v1927, %v315
      %v1931 = vmul.f32 %v1928, %v315
      %v1932 = vadd.f32 %v1925, %v1930
      %v1933 = vadd.f32 %v1926, %v1931
      %v1934 = vmul.f32 %v1927, %v323
      %v1935 = vmul.f32 %v1928, %v323
      %v1936 = vmul.f32 %v1929, %v323
      %v1940 = vrot.slane %v1934, 1
      %v1941 = vrot.slane %v1935, 1
      %v1942 = vsel %vm276, %v1940, %v1941
      %v1943 = vrot.slane %v1936, 1
      %v1944 = vsel %vm276, %v1941, %v1943
      %v1947 = vadd.f32 %v1932, %v1942
      %v1948 = vadd.f32 %v1933, %v1944
      %v1949 = vmul.f32 %v1927, %v342
      %v1950 = vmul.f32 %v1928, %v342
      %v1951 = vmul.f32 %v1929, %v342
      %v1955 = vrot.slane %v1949, 2
      %v1956 = vrot.slane %v1950, 2
      %v1957 = vsel %vm296, %v1955, %v1956
      %v1958 = vrot.slane %v1951, 2
      %v1959 = vsel %vm296, %v1956, %v1958
      %v1962 = vadd.f32 %v1947, %v1957
      %v1963 = vadd.f32 %v1948, %v1959
      %s1964 = sadd.s32 %s248, 15
      %s1965 = smul.u32 %s1964, 24
      %s1966 = scalar_lea.vmem %s237, %s1965
      %v1967 = vld [vmem:[%s1966] sm:$0xff]
      %v1968 = vld [vmem:[%s1966 + $0x8] sm:$0xff]
      %v1969 = vld [vmem:[%s1966 + $0x10] sm:$0x3]
      %v1970 = vmul.f32 %v1967, %v367
      %v1971 = vmul.f32 %v1968, %v367
      %v1972 = vadd.f32 %v1962, %v1970
      %v1973 = vadd.f32 %v1963, %v1971
      %v1974 = vmul.f32 %v1967, %v375
      %v1975 = vmul.f32 %v1968, %v375
      %v1976 = vmul.f32 %v1969, %v375
      %v1980 = vrot.slane %v1974, 1
      %v1981 = vrot.slane %v1975, 1
      %v1982 = vsel %vm276, %v1980, %v1981
      %v1983 = vrot.slane %v1976, 1
      %v1984 = vsel %vm276, %v1981, %v1983
      %v1987 = vadd.f32 %v1972, %v1982
      %v1988 = vadd.f32 %v1973, %v1984
      %v1989 = vmul.f32 %v1967, %v394
      %v1990 = vmul.f32 %v1968, %v394
      %v1991 = vmul.f32 %v1969, %v394
      %v1995 = vrot.slane %v1989, 2
      %v1996 = vrot.slane %v1990, 2
      %v1997 = vsel %vm296, %v1995, %v1996
      %v1998 = vrot.slane %v1991, 2
      %v1999 = vsel %vm296, %v1996, %v1998
      %v2002 = vadd.f32 %v1987, %v1997
      %v2003 = vadd.f32 %v1988, %v1999
      %v2004 = vmul.f32 %v2002, %v413
      %v2005 = vmul.f32 %v2003, %v413
      %v2006 = vadd.f32 %v2004, %v419
      %v2007 = vadd.f32 %v2005, %v419
      %v2008 = vmax.f32 %v2006, 0.0
      %v2009 = vmax.f32 %v2007, 0.0
      %2010 = vst [vmem:[#allocation2 + $0xd0] sm:$0xff] %v2008
      %2011 = vst [vmem:[#allocation2 + $0xd8] sm:$0xff] %v2009
      %v2012 = vld [vmem:[%s1844] sm:$0xff]
      %v2013 = vld [vmem:[%s1844 + $0x8] sm:$0xff]
      %v2014 = vld [vmem:[%s1844 + $0x10] sm:$0x3]
      %v2015 = vmul.f32 %v2012, %v261
      %v2016 = vmul.f32 %v2013, %v261
      %v2017 = vadd.f32 %v2015, 0.0
      %v2018 = vadd.f32 %v2016, 0.0
      %v2019 = vmul.f32 %v2012, %v269
      %v2020 = vmul.f32 %v2013, %v269
      %v2021 = vmul.f32 %v2014, %v269
      %v2025 = vrot.slane %v2019, 1
      %v2026 = vrot.slane %v2020, 1
      %v2027 = vsel %vm276, %v2025, %v2026
      %v2028 = vrot.slane %v2021, 1
      %v2029 = vsel %vm276, %v2026, %v2028
      %v2032 = vadd.f32 %v2017, %v2027
      %v2033 = vadd.f32 %v2018, %v2029
      %v2034 = vmul.f32 %v2012, %v289
      %v2035 = vmul.f32 %v2013, %v289
      %v2036 = vmul.f32 %v2014, %v289
      %v2040 = vrot.slane %v2034, 2
      %v2041 = vrot.slane %v2035, 2
      %v2042 = vsel %vm296, %v2040, %v2041
      %v2043 = vrot.slane %v2036, 2
      %v2044 = vsel %vm296, %v2041, %v2043
      %v2047 = vadd.f32 %v2032, %v2042
      %v2048 = vadd.f32 %v2033, %v2044
      %v2049 = vld [vmem:[%s1966] sm:$0xff]
      %v2050 = vld [vmem:[%s1966 + $0x8] sm:$0xff]
      %v2051 = vld [vmem:[%s1966 + $0x10] sm:$0x3]
      %v2052 = vmul.f32 %v2049, %v315
      %v2053 = vmul.f32 %v2050, %v315
      %v2054 = vadd.f32 %v2047, %v2052
      %v2055 = vadd.f32 %v2048, %v2053
      %v2056 = vmul.f32 %v2049, %v323
      %v2057 = vmul.f32 %v2050, %v323
      %v2058 = vmul.f32 %v2051, %v323
      %v2062 = vrot.slane %v2056, 1
      %v2063 = vrot.slane %v2057, 1
      %v2064 = vsel %vm276, %v2062, %v2063
      %v2065 = vrot.slane %v2058, 1
      %v2066 = vsel %vm276, %v2063, %v2065
      %v2069 = vadd.f32 %v2054, %v2064
      %v2070 = vadd.f32 %v2055, %v2066
      %v2071 = vmul.f32 %v2049, %v342
      %v2072 = vmul.f32 %v2050, %v342
      %v2073 = vmul.f32 %v2051, %v342
      %v2077 = vrot.slane %v2071, 2
      %v2078 = vrot.slane %v2072, 2
      %v2079 = vsel %vm296, %v2077, %v2078
      %v2080 = vrot.slane %v2073, 2
      %v2081 = vsel %vm296, %v2078, %v2080
      %v2084 = vadd.f32 %v2069, %v2079
      %v2085 = vadd.f32 %v2070, %v2081
      %s2086 = sadd.s32 %s248, 16
      %s2087 = smul.u32 %s2086, 24
      %s2088 = scalar_lea.vmem %s237, %s2087
      %v2089 = vld [vmem:[%s2088] sm:$0xff]
      %v2090 = vld [vmem:[%s2088 + $0x8] sm:$0xff]
      %v2091 = vld [vmem:[%s2088 + $0x10] sm:$0x3]
      %v2092 = vmul.f32 %v2089, %v367
      %v2093 = vmul.f32 %v2090, %v367
      %v2094 = vadd.f32 %v2084, %v2092
      %v2095 = vadd.f32 %v2085, %v2093
      %v2096 = vmul.f32 %v2089, %v375
      %v2097 = vmul.f32 %v2090, %v375
      %v2098 = vmul.f32 %v2091, %v375
      %v2102 = vrot.slane %v2096, 1
      %v2103 = vrot.slane %v2097, 1
      %v2104 = vsel %vm276, %v2102, %v2103
      %v2105 = vrot.slane %v2098, 1
      %v2106 = vsel %vm276, %v2103, %v2105
      %v2109 = vadd.f32 %v2094, %v2104
      %v2110 = vadd.f32 %v2095, %v2106
      %v2111 = vmul.f32 %v2089, %v394
      %v2112 = vmul.f32 %v2090, %v394
      %v2113 = vmul.f32 %v2091, %v394
      %v2117 = vrot.slane %v2111, 2
      %v2118 = vrot.slane %v2112, 2
      %v2119 = vsel %vm296, %v2117, %v2118
      %v2120 = vrot.slane %v2113, 2
      %v2121 = vsel %vm296, %v2118, %v2120
      %v2124 = vadd.f32 %v2109, %v2119
      %v2125 = vadd.f32 %v2110, %v2121
      %v2126 = vmul.f32 %v2124, %v413
      %v2127 = vmul.f32 %v2125, %v413
      %v2128 = vadd.f32 %v2126, %v419
      %v2129 = vadd.f32 %v2127, %v419
      %v2130 = vmax.f32 %v2128, 0.0
      %v2131 = vmax.f32 %v2129, 0.0
      %2132 = vst [vmem:[#allocation2 + $0xe0] sm:$0xff] %v2130
      %2133 = vst [vmem:[#allocation2 + $0xe8] sm:$0xff] %v2131
      %v2134 = vld [vmem:[%s1966] sm:$0xff]
      %v2135 = vld [vmem:[%s1966 + $0x8] sm:$0xff]
      %v2136 = vld [vmem:[%s1966 + $0x10] sm:$0x3]
      %v2137 = vmul.f32 %v2134, %v261
      %v2138 = vmul.f32 %v2135, %v261
      %v2139 = vadd.f32 %v2137, 0.0
      %v2140 = vadd.f32 %v2138, 0.0
      %v2141 = vmul.f32 %v2134, %v269
      %v2142 = vmul.f32 %v2135, %v269
      %v2143 = vmul.f32 %v2136, %v269
      %v2147 = vrot.slane %v2141, 1
      %v2148 = vrot.slane %v2142, 1
      %v2149 = vsel %vm276, %v2147, %v2148
      %v2150 = vrot.slane %v2143, 1
      %v2151 = vsel %vm276, %v2148, %v2150
      %v2154 = vadd.f32 %v2139, %v2149
      %v2155 = vadd.f32 %v2140, %v2151
      %v2156 = vmul.f32 %v2134, %v289
      %v2157 = vmul.f32 %v2135, %v289
      %v2158 = vmul.f32 %v2136, %v289
      %v2162 = vrot.slane %v2156, 2
      %v2163 = vrot.slane %v2157, 2
      %v2164 = vsel %vm296, %v2162, %v2163
      %v2165 = vrot.slane %v2158, 2
      %v2166 = vsel %vm296, %v2163, %v2165
      %v2169 = vadd.f32 %v2154, %v2164
      %v2170 = vadd.f32 %v2155, %v2166
      %v2171 = vld [vmem:[%s2088] sm:$0xff]
      %v2172 = vld [vmem:[%s2088 + $0x8] sm:$0xff]
      %v2173 = vld [vmem:[%s2088 + $0x10] sm:$0x3]
      %v2174 = vmul.f32 %v2171, %v315
      %v2175 = vmul.f32 %v2172, %v315
      %v2176 = vadd.f32 %v2169, %v2174
      %v2177 = vadd.f32 %v2170, %v2175
      %v2178 = vmul.f32 %v2171, %v323
      %v2179 = vmul.f32 %v2172, %v323
      %v2180 = vmul.f32 %v2173, %v323
      %v2184 = vrot.slane %v2178, 1
      %v2185 = vrot.slane %v2179, 1
      %v2186 = vsel %vm276, %v2184, %v2185
      %v2187 = vrot.slane %v2180, 1
      %v2188 = vsel %vm276, %v2185, %v2187
      %v2191 = vadd.f32 %v2176, %v2186
      %v2192 = vadd.f32 %v2177, %v2188
      %v2193 = vmul.f32 %v2171, %v342
      %v2194 = vmul.f32 %v2172, %v342
      %v2195 = vmul.f32 %v2173, %v342
      %v2199 = vrot.slane %v2193, 2
      %v2200 = vrot.slane %v2194, 2
      %v2201 = vsel %vm296, %v2199, %v2200
      %v2202 = vrot.slane %v2195, 2
      %v2203 = vsel %vm296, %v2200, %v2202
      %v2206 = vadd.f32 %v2191, %v2201
      %v2207 = vadd.f32 %v2192, %v2203
      %s2208 = sadd.s32 %s248, 17
      %s2209 = smul.u32 %s2208, 24
      %s2210 = scalar_lea.vmem %s237, %s2209
      %v2211 = vld [vmem:[%s2210] sm:$0xff]
      %v2212 = vld [vmem:[%s2210 + $0x8] sm:$0xff]
      %v2213 = vld [vmem:[%s2210 + $0x10] sm:$0x3]
      %v2214 = vmul.f32 %v2211, %v367
      %v2215 = vmul.f32 %v2212, %v367
      %v2216 = vadd.f32 %v2206, %v2214
      %v2217 = vadd.f32 %v2207, %v2215
      %v2218 = vmul.f32 %v2211, %v375
      %v2219 = vmul.f32 %v2212, %v375
      %v2220 = vmul.f32 %v2213, %v375
      %v2224 = vrot.slane %v2218, 1
      %v2225 = vrot.slane %v2219, 1
      %v2226 = vsel %vm276, %v2224, %v2225
      %v2227 = vrot.slane %v2220, 1
      %v2228 = vsel %vm276, %v2225, %v2227
      %v2231 = vadd.f32 %v2216, %v2226
      %v2232 = vadd.f32 %v2217, %v2228
      %v2233 = vmul.f32 %v2211, %v394
      %v2234 = vmul.f32 %v2212, %v394
      %v2235 = vmul.f32 %v2213, %v394
      %v2239 = vrot.slane %v2233, 2
      %v2240 = vrot.slane %v2234, 2
      %v2241 = vsel %vm296, %v2239, %v2240
      %v2242 = vrot.slane %v2235, 2
      %v2243 = vsel %vm296, %v2240, %v2242
      %v2246 = vadd.f32 %v2231, %v2241
      %v2247 = vadd.f32 %v2232, %v2243
      %v2248 = vmul.f32 %v2246, %v413
      %v2249 = vmul.f32 %v2247, %v413
      %v2250 = vadd.f32 %v2248, %v419
      %v2251 = vadd.f32 %v2249, %v419
      %v2252 = vmax.f32 %v2250, 0.0
      %v2253 = vmax.f32 %v2251, 0.0
      %2254 = vst [vmem:[#allocation2 + $0xf0] sm:$0xff] %v2252
      %2255 = vst [vmem:[#allocation2 + $0xf8] sm:$0xff] %v2253
      %v2256 = vld [vmem:[#allocation2] sm:$0xff]
      %v2257 = vld [vmem:[#allocation2 + $0x8] sm:$0xff]
      %v2258 = vld [vmem:[#allocation2 + $0x10] sm:$0xff]
      %v2259 = vld [vmem:[#allocation2 + $0x18] sm:$0xff]
      %v2260 = vld [vmem:[#allocation2 + $0x20] sm:$0xff]
      %v2261 = vld [vmem:[#allocation2 + $0x28] sm:$0xff]
      %v2262 = vld [vmem:[#allocation2 + $0x30] sm:$0xff]
      %v2263 = vld [vmem:[#allocation2 + $0x38] sm:$0xff]
      %v2264 = vld [vmem:[#allocation2 + $0x40] sm:$0xff]
      %v2265 = vld [vmem:[#allocation2 + $0x48] sm:$0xff]
      %v2266 = vld [vmem:[#allocation2 + $0x50] sm:$0xff]
      %v2267 = vld [vmem:[#allocation2 + $0x58] sm:$0xff]
      %v2268 = vld [vmem:[#allocation2 + $0x60] sm:$0xff]
      %v2269 = vld [vmem:[#allocation2 + $0x68] sm:$0xff]
      %v2270 = vld [vmem:[#allocation2 + $0x70] sm:$0xff]
      %v2271 = vld [vmem:[#allocation2 + $0x78] sm:$0xff]
      %v2272 = vld [vmem:[#allocation2 + $0x80] sm:$0xff]
      %v2273 = vld [vmem:[#allocation2 + $0x88] sm:$0xff]
      %v2274 = vld [vmem:[#allocation2 + $0x90] sm:$0xff]
      %v2275 = vld [vmem:[#allocation2 + $0x98] sm:$0xff]
      %v2276 = vld [vmem:[#allocation2 + $0xa0] sm:$0xff]
      %v2277 = vld [vmem:[#allocation2 + $0xa8] sm:$0xff]
      %v2278 = vld [vmem:[#allocation2 + $0xb0] sm:$0xff]
      %v2279 = vld [vmem:[#allocation2 + $0xb8] sm:$0xff]
      %v2280 = vld [vmem:[#allocation2 + $0xc0] sm:$0xff]
      %v2281 = vld [vmem:[#allocation2 + $0xc8] sm:$0xff]
      %v2282 = vld [vmem:[#allocation2 + $0xd0] sm:$0xff]
      %v2283 = vld [vmem:[#allocation2 + $0xd8] sm:$0xff]
      %v2284 = vld [vmem:[#allocation2 + $0xe0] sm:$0xff]
      %v2285 = vld [vmem:[#allocation2 + $0xe8] sm:$0xff]
      %v2286 = vld [vmem:[#allocation2 + $0xf0] sm:$0xff]
      %v2287 = vld [vmem:[#allocation2 + $0xf8] sm:$0xff]
      %v2288 = vld [vmem:[%s3] sm:$0xff]
      %v2289 = vld [vmem:[%s3 + $0x8] sm:$0xff]
      %v2290 = vld [vmem:[%s3 + $0x10] sm:$0xff]
      %v2291 = vld [vmem:[%s3 + $0x18] sm:$0xff]
      %v2292 = vld [vmem:[%s3 + $0x20] sm:$0xff]
      %v2293 = vld [vmem:[%s3 + $0x28] sm:$0xff]
      %v2294 = vld [vmem:[%s3 + $0x30] sm:$0xff]
      %v2295 = vld [vmem:[%s3 + $0x38] sm:$0xff]
      %v2296 = vld [vmem:[%s3 + $0x40] sm:$0xff]
      %v2297 = vld [vmem:[%s3 + $0x48] sm:$0xff]
      %v2298 = vld [vmem:[%s3 + $0x50] sm:$0xff]
      %v2299 = vld [vmem:[%s3 + $0x58] sm:$0xff]
      %v2300 = vld [vmem:[%s3 + $0x60] sm:$0xff]
      %v2301 = vld [vmem:[%s3 + $0x68] sm:$0xff]
      %v2302 = vld [vmem:[%s3 + $0x70] sm:$0xff]
      %v2303 = vld [vmem:[%s3 + $0x78] sm:$0xff]
      %2304 = vmatprep.subr.mxu0 0.0
      %2305 = vmatpush1.msra.mxu0 %v2303
      %2306 = vmatprep.subr.mxu0 0.0
      %2307 = vmatpush1.msra.mxu0 %v2302
      %2308 = vmatprep.subr.mxu0 0.0
      %2309 = vmatpush1.msra.mxu0 %v2301
      %2310 = vmatprep.subr.mxu0 0.0
      %2311 = vmatpush1.msra.mxu0 %v2300
      %2312 = vmatprep.subr.mxu0 0.0
      %2313 = vmatpush1.msra.mxu0 %v2299
      %2314 = vmatprep.subr.mxu0 0.0
      %2315 = vmatpush1.msra.mxu0 %v2298
      %2316 = vmatprep.subr.mxu0 0.0
      %2317 = vmatpush1.msra.mxu0 %v2297
      %2318 = vmatprep.subr.mxu0 0.0
      %2319 = vmatpush1.msra.mxu0 %v2296
      %2320 = vmatprep.subr.mxu0 0.0
      %2321 = vmatpush1.msra.mxu0 %v2295
      %2322 = vmatprep.subr.mxu0 0.0
      %2323 = vmatpush1.msra.mxu0 %v2294
      %2324 = vmatprep.subr.mxu0 0.0
      %2325 = vmatpush1.msra.mxu0 %v2293
      %2326 = vmatprep.subr.mxu0 0.0
      %2327 = vmatpush1.msra.mxu0 %v2292
      %2328 = vmatprep.subr.mxu0 0.0
      %2329 = vmatpush1.msra.mxu0 %v2291
      %2330 = vmatprep.subr.mxu0 0.0
      %2331 = vmatpush1.msra.mxu0 %v2290
      %2332 = vmatprep.subr.mxu0 0.0
      %2333 = vmatpush1.msra.mxu0 %v2289
      %2334 = vmatprep.subr.mxu0 0.0
      %2335 = vmatpush1.msra.mxu0 %v2288
      %2336 = vmatprep.subr.mxu0 0.0
      %2337 = vmatpush2.msra.mxu0 0.0
      %2338 = vmatprep.subr.mxu0 0.0
      %2339 = vmatpush2.msra.mxu0 0.0
      %2340 = vmatprep.subr.mxu0 0.0
      %2341 = vmatpush2.msra.mxu0 0.0
      %2342 = vmatprep.subr.mxu0 0.0
      %2343 = vmatpush2.msra.mxu0 0.0
      %2344 = vmatprep.subr.mxu0 0.0
      %2345 = vmatpush2.msra.mxu0 0.0
      %2346 = vmatprep.subr.mxu0 0.0
      %2347 = vmatpush2.msra.mxu0 0.0
      %2348 = vmatprep.subr.mxu0 0.0
      %2349 = vmatpush2.msra.mxu0 0.0
      %2350 = vmatprep.subr.mxu0 0.0
      %2351 = vmatpush2.msra.mxu0 0.0
      %2352 = vmatprep.subr.mxu0 0.0
      %2353 = vmatpush2.msra.mxu0 0.0
      %2354 = vmatprep.subr.mxu0 0.0
      %2355 = vmatpush2.msra.mxu0 0.0
      %2356 = vmatprep.subr.mxu0 0.0
      %2357 = vmatpush2.msra.mxu0 0.0
      %2358 = vmatprep.subr.mxu0 0.0
      %2359 = vmatpush2.msra.mxu0 0.0
      %2360 = vmatprep.subr.mxu0 0.0
      %2361 = vmatpush2.msra.mxu0 0.0
      %2362 = vmatprep.subr.mxu0 0.0
      %2363 = vmatpush2.msra.mxu0 0.0
      %2364 = vmatprep.subr.mxu0 0.0
      %2365 = vmatpush2.msra.mxu0 0.0
      %2366 = vmatprep.subr.mxu0 0.0
      %2367 = vmatpush2.msra.mxu0 0.0
      %2368 = vmatprep.mubr.f32.mxu0 0.0
      %2369 = vmatmul.mubr.f32.gmra.mxu0 %v2256
      %v2370 = vpop.f32.mrf.mxu0
      %v2371 = vadd.f32 0.0, %v2370
      %v2372 = vpop.f32.mrf.mxu0
      %2373 = vmatprep.mubr.f32.mxu0 0.0
      %2374 = vmatmul.mubr.f32.gmra.mxu0 %v2257
      %v2375 = vpop.f32.mrf.mxu0
      %v2376 = vadd.f32 0.0, %v2375
      %v2377 = vpop.f32.mrf.mxu0
      %2378 = vmatprep.mubr.f32.mxu0 0.0
      %2379 = vmatmul.mubr.f32.gmra.mxu0 %v2258
      %v2380 = vpop.f32.mrf.mxu0
      %v2381 = vadd.f32 0.0, %v2380
      %v2382 = vpop.f32.mrf.mxu0
      %2383 = vmatprep.mubr.f32.mxu0 0.0
      %2384 = vmatmul.mubr.f32.gmra.mxu0 %v2259
      %v2385 = vpop.f32.mrf.mxu0
      %v2386 = vadd.f32 0.0, %v2385
      %v2387 = vpop.f32.mrf.mxu0
      %2388 = vmatprep.mubr.f32.mxu0 0.0
      %2389 = vmatmul.mubr.f32.gmra.mxu0 %v2260
      %v2390 = vpop.f32.mrf.mxu0
      %v2391 = vadd.f32 0.0, %v2390
      %v2392 = vpop.f32.mrf.mxu0
      %2393 = vmatprep.mubr.f32.mxu0 0.0
      %2394 = vmatmul.mubr.f32.gmra.mxu0 %v2261
      %v2395 = vpop.f32.mrf.mxu0
      %v2396 = vadd.f32 0.0, %v2395
      %v2397 = vpop.f32.mrf.mxu0
      %2398 = vmatprep.mubr.f32.mxu0 0.0
      %2399 = vmatmul.mubr.f32.gmra.mxu0 %v2262
      %v2400 = vpop.f32.mrf.mxu0
      %v2401 = vadd.f32 0.0, %v2400
      %v2402 = vpop.f32.mrf.mxu0
      %2403 = vmatprep.mubr.f32.mxu0 0.0
      %2404 = vmatmul.mubr.f32.gmra.mxu0 %v2263
      %v2405 = vpop.f32.mrf.mxu0
      %v2406 = vadd.f32 0.0, %v2405
      %v2407 = vpop.f32.mrf.mxu0
      %2408 = vmatprep.mubr.f32.mxu0 0.0
      %2409 = vmatmul.mubr.f32.gmra.mxu0 %v2264
      %v2410 = vpop.f32.mrf.mxu0
      %v2411 = vadd.f32 0.0, %v2410
      %v2412 = vpop.f32.mrf.mxu0
      %2413 = vmatprep.mubr.f32.mxu0 0.0
      %2414 = vmatmul.mubr.f32.gmra.mxu0 %v2265
      %v2415 = vpop.f32.mrf.mxu0
      %v2416 = vadd.f32 0.0, %v2415
      %v2417 = vpop.f32.mrf.mxu0
      %2418 = vmatprep.mubr.f32.mxu0 0.0
      %2419 = vmatmul.mubr.f32.gmra.mxu0 %v2266
      %v2420 = vpop.f32.mrf.mxu0
      %v2421 = vadd.f32 0.0, %v2420
      %v2422 = vpop.f32.mrf.mxu0
      %2423 = vmatprep.mubr.f32.mxu0 0.0
      %2424 = vmatmul.mubr.f32.gmra.mxu0 %v2267
      %v2425 = vpop.f32.mrf.mxu0
      %v2426 = vadd.f32 0.0, %v2425
      %v2427 = vpop.f32.mrf.mxu0
      %2428 = vmatprep.mubr.f32.mxu0 0.0
      %2429 = vmatmul.mubr.f32.gmra.mxu0 %v2268
      %v2430 = vpop.f32.mrf.mxu0
      %v2431 = vadd.f32 0.0, %v2430
      %v2432 = vpop.f32.mrf.mxu0
      %2433 = vmatprep.mubr.f32.mxu0 0.0
      %2434 = vmatmul.mubr.f32.gmra.mxu0 %v2269
      %v2435 = vpop.f32.mrf.mxu0
      %v2436 = vadd.f32 0.0, %v2435
      %v2437 = vpop.f32.mrf.mxu0
      %2438 = vmatprep.mubr.f32.mxu0 0.0
      %2439 = vmatmul.mubr.f32.gmra.mxu0 %v2270
      %v2440 = vpop.f32.mrf.mxu0
      %v2441 = vadd.f32 0.0, %v2440
      %v2442 = vpop.f32.mrf.mxu0
      %2443 = vmatprep.mubr.f32.mxu0 0.0
      %2444 = vmatmul.mubr.f32.gmra.mxu0 %v2271
      %v2445 = vpop.f32.mrf.mxu0
      %v2446 = vadd.f32 0.0, %v2445
      %v2447 = vpop.f32.mrf.mxu0
      %2448 = vmatprep.mubr.f32.mxu0 0.0
      %2449 = vmatmul.mubr.f32.gmra.mxu0 %v2272
      %v2450 = vpop.f32.mrf.mxu0
      %v2451 = vadd.f32 0.0, %v2450
      %v2452 = vpop.f32.mrf.mxu0
      %2453 = vmatprep.mubr.f32.mxu0 0.0
      %2454 = vmatmul.mubr.f32.gmra.mxu0 %v2273
      %v2455 = vpop.f32.mrf.mxu0
      %v2456 = vadd.f32 0.0, %v2455
      %v2457 = vpop.f32.mrf.mxu0
      %2458 = vmatprep.mubr.f32.mxu0 0.0
      %2459 = vmatmul.mubr.f32.gmra.mxu0 %v2274
      %v2460 = vpop.f32.mrf.mxu0
      %v2461 = vadd.f32 0.0, %v2460
      %v2462 = vpop.f32.mrf.mxu0
      %2463 = vmatprep.mubr.f32.mxu0 0.0
      %2464 = vmatmul.mubr.f32.gmra.mxu0 %v2275
      %v2465 = vpop.f32.mrf.mxu0
      %v2466 = vadd.f32 0.0, %v2465
      %v2467 = vpop.f32.mrf.mxu0
      %2468 = vmatprep.mubr.f32.mxu0 0.0
      %2469 = vmatmul.mubr.f32.gmra.mxu0 %v2276
      %v2470 = vpop.f32.mrf.mxu0
      %v2471 = vadd.f32 0.0, %v2470
      %v2472 = vpop.f32.mrf.mxu0
      %2473 = vmatprep.mubr.f32.mxu0 0.0
      %2474 = vmatmul.mubr.f32.gmra.mxu0 %v2277
      %v2475 = vpop.f32.mrf.mxu0
      %v2476 = vadd.f32 0.0, %v2475
      %v2477 = vpop.f32.mrf.mxu0
      %2478 = vmatprep.mubr.f32.mxu0 0.0
      %2479 = vmatmul.mubr.f32.gmra.mxu0 %v2278
      %v2480 = vpop.f32.mrf.mxu0
      %v2481 = vadd.f32 0.0, %v2480
      %v2482 = vpop.f32.mrf.mxu0
      %2483 = vmatprep.mubr.f32.mxu0 0.0
      %2484 = vmatmul.mubr.f32.gmra.mxu0 %v2279
      %v2485 = vpop.f32.mrf.mxu0
      %v2486 = vadd.f32 0.0, %v2485
      %v2487 = vpop.f32.mrf.mxu0
      %2488 = vmatprep.mubr.f32.mxu0 0.0
      %2489 = vmatmul.mubr.f32.gmra.mxu0 %v2280
      %v2490 = vpop.f32.mrf.mxu0
      %v2491 = vadd.f32 0.0, %v2490
      %v2492 = vpop.f32.mrf.mxu0
      %2493 = vmatprep.mubr.f32.mxu0 0.0
      %2494 = vmatmul.mubr.f32.gmra.mxu0 %v2281
      %v2495 = vpop.f32.mrf.mxu0
      %v2496 = vadd.f32 0.0, %v2495
      %v2497 = vpop.f32.mrf.mxu0
      %2498 = vmatprep.mubr.f32.mxu0 0.0
      %2499 = vmatmul.mubr.f32.gmra.mxu0 %v2282
      %v2500 = vpop.f32.mrf.mxu0
      %v2501 = vadd.f32 0.0, %v2500
      %v2502 = vpop.f32.mrf.mxu0
      %2503 = vmatprep.mubr.f32.mxu0 0.0
      %2504 = vmatmul.mubr.f32.gmra.mxu0 %v2283
      %v2505 = vpop.f32.mrf.mxu0
      %v2506 = vadd.f32 0.0, %v2505
      %v2507 = vpop.f32.mrf.mxu0
      %2508 = vmatprep.mubr.f32.mxu0 0.0
      %2509 = vmatmul.mubr.f32.gmra.mxu0 %v2284
      %v2510 = vpop.f32.mrf.mxu0
      %v2511 = vadd.f32 0.0, %v2510
      %v2512 = vpop.f32.mrf.mxu0
      %2513 = vmatprep.mubr.f32.mxu0 0.0
      %2514 = vmatmul.mubr.f32.gmra.mxu0 %v2285
      %v2515 = vpop.f32.mrf.mxu0
      %v2516 = vadd.f32 0.0, %v2515
      %v2517 = vpop.f32.mrf.mxu0
      %2518 = vmatprep.mubr.f32.mxu0 0.0
      %2519 = vmatmul.mubr.f32.gmra.mxu0 %v2286
      %v2520 = vpop.f32.mrf.mxu0
      %v2521 = vadd.f32 0.0, %v2520
      %v2522 = vpop.f32.mrf.mxu0
      %2523 = vmatprep.mubr.f32.mxu0 0.0
      %2524 = vmatmul.mubr.f32.gmra.mxu0 %v2287
      %v2525 = vpop.f32.mrf.mxu0
      %v2526 = vadd.f32 0.0, %v2525
      %v2527 = vpop.f32.mrf.mxu0
      %2528 = vdwg.mxu0
      %v2529 = vld [vmem:[%s4] sm:$0x1]
      %v2530 = vld [vmem:[%s4 + $0x1] sm:$0x1]
      %v2531 = vlaneseq
      %v2532 = vshrl.u32 %v2531, 7
      %v2533 = vsub.s32 0, %v2532
      %v2534 = vrot.slane %v2529, %v2533
      %v2535 = vmul.f32 %v2371, %v2534
      %v2536 = vmul.f32 %v2376, %v2534
      %v2537 = vmul.f32 %v2381, %v2534
      %v2538 = vmul.f32 %v2386, %v2534
      %v2539 = vmul.f32 %v2391, %v2534
      %v2540 = vmul.f32 %v2396, %v2534
      %v2541 = vmul.f32 %v2401, %v2534
      %v2542 = vmul.f32 %v2406, %v2534
      %v2543 = vmul.f32 %v2411, %v2534
      %v2544 = vmul.f32 %v2416, %v2534
      %v2545 = vmul.f32 %v2421, %v2534
      %v2546 = vmul.f32 %v2426, %v2534
      %v2547 = vmul.f32 %v2431, %v2534
      %v2548 = vmul.f32 %v2436, %v2534
      %v2549 = vmul.f32 %v2441, %v2534
      %v2550 = vmul.f32 %v2446, %v2534
      %v2551 = vmul.f32 %v2451, %v2534
      %v2552 = vmul.f32 %v2456, %v2534
      %v2553 = vmul.f32 %v2461, %v2534
      %v2554 = vmul.f32 %v2466, %v2534
      %v2555 = vmul.f32 %v2471, %v2534
      %v2556 = vmul.f32 %v2476, %v2534
      %v2557 = vmul.f32 %v2481, %v2534
      %v2558 = vmul.f32 %v2486, %v2534
      %v2559 = vmul.f32 %v2491, %v2534
      %v2560 = vmul.f32 %v2496, %v2534
      %v2561 = vmul.f32 %v2501, %v2534
      %v2562 = vmul.f32 %v2506, %v2534
      %v2563 = vmul.f32 %v2511, %v2534
      %v2564 = vmul.f32 %v2516, %v2534
      %v2565 = vmul.f32 %v2521, %v2534
      %v2566 = vmul.f32 %v2526, %v2534
      %v2567 = vlaneseq
      %v2568 = vshrl.u32 %v2567, 7
      %v2569 = vsub.s32 0, %v2568
      %v2570 = vrot.slane %v2530, %v2569
      %v2571 = vadd.f32 %v2535, %v2570
      %v2572 = vadd.f32 %v2536, %v2570
      %v2573 = vadd.f32 %v2537, %v2570
      %v2574 = vadd.f32 %v2538, %v2570
      %v2575 = vadd.f32 %v2539, %v2570
      %v2576 = vadd.f32 %v2540, %v2570
      %v2577 = vadd.f32 %v2541, %v2570
      %v2578 = vadd.f32 %v2542, %v2570
      %v2579 = vadd.f32 %v2543, %v2570
      %v2580 = vadd.f32 %v2544, %v2570
      %v2581 = vadd.f32 %v2545, %v2570
      %v2582 = vadd.f32 %v2546, %v2570
      %v2583 = vadd.f32 %v2547, %v2570
      %v2584 = vadd.f32 %v2548, %v2570
      %v2585 = vadd.f32 %v2549, %v2570
      %v2586 = vadd.f32 %v2550, %v2570
      %v2587 = vadd.f32 %v2551, %v2570
      %v2588 = vadd.f32 %v2552, %v2570
      %v2589 = vadd.f32 %v2553, %v2570
      %v2590 = vadd.f32 %v2554, %v2570
      %v2591 = vadd.f32 %v2555, %v2570
      %v2592 = vadd.f32 %v2556, %v2570
      %v2593 = vadd.f32 %v2557, %v2570
      %v2594 = vadd.f32 %v2558, %v2570
      %v2595 = vadd.f32 %v2559, %v2570
      %v2596 = vadd.f32 %v2560, %v2570
      %v2597 = vadd.f32 %v2561, %v2570
      %v2598 = vadd.f32 %v2562, %v2570
      %v2599 = vadd.f32 %v2563, %v2570
      %v2600 = vadd.f32 %v2564, %v2570
      %v2601 = vadd.f32 %v2565, %v2570
      %v2602 = vadd.f32 %v2566, %v2570
      %v2603 = vmax.f32 %v2571, 0.0
      %v2604 = vmax.f32 %v2572, 0.0
      %v2605 = vmax.f32 %v2573, 0.0
      %v2606 = vmax.f32 %v2574, 0.0
      %v2607 = vmax.f32 %v2575, 0.0
      %v2608 = vmax.f32 %v2576, 0.0
      %v2609 = vmax.f32 %v2577, 0.0
      %v2610 = vmax.f32 %v2578, 0.0
      %v2611 = vmax.f32 %v2579, 0.0
      %v2612 = vmax.f32 %v2580, 0.0
      %v2613 = vmax.f32 %v2581, 0.0
      %v2614 = vmax.f32 %v2582, 0.0
      %v2615 = vmax.f32 %v2583, 0.0
      %v2616 = vmax.f32 %v2584, 0.0
      %v2617 = vmax.f32 %v2585, 0.0
      %v2618 = vmax.f32 %v2586, 0.0
      %v2619 = vmax.f32 %v2587, 0.0
      %v2620 = vmax.f32 %v2588, 0.0
      %v2621 = vmax.f32 %v2589, 0.0
      %v2622 = vmax.f32 %v2590, 0.0
      %v2623 = vmax.f32 %v2591, 0.0
      %v2624 = vmax.f32 %v2592, 0.0
      %v2625 = vmax.f32 %v2593, 0.0
      %v2626 = vmax.f32 %v2594, 0.0
      %v2627 = vmax.f32 %v2595, 0.0
      %v2628 = vmax.f32 %v2596, 0.0
      %v2629 = vmax.f32 %v2597, 0.0
      %v2630 = vmax.f32 %v2598, 0.0
      %v2631 = vmax.f32 %v2599, 0.0
      %v2632 = vmax.f32 %v2600, 0.0
      %v2633 = vmax.f32 %v2601, 0.0
      %v2634 = vmax.f32 %v2602, 0.0
      %2635 = vst [vmem:[%s246] sm:$0xff] %v2603
      %2636 = vst [vmem:[%s246 + $0x8] sm:$0xff] %v2604
      %2637 = vst [vmem:[%s246 + $0x10] sm:$0xff] %v2605
      %2638 = vst [vmem:[%s246 + $0x18] sm:$0xff] %v2606
      %2639 = vst [vmem:[%s246 + $0x20] sm:$0xff] %v2607
      %2640 = vst [vmem:[%s246 + $0x28] sm:$0xff] %v2608
      %2641 = vst [vmem:[%s246 + $0x30] sm:$0xff] %v2609
      %2642 = vst [vmem:[%s246 + $0x38] sm:$0xff] %v2610
      %2643 = vst [vmem:[%s246 + $0x40] sm:$0xff] %v2611
      %2644 = vst [vmem:[%s246 + $0x48] sm:$0xff] %v2612
      %2645 = vst [vmem:[%s246 + $0x50] sm:$0xff] %v2613
      %2646 = vst [vmem:[%s246 + $0x58] sm:$0xff] %v2614
      %2647 = vst [vmem:[%s246 + $0x60] sm:$0xff] %v2615
      %2648 = vst [vmem:[%s246 + $0x68] sm:$0xff] %v2616
      %2649 = vst [vmem:[%s246 + $0x70] sm:$0xff] %v2617
      %2650 = vst [vmem:[%s246 + $0x78] sm:$0xff] %v2618
      %2651 = vst [vmem:[%s246 + $0x80] sm:$0xff] %v2619
      %2652 = vst [vmem:[%s246 + $0x88] sm:$0xff] %v2620
      %2653 = vst [vmem:[%s246 + $0x90] sm:$0xff] %v2621
      %2654 = vst [vmem:[%s246 + $0x98] sm:$0xff] %v2622
      %2655 = vst [vmem:[%s246 + $0xa0] sm:$0xff] %v2623
      %2656 = vst [vmem:[%s246 + $0xa8] sm:$0xff] %v2624
      %2657 = vst [vmem:[%s246 + $0xb0] sm:$0xff] %v2625
      %2658 = vst [vmem:[%s246 + $0xb8] sm:$0xff] %v2626
      %2659 = vst [vmem:[%s246 + $0xc0] sm:$0xff] %v2627
      %2660 = vst [vmem:[%s246 + $0xc8] sm:$0xff] %v2628
      %2661 = vst [vmem:[%s246 + $0xd0] sm:$0xff] %v2629
      %2662 = vst [vmem:[%s246 + $0xd8] sm:$0xff] %v2630
      %2663 = vst [vmem:[%s246 + $0xe0] sm:$0xff] %v2631
      %2664 = vst [vmem:[%s246 + $0xe8] sm:$0xff] %v2632
      %2665 = vst [vmem:[%s246 + $0xf0] sm:$0xff] %v2633
      %2666 = vst [vmem:[%s246 + $0xf8] sm:$0xff] %v2634
      %s2667 = smul.u32 32, %s21
      %p2668 = scmp.lt.s32.totalorder %s20, 1
      %s2669 = scalar_select %p2668, %s20, 1
      %p2670 = scmp.lt.s32.totalorder %s2667, 31
      %s2671 = scalar_select %p2670, %s2667, 31
      %s2672 = smul.addr %s2669, 32
      %s2673 = sadd.s32 %s2671, %s2672
      %s2674 = smul.addr %s2673, 8
      %s2675 = scalar_lea.vmem %s5, %s2674
      // Predicated region
      $region41: #{depthwise_block_forward.1} parent=39 // pred_check
        %p2676 = pneg %p158
      $region42: #{depthwise_block_forward.1} parent=39 // pred_check_branch
        %2678 = sbr.rel (%p2676) target = $region44
      $region43: #{depthwise_block_forward.1} parent=39 // pred_region
        %s2679 = smul.u32 32, %s21
      $region44: #{depthwise_block_forward.1} parent=39 // pred_fallthru
        _
    $region40: #{depthwise_block_forward.1} parent=5 // pred_fallthru
      _
    %p2680 = scmp.le.s32.totalorder 2, %s11
    // Predicated region
    $region45: #{depthwise_block_forward.1} parent=5 // pred_check
      %p2681 = pneg %p2680
    $region46: #{depthwise_block_forward.1} parent=5 // pred_check_branch
      %2683 = sbr.rel (%p2681) target = $region48
    $region47: #{depthwise_block_forward.1} parent=5 // pred_region
      %s2684 = ssub.s32 %s11, 2
      // Predicated region
      $region49: #{depthwise_block_forward.1} parent=47 // pred_check
        %p2685 = pneg %p164
      $region50: #{depthwise_block_forward.1} parent=47 // pred_check_branch
        %2687 = sbr.rel (%p2685) target = $region52
      $region51: #{depthwise_block_forward.1} parent=47 // pred_region
        %s2688 = smul.u32 32, %s23
        %p2689 = scmp.lt.s32.totalorder %s22, 1
        %s2690 = scalar_select %p2689, %s22, 1
        %p2691 = scmp.lt.s32.totalorder %s2688, 31
        %s2692 = scalar_select %p2691, %s2688, 31
        %s2693 = smul.addr %s2690, 32
        %s2694 = sadd.s32 %s2692, %s2693
        %s2695 = smul.addr %s2694, 8
        %s2696 = scalar_lea.vmem %s5, %s2695
      $region52: #{depthwise_block_forward.1} parent=47 // pred_fallthru
        _
    $region48: #{depthwise_block_forward.1} parent=5 // pred_fallthru
      _
  $region6: #{depthwise_block_forward.1} parent=0 // loop_footer
    %s15 = sadd.s32 1, %s11
  $region7: #{depthwise_block_forward.1} parent=0 // loop_footer_branch
    %10 = sbr.rel target = $region3
  $region8: #{depthwise_block_forward.1} parent=0 // loop_exit
    _

</llo_original>
